<compile_context>
chip_gen: v5e
topology: v5e:2x2
jax: 0.10.0
libtpu: 0.0.40
codegen_flags: <defaults>
</compile_context>

<pallas_src>
import math

import numpy as np
import jax
import jax.numpy as jnp
from jax.experimental import pallas as pl
from jax.experimental.pallas import tpu as pltpu

# ----------------------------- constants ------------------------------------
SAMPLE_RATE = 16000
N_FFT = 1024
HOP_LENGTH = 160
N_MELS = 128
N_FREQS = N_FFT // 2 + 1          # 513 onesided bins
N_HALF = N_FFT // 2               # 512: radix-2 half-DFT length
N_BINS = N_HALF // 2              # 256: Hermitian-unique bins kept per half-DFT
PAD = (N_FFT - HOP_LENGTH) // 2   # 432: module pads explicitly (center=False), we match it
CLAMP_MIN = 1e-5
TM_MIN = 128                      # frame-tile quantum (avoids huge dead padding on short clips)
TM_MAX = 1024                     # frame-tile cap (footprint ~20 MiB at 1024)


# --------------------- host-side parameter builders (numpy f64) --------------
def _hz_to_mel_slaney(freq_hz: float) -> float:
    f_sp = 200.0 / 3.0
    min_log_hz = 1000.0
    min_log_mel = min_log_hz / f_sp
    logstep = math.log(6.4) / 27.0
    if freq_hz >= min_log_hz:
        return min_log_mel + math.log(freq_hz / min_log_hz) / logstep
    return freq_hz / f_sp


def _mel_to_hz_slaney(mels: np.ndarray) -> np.ndarray:
    f_sp = 200.0 / 3.0
    min_log_hz = 1000.0
    min_log_mel = min_log_hz / f_sp
    logstep = math.log(6.4) / 27.0
    mels = np.asarray(mels, dtype=np.float64)
    freqs = f_sp * mels
    log_t = mels >= min_log_mel
    freqs[log_t] = min_log_hz * np.exp(logstep * (mels[log_t] - min_log_mel))
    return freqs


def _make_mel_filterbank_full() -> np.ndarray:
    """torchaudio melscale_fbanks(513, 0, 8000, 128, 16000, 'slaney', 'slaney') -> [513, 128] f64."""
    f_min, f_max = 0.0, SAMPLE_RATE / 2.0
    all_freqs = np.linspace(0.0, SAMPLE_RATE // 2, N_FREQS, dtype=np.float64)
    m_min = _hz_to_mel_slaney(f_min)
    m_max = _hz_to_mel_slaney(f_max)
    m_pts = np.linspace(m_min, m_max, N_MELS + 2, dtype=np.float64)
    f_pts = _mel_to_hz_slaney(m_pts)                          # [n_mels + 2]

    f_diff = f_pts[1:] - f_pts[:-1]                           # [n_mels + 1]
    slopes = f_pts[None, :] - all_freqs[:, None]              # [513, n_mels + 2]
    down_slopes = -slopes[:, :-2] / f_diff[:-1]               # [513, n_mels]
    up_slopes = slopes[:, 2:] / f_diff[1:]                    # [513, n_mels]
    fb = np.maximum(0.0, np.minimum(down_slopes, up_slopes))

    enorm = 2.0 / (f_pts[2:N_MELS + 2] - f_pts[:N_MELS])      # slaney norm
    fb = fb * enorm[None, :]
    return fb                                                  # [513, 128]


def make_permuted_mel_fb() -> np.ndarray:
    """Mel fbank with the Hermitian-reconstruction bin order folded in -> [512, 128]:
      rows   0..255 : fb rows 0..255                (weights for |X[0..255]|  -> mag_a)
      row    256    : fb row 256                    (weight  for |X[256]|     -> mag_b lane 0)
      rows 257..511 : fb rows 511..257 (reversed)   (weights for |X[512-k]|, k=1..255 -> mag_b)
    The full-DFT Nyquist row fb[512] is (numerically) zero for slaney @ 8 kHz and is dropped."""
    fb = _make_mel_filterbank_full()                           # [513, 128]
    assert np.allclose(fb[N_HALF], 0.0, atol=1e-6)
    fb_a = fb[0:N_BINS, :]
    fb_b = np.zeros((N_BINS, N_MELS), dtype=np.float64)
    fb_b[0, :] = fb[N_BINS, :]                                 # bin 256
    fb_b[1:, :] = fb[N_BINS + 1:N_HALF, :][::-1]               # bins 511..257
    return np.concatenate([fb_a, fb_b], axis=0)                # [512, 128]


def make_radix2_bases():
    """Window-folded 512-point real-DFT bases for the even/odd sample streams plus the
    length-1024 twiddles, built in float64.

    Basis column layout (both bases), [512, 512]:
      cols   0..255 : Re bins 0..255
      col    256    : Re bin 256 (= (-1)^m; stashed in the identically-zero Im bin-0 slot)
      cols 257..511 : Im bins 1..255
    """
    m = np.arange(N_HALF, dtype=np.float64)[:, None]           # [512, 1]
    k = np.arange(N_BINS, dtype=np.float64)[None, :]           # [1, 256]
    ang = 2.0 * np.pi * np.mod(m * k, N_HALF) / N_HALF         # reduced phase for accuracy
    re_cols = np.cos(ang)                                      # Re bins 0..255
    im_cols = -np.sin(ang)                                     # Im bins 0..255 (bin 0 all-zero)
    im_cols[:, 0] = np.where(np.arange(N_HALF) % 2 == 0, 1.0, -1.0)  # stash Re bin 256
    basis = np.concatenate([re_cols, im_cols], axis=1)         # [512, 512]

    # periodic Hann window, split into even / odd sample weights
    win = 0.5 * (1.0 - np.cos(2.0 * np.pi * np.arange(N_FFT, dtype=np.float64) / N_FFT))
    basis_e = basis * win[0::2][:, None]
    basis_o = basis * win[1::2][:, None]

    kk = np.arange(N_BINS, dtype=np.float64)
    tw = np.stack([np.cos(2.0 * np.pi * kk / N_FFT),
                   np.sin(2.0 * np.pi * kk / N_FFT)], axis=0)  # [2, 256]
    return basis_e, basis_o, tw


# Device-resident constant operands (bf16 for MXU rate; f32 accumulation in-kernel).
_BASIS_E_NP, _BASIS_O_NP, _TW_NP = make_radix2_bases()
_BASIS_E = jnp.asarray(_BASIS_E_NP, dtype=jnp.bfloat16)            # [512, 512]
_BASIS_O = jnp.asarray(_BASIS_O_NP, dtype=jnp.bfloat16)            # [512, 512]
_TWIDDLE = jnp.asarray(_TW_NP, dtype=jnp.float32)                  # [2, 256]
_MEL_FB = jnp.asarray(make_permuted_mel_fb(), dtype=jnp.bfloat16)  # [512, 128]


# ------------------------------- kernel --------------------------------------
def logmel_kernel(frames_ref, be_ref, bo_ref, mel_ref, tw_ref, out_ref):
    # frames_ref: [TM, 1024] bf16, columns = [even samples | odd samples] (radix-2 DIT order)
    # be_ref/bo_ref: [512, 512] bf16 window-folded half-DFT bases (layout in make_radix2_bases)
    # mel_ref:   [512, 128]  bf16 permuted slaney filterbank
    # tw_ref:    [2, 256]    f32  twiddles (cos, sin of 2*pi*k/1024)
    # out_ref:   [TM, 128]   f32
    fe = frames_ref[:, 0:N_HALF]
    fo = frames_ref[:, N_HALF:N_FFT]
    spec_e = jnp.dot(fe, be_ref[...], preferred_element_type=jnp.float32)   # [TM, 512]
    spec_o = jnp.dot(fo, bo_ref[...], preferred_element_type=jnp.float32)   # [TM, 512]

    er = spec_e[:, 0:N_BINS]           # Re E[0..255]
    ei = spec_e[:, N_BINS:N_HALF]      # Im E[0..255]; lane 0 carries E[256] (real)
    o_r = spec_o[:, 0:N_BINS]          # Re O[0..255]
    o_i = spec_o[:, N_BINS:N_HALF]     # Im O[0..255]; lane 0 carries O[256] (real)

    c = tw_ref[0:1, :]                 # [1, 256] broadcast over frames
    s = tw_ref[1:2, :]
    tr = c * o_r + s * o_i             # Re(W^k O[k]); k=0 unaffected by stashed O[256] (s0 = 0)
    ti = c * o_i - s * o_r             # Im(W^k O[k]); k=0 slot is garbage -> masked below

    lane0 = jax.lax.broadcasted_iota(jnp.int32, (er.shape[0], N_BINS), 1) == 0
    re_a = er + tr                                 # X[k] = E[k] + W^k O[k],       k = 0..255
    im_a = jnp.where(lane0, 0.0, ei + ti)          # Im X[0] is exactly 0
    re_b = jnp.where(lane0, ei, er - tr)           # |X[512-k]| = |E[k] - W^k O[k]|, k = 1..255
    im_b = jnp.where(lane0, o_i, ei - ti)          # lane 0 -> |X[256]| = sqrt(E256^2 + O256^2)
    mag_a = jnp.sqrt(re_a * re_a + im_a * im_a)    # power = 1.0
    mag_b = jnp.sqrt(re_b * re_b + im_b * im_b)

    mel = (jnp.dot(mag_a.astype(jnp.bfloat16), mel_ref[0:N_BINS, :],
                   preferred_element_type=jnp.float32)
           + jnp.dot(mag_b.astype(jnp.bfloat16), mel_ref[N_BINS:2 * N_BINS, :],
                     preferred_element_type=jnp.float32))      # [TM, 128] f32
    out_ref[...] = jnp.log(jnp.maximum(mel, CLAMP_MIN))


# ------------------------------- wrapper --------------------------------------
def _round_up(x, m):
    return ((x + m - 1) // m) * m


def _cdiv(a, b):
    return (a + b - 1) // b


def _choose_tm(m_total):
    """Adaptive frame tile: large enough to amortize the ~0.35us per-step overhead,
    small enough not to pad tiny clips, and split into >=2 grid steps when possible so
    v7x's two TensorCores both get work."""
    tm = min(TM_MAX, _round_up(max(m_total, 1), TM_MIN))
    if tm > TM_MIN and _cdiv(m_total, tm) == 1:
        tm = max(TM_MIN, _round_up(_cdiv(m_total, 2), TM_MIN))
    return tm


@jax.jit
def _log_mel_impl(wav, basis_e, basis_o, mel_fb, twiddle):
    """wav: [B, T] float -> logmel: [B, N_MELS, num_frames] f32."""
    B, T = wav.shape
    if T <= PAD:
        raise ValueError(f"reflect padding requires T > {PAD}, got T={T}")
    # Matches the module exactly: center=False MelSpectrogram after an explicit
    # reflect pad of (n_fft - hop)//2 = 432 samples on each side.
    wav_p = jnp.pad(wav.astype(jnp.float32), ((0, 0), (PAD, PAD)), mode="reflect")
    Tp = T + 2 * PAD
    num_frames = (Tp - N_FFT) // HOP_LENGTH + 1

    # Frame extraction glue (XLA gather); the even/odd radix-2 reorder is folded into
    # the index array for free.  bf16 halves the HBM traffic of the expanded frames.
    # TODO(synk): move framing into the kernel (manual DMA of contiguous waveform chunks
    # per tile) to remove the ~6.4x frame-expansion HBM traffic of this gather.
    wav_p = wav_p.astype(jnp.bfloat16)
    starts = np.arange(num_frames, dtype=np.int32) * HOP_LENGTH
    order = np.concatenate([np.arange(0, N_FFT, 2, dtype=np.int32),
                            np.arange(1, N_FFT, 2, dtype=np.int32)])
    idx = starts[:, None] + order[None, :]
    frames = wav_p[:, idx].reshape(B * num_frames, N_FFT)      # [M, 1024] bf16

    M = B * num_frames
    TM = _choose_tm(M)
    M_pad = _round_up(M, TM)
    frames = jnp.pad(frames, ((0, M_pad - M), (0, 0)))
    grid_m = M_pad // TM

    macs = M_pad * (2 * N_HALF * N_HALF + 2 * N_BINS * N_MELS)
    transcendentals = M_pad * (2 * N_BINS + N_MELS)            # sqrt + log
    bytes_accessed = (M_pad * N_FFT * 2 + 2 * N_HALF * N_HALF * 2
                      + 2 * N_BINS * N_MELS * 2 + 2 * N_BINS * 4
                      + M_pad * N_MELS * 4)

    out = pl.pallas_call(
        logmel_kernel,
        out_shape=jax.ShapeDtypeStruct((M_pad, N_MELS), jnp.float32),
        grid=(grid_m,),
        in_specs=[
            # streamed frame tile: default double buffering (DMA hidden behind MXU)
            pl.BlockSpec((TM, N_FFT), lambda i: (i, 0)),
            # resident constants: constant index_map, single-buffered
            pl.BlockSpec((N_HALF, N_HALF), lambda i: (0, 0),
                         pipeline_mode=pl.Buffered(1)),
            pl.BlockSpec((N_HALF, N_HALF), lambda i: (0, 0),
                         pipeline_mode=pl.Buffered(1)),
            pl.BlockSpec((2 * N_BINS, N_MELS), lambda i: (0, 0),
                         pipeline_mode=pl.Buffered(1)),
            pl.BlockSpec((2, N_BINS), lambda i: (0, 0),
                         pipeline_mode=pl.Buffered(1)),
        ],
        out_specs=pl.BlockSpec((TM, N_MELS), lambda i: (i, 0)),
        compiler_params=pltpu.CompilerParams(
            dimension_semantics=("parallel",),
            vmem_limit_bytes=48 * 1024 * 1024,
        ),
        cost_estimate=pl.CostEstimate(
            flops=2 * macs,
            transcendentals=transcendentals,
            bytes_accessed=bytes_accessed,
        ),
    )(frames, basis_e, basis_o, mel_fb, twiddle)

    # [M, n_mels] -> [B, num_frames, n_mels] -> [B, n_mels, num_frames]
    return out[:M].reshape(B, num_frames, N_MELS).transpose(0, 2, 1)


def log_mel_spectrogram(wav):
    return _log_mel_impl(wav, _BASIS_E, _BASIS_O, _MEL_FB, _TWIDDLE)


# ---------------------- pure-JAX f32 reference (for validation) ----------------
def _reference_log_mel(wav):
    """Straightforward f32 reference of the module (direct DFT-by-matmul, no radix-2/bf16)."""
    B, T = wav.shape
    wav_p = jnp.pad(wav.astype(jnp.float32), ((0, 0), (PAD, PAD)), mode="reflect")
    num_frames = (wav_p.shape[1] - N_FFT) // HOP_LENGTH + 1
    starts = np.arange(num_frames, dtype=np.int32) * HOP_LENGTH
    idx = starts[:, None] + np.arange(N_FFT, dtype=np.int32)[None, :]
    win = jnp.asarray(0.5 * (1.0 - np.cos(2.0 * np.pi * np.arange(N_FFT) / N_FFT)),
                      jnp.float32)
    frames = (wav_p[:, idx] * win[None, None, :]).reshape(B * num_frames, N_FFT)

    n = np.arange(N_FFT, dtype=np.float64)[:, None]
    k = np.arange(N_FREQS, dtype=np.float64)[None, :]
    ang = 2.0 * np.pi * np.mod(n * k, N_FFT) / N_FFT
    cos_b = jnp.asarray(np.cos(ang), jnp.float32)
    sin_b = jnp.asarray(np.sin(ang), jnp.float32)
    hi = jax.lax.Precision.HIGHEST
    re = jnp.dot(frames, cos_b, precision=hi)
    im = -jnp.dot(frames, sin_b, precision=hi)
    spec = jnp.sqrt(re * re + im * im)                              # [M, 513]
    fb = jnp.asarray(_make_mel_filterbank_full(), jnp.float32)      # [513, 128]
    mel = jnp.dot(spec, fb, precision=hi)
    logmel = jnp.log(jnp.maximum(mel, CLAMP_MIN))
    return logmel.reshape(B, num_frames, N_MELS).transpose(0, 2, 1)


# ------------------------------- main -----------------------------------------
if __name__ == "__main__":
    key = jax.random.PRNGKey(0)
    B, T = 2, 1600                      # 0.1 s @ 16 kHz
    wav = jax.random.normal(key, (B, T), dtype=jnp.float32)

    logmel = log_mel_spectrogram(wav)
    jax.block_until_ready(logmel)

    num_frames = (T + 2 * PAD - N_FFT) // HOP_LENGTH + 1
    assert logmel.shape == (B, N_MELS, num_frames), logmel.shape
    assert logmel.dtype == jnp.float32
    assert bool(jnp.all(jnp.isfinite(logmel)))

    # Loose correctness check vs. an f32 reference (bf16 data path => ~1% rel error on
    # mel, i.e. ~0.01-0.05 abs error on log-mel for this input; 0.25 catches real bugs).
    ref = _reference_log_mel(wav)
    max_err = float(jnp.max(jnp.abs(logmel - ref)))
    assert max_err < 0.25, f"log-mel mismatch vs f32 reference: max abs err {max_err}"

    print("KERNEL_OK")
</pallas_src>

<mosaic_0001>
module attributes {stable_mosaic.version = 11 : i64} {
  func.func @logmel_kernel(%arg0: i32, %arg1: memref<128x1024xbf16, #tpu.memory_space<vmem>>, %arg2: memref<512x512xbf16, #tpu.memory_space<vmem>>, %arg3: memref<512x512xbf16, #tpu.memory_space<vmem>>, %arg4: memref<512x128xbf16, #tpu.memory_space<vmem>>, %arg5: memref<2x256xf32, #tpu.memory_space<vmem>>, %arg6: memref<128x128xf32, #tpu.memory_space<vmem>>) attributes {dimension_semantics = [#tpu.dimension_semantics<parallel>], iteration_bounds = array<i64: 1>, scalar_prefetch = 0 : i64, scratch_operands = 0 : i64, tpu.core_type = #tpu.core_type<tc>, window_params = [{transform_indices = @transform_0, window_bounds = array<i64: 128, 1024>}, {pipeline_mode = #tpu.pipeline_mode<synchronous>, transform_indices = @transform_1, window_bounds = array<i64: 512, 512>}, {pipeline_mode = #tpu.pipeline_mode<synchronous>, transform_indices = @transform_2, window_bounds = array<i64: 512, 512>}, {pipeline_mode = #tpu.pipeline_mode<synchronous>, transform_indices = @transform_3, window_bounds = array<i64: 512, 128>}, {pipeline_mode = #tpu.pipeline_mode<synchronous>, transform_indices = @transform_4, window_bounds = array<i64: 2, 256>}, {transform_indices = @transform_5, window_bounds = array<i64: 128, 128>}]} {
    %c0 = arith.constant 0 : index
    %c0_0 = arith.constant 0 : index
    %0 = vector.load %arg1[%c0, %c0_0] : memref<128x1024xbf16, #tpu.memory_space<vmem>>, vector<128x512xbf16>
    %c0_1 = arith.constant 0 : index
    %c512 = arith.constant 512 : index
    %1 = vector.load %arg1[%c0_1, %c512] : memref<128x1024xbf16, #tpu.memory_space<vmem>>, vector<128x512xbf16>
    %c0_2 = arith.constant 0 : index
    %c0_3 = arith.constant 0 : index
    %2 = vector.load %arg2[%c0_2, %c0_3] : memref<512x512xbf16, #tpu.memory_space<vmem>>, vector<512x512xbf16>
    %cst = arith.constant dense<0.000000e+00> : vector<128x512xf32>
    %3 = tpu.matmul %0, %2, %cst {dimension_numbers = #tpu.dot_dimension_numbers<[1], [0], [0], [1], [0, 0, 1, 1], [], []>} : vector<128x512xbf16>, vector<512x512xbf16>, vector<128x512xf32> -> vector<128x512xf32>
    %c0_4 = arith.constant 0 : index
    %c0_5 = arith.constant 0 : index
    %4 = vector.load %arg3[%c0_4, %c0_5] : memref<512x512xbf16, #tpu.memory_space<vmem>>, vector<512x512xbf16>
    %cst_6 = arith.constant dense<0.000000e+00> : vector<128x512xf32>
    %5 = tpu.matmul %1, %4, %cst_6 {dimension_numbers = #tpu.dot_dimension_numbers<[1], [0], [0], [1], [0, 0, 1, 1], [], []>} : vector<128x512xbf16>, vector<512x512xbf16>, vector<128x512xf32> -> vector<128x512xf32>
    %6 = vector.extract_strided_slice %3 {offsets = [0, 0], sizes = [128, 256], strides = [1, 1]} : vector<128x512xf32> to vector<128x256xf32>
    %7 = vector.extract_strided_slice %3 {offsets = [0, 256], sizes = [128, 256], strides = [1, 1]} : vector<128x512xf32> to vector<128x256xf32>
    %8 = vector.extract_strided_slice %5 {offsets = [0, 0], sizes = [128, 256], strides = [1, 1]} : vector<128x512xf32> to vector<128x256xf32>
    %9 = vector.extract_strided_slice %5 {offsets = [0, 256], sizes = [128, 256], strides = [1, 1]} : vector<128x512xf32> to vector<128x256xf32>
    %c0_7 = arith.constant 0 : index
    %c0_8 = arith.constant 0 : index
    %10 = vector.load %arg5[%c0_7, %c0_8] : memref<2x256xf32, #tpu.memory_space<vmem>>, vector<1x256xf32>
    %c1 = arith.constant 1 : index
    %c0_9 = arith.constant 0 : index
    %11 = vector.load %arg5[%c1, %c0_9] : memref<2x256xf32, #tpu.memory_space<vmem>>, vector<1x256xf32>
    %12 = vector.broadcast %10 : vector<1x256xf32> to vector<128x256xf32>
    %13 = arith.mulf %12, %8 : vector<128x256xf32>
    %14 = vector.broadcast %11 : vector<1x256xf32> to vector<128x256xf32>
    %15 = arith.mulf %14, %9 : vector<128x256xf32>
    %16 = arith.addf %13, %15 : vector<128x256xf32>
    %17 = vector.broadcast %10 : vector<1x256xf32> to vector<128x256xf32>
    %18 = arith.mulf %17, %9 : vector<128x256xf32>
    %19 = vector.broadcast %11 : vector<1x256xf32> to vector<128x256xf32>
    %20 = arith.mulf %19, %8 : vector<128x256xf32>
    %21 = arith.subf %18, %20 : vector<128x256xf32>
    %22 = tpu.iota {dimensions = array<i32: 1>} : vector<128x256xi32>
    %c0_i32 = arith.constant 0 : i32
    %23 = vector.broadcast %c0_i32 : i32 to vector<128x256xi32>
    %24 = arith.cmpi eq, %22, %23 : vector<128x256xi32>
    %25 = arith.addf %6, %16 : vector<128x256xf32>
    %26 = arith.addf %7, %21 : vector<128x256xf32>
    %cst_10 = arith.constant 0.000000e+00 : f32
    %27 = vector.broadcast %cst_10 : f32 to vector<128x256xf32>
    %28 = arith.select %24, %27, %26 : vector<128x256xi1>, vector<128x256xf32>
    %29 = arith.subf %6, %16 : vector<128x256xf32>
    %30 = arith.select %24, %7, %29 : vector<128x256xi1>, vector<128x256xf32>
    %31 = arith.subf %7, %21 : vector<128x256xf32>
    %32 = arith.select %24, %9, %31 : vector<128x256xi1>, vector<128x256xf32>
    %33 = arith.mulf %25, %25 : vector<128x256xf32>
    %34 = arith.mulf %28, %28 : vector<128x256xf32>
    %35 = arith.addf %33, %34 : vector<128x256xf32>
    %36 = math.sqrt %35 : vector<128x256xf32>
    %37 = arith.mulf %30, %30 : vector<128x256xf32>
    %38 = arith.mulf %32, %32 : vector<128x256xf32>
    %39 = arith.addf %37, %38 : vector<128x256xf32>
    %40 = math.sqrt %39 : vector<128x256xf32>
    %41 = arith.truncf %36 : vector<128x256xf32> to vector<128x256xbf16>
    %c0_11 = arith.constant 0 : index
    %c0_12 = arith.constant 0 : index
    %42 = vector.load %arg4[%c0_11, %c0_12] : memref<512x128xbf16, #tpu.memory_space<vmem>>, vector<256x128xbf16>
    %cst_13 = arith.constant dense<0.000000e+00> : vector<128x128xf32>
    %43 = tpu.matmul %41, %42, %cst_13 {dimension_numbers = #tpu.dot_dimension_numbers<[1], [0], [0], [1], [0, 0, 1, 1], [], []>} : vector<128x256xbf16>, vector<256x128xbf16>, vector<128x128xf32> -> vector<128x128xf32>
    %44 = arith.truncf %40 : vector<128x256xf32> to vector<128x256xbf16>
    %c256 = arith.constant 256 : index
    %c0_14 = arith.constant 0 : index
    %45 = vector.load %arg4[%c256, %c0_14] : memref<512x128xbf16, #tpu.memory_space<vmem>>, vector<256x128xbf16>
    %cst_15 = arith.constant dense<0.000000e+00> : vector<128x128xf32>
    %46 = tpu.matmul %44, %45, %cst_15 {dimension_numbers = #tpu.dot_dimension_numbers<[1], [0], [0], [1], [0, 0, 1, 1], [], []>} : vector<128x256xbf16>, vector<256x128xbf16>, vector<128x128xf32> -> vector<128x128xf32>
    %47 = arith.addf %43, %46 : vector<128x128xf32>
    %cst_16 = arith.constant 9.99999974E-6 : f32
    %48 = vector.broadcast %cst_16 : f32 to vector<128x128xf32>
    %49 = arith.maximumf %47, %48 : vector<128x128xf32>
    %50 = math.log %49 : vector<128x128xf32>
    %c0_17 = arith.constant 0 : index
    %c0_18 = arith.constant 0 : index
    %51 = vector.load %arg6[%c0_17, %c0_18] : memref<128x128xf32, #tpu.memory_space<vmem>>, vector<128x128xf32>
    tpu.vector_store %arg6[%c0_17, %c0_18], %50 {strides = array<i32>} : memref<128x128xf32, #tpu.memory_space<vmem>>, vector<128x128xf32>,
    return
  }
  func.func @transform_0(%arg0: i32) -> (i32, i32) {
    %c0_i32 = arith.constant 0 : i32
    %c0_i32_0 = arith.constant 0 : i32
    return %arg0, %c0_i32 : i32, i32
  }
  func.func @transform_1(%arg0: i32) -> (i32, i32) {
    %c0_i32 = arith.constant 0 : i32
    %c0_i32_0 = arith.constant 0 : i32
    %c0_i32_1 = arith.constant 0 : i32
    return %c0_i32, %c0_i32_0 : i32, i32
  }
  func.func @transform_2(%arg0: i32) -> (i32, i32) {
    %c0_i32 = arith.constant 0 : i32
    %c0_i32_0 = arith.constant 0 : i32
    %c0_i32_1 = arith.constant 0 : i32
    return %c0_i32, %c0_i32_0 : i32, i32
  }
  func.func @transform_3(%arg0: i32) -> (i32, i32) {
    %c0_i32 = arith.constant 0 : i32
    %c0_i32_0 = arith.constant 0 : i32
    %c0_i32_1 = arith.constant 0 : i32
    return %c0_i32, %c0_i32_0 : i32, i32
  }
  func.func @transform_4(%arg0: i32) -> (i32, i32) {
    %c0_i32 = arith.constant 0 : i32
    %c0_i32_0 = arith.constant 0 : i32
    %c0_i32_1 = arith.constant 0 : i32
    return %c0_i32, %c0_i32_0 : i32, i32
  }
  func.func @transform_5(%arg0: i32) -> (i32, i32) {
    %c0_i32 = arith.constant 0 : i32
    %c0_i32_0 = arith.constant 0 : i32
    return %arg0, %c0_i32 : i32, i32
  }
}

</mosaic_0001>

<llo_original>
// kernel: reverse.1
$region0: #{reverse.1}
  %s0 = inlined_call_operand.vmem [shape: bf16[2,512], index: 0, kind: input, shape index: {}]
  %s1 = inlined_call_operand.vmem [shape: bf16[2,512], index: 1, kind: output, shape index: {}]
  %v2 = vlaneseq
  %v3 = vsub.s32 127, %v2
  %4 = vset.pattern.permute.xlu0 %v3
  $region1: #{reverse.1} parent=0
    #allocation0 [shape = 'u8[4096]{0}', space=vmem, size = 0x1000, scoped, tag = 'operand span for operand 0']
    #allocation1 [shape = 'u8[1024]{0}', space=vmem, size = 0x400, scoped, tag = 'packed  for operand 0']
    #allocation2 [shape = 'u8[4096]{0}', space=vmem, size = 0x1000, scoped, tag = 'operand span for operand 1']
    #allocation3 [shape = 'u8[1024]{0}', space=vmem, size = 0x400, scoped, tag = 'packed  for operand 1']
    loop: start=0, step=1, limit=6
    $region2: #{reverse.1} parent=1 // loop_pre_header
      _
    $region3: #{reverse.1} parent=1 // loop_header
      %s6 = sphi 0, %s10
      %p7 = scmp.ge.s32.totalorder %s6, 6
      %s13 = sphi 0, %s25
      %s14 = sphi 0, %s21
      %s15 = sphi 0, %s13
      %s16 = sphi 0, %s14
      %s17 = sphi 0, %s15
      %s18 = sphi 0, %s16
    $region4: #{reverse.1} parent=1 // loop_header_branch
      %9 = sbr.rel (%p7) target = $region8
    $region5: #{reverse.1} parent=1 // loop_body
      %s11 = ssub.s32 %s6, 1
      %s12 = ssub.s32 %s6, 2
      %s19 = sadd.s32 1, %s14
      %p20 = scmp.ge.s32.totalorder %s19, 4
      %s21 = scalar_select %p20, 0, %s19
      %s22 = sadd.s32 1, %s13
      %s23 = scalar_select %p20, %s22, %s13
      %p24 = scmp.ge.s32.totalorder %s23, 1
      %s25 = scalar_select %p24, 0, %s23
      %p26 = scmp.le.s32.totalorder 1, %s6
      %p27 = scmp.lt.s32.totalorder %s6, 5
      %p28 = pnand %p26, %p27
      %p29 = pneg %p28
      // Predicated region
      $region9: #{reverse.1} parent=5 // pred_check
        _
      $region10: #{reverse.1} parent=5 // pred_check_branch
        %31 = sbr.rel (%p28) target = $region12
      $region11: #{reverse.1} parent=5 // pred_region
        %s32 = ssub.s32 %s6, 1
      $region12: #{reverse.1} parent=5 // pred_fallthru
        _
      %p33 = scmp.lt.s32.totalorder %s6, 4
      // Predicated region
      $region13: #{reverse.1} parent=5 // pred_check
        %p34 = pneg %p33
      $region14: #{reverse.1} parent=5 // pred_check_branch
        %36 = sbr.rel (%p34) target = $region16
      $region15: #{reverse.1} parent=5 // pred_region
        %s37 = sand.u32 %s6, 1
        %s38 = sand.u32 %s6, 1
        %s39 = scalar_lea.vmem [#allocation1], %s38
        %s40 = ssub.s32 3, %s14
        %s41 = smul.addr %s13, 4
        %s42 = sadd.s32 %s40, %s41
        %s43 = scalar_lea.vmem %s0, %s42
        // Predicated region
        $region17: #{reverse.1} parent=15 // pred_check
          _
        $region18: #{reverse.1} parent=15 // pred_check_branch
          %45 = sbr.rel (0) target = $region20
        $region19: #{reverse.1} parent=15 // pred_region
          // Predicated region
          $region21: #{reverse.1} parent=19 // pred_check
            _
          $region22: #{reverse.1} parent=19 // pred_check_branch
            %47 = sbr.rel target = $region24
          $region23: #{reverse.1} parent=19 // pred_region
            // Predicated region
            $region36: #{reverse.1} parent=23 // pred_check
              _
            $region37: #{reverse.1} parent=23 // pred_check_branch
              %63 = sbr.rel (0) target = $region39
            $region38: #{reverse.1} parent=23 // pred_region
              %s65 = ssub.s32 2, 1
              loop: start=0, step=1, limit=1
              $region40: #{reverse.1} parent=38 // loop_pre_header
                _
              $region41: #{reverse.1} parent=38 // loop_header
                %s67 = sphi 0, %s71
                %p68 = scmp.ge.s32.totalorder %s67, 1
                %s72 = sphi %s43, %s43
                %s73 = sphi %s39, %s39
              $region42: #{reverse.1} parent=38 // loop_header_branch
                %70 = sbr.rel (%p68) target = $region46
              $region43: #{reverse.1} parent=38 // loop_body
                %v74 = vld [vmem:[%s72] sm:%s65]
                %75 = vst [vmem:[%s73] sm:%s65] %v74
              $region44: #{reverse.1} parent=38 // loop_footer
                %s71 = sadd.s32 1, %s67
              $region45: #{reverse.1} parent=38 // loop_footer_branch
                %66 = sbr.rel target = $region41
              $region46: #{reverse.1} parent=38 // loop_exit
                _
            $region39: #{reverse.1} parent=23 // pred_fallthru
              _
          $region24: #{reverse.1} parent=19 // pred_fallthru
            _
          // Predicated region
          $region25: #{reverse.1} parent=19 // pred_check
            _
          $region26: #{reverse.1} parent=19 // pred_check_branch
            %49 = sbr.rel (0) target = $region28
          $region27: #{reverse.1} parent=19 // pred_region
            %s51 = ssub.s32 2, 1
            loop: start=0, step=1, limit=1
            $region29: #{reverse.1} parent=27 // loop_pre_header
              _
            $region30: #{reverse.1} parent=27 // loop_header
              %s53 = sphi 0, %s57
              %p54 = scmp.ge.s32.totalorder %s53, 1
              %s58 = sphi %s43, %s43
              %s59 = sphi %s39, %s39
            $region31: #{reverse.1} parent=27 // loop_header_branch
              %56 = sbr.rel (%p54) target = $region35
            $region32: #{reverse.1} parent=27 // loop_body
              %v60 = vld [vmem:[%s58] sm:%s51]
              %61 = vst [vmem:[%s59] sm:%s51] %v60
            $region33: #{reverse.1} parent=27 // loop_footer
              %s57 = sadd.s32 1, %s53
            $region34: #{reverse.1} parent=27 // loop_footer_branch
              %52 = sbr.rel target = $region30
            $region35: #{reverse.1} parent=27 // loop_exit
              _
          $region28: #{reverse.1} parent=19 // pred_fallthru
            _
        $region20: #{reverse.1} parent=15 // pred_fallthru
          _
        %76 = vnop
      $region16: #{reverse.1} parent=5 // pred_fallthru
        _
      %p77 = scmp.le.s32.totalorder 1, %s6
      %p78 = scmp.lt.s32.totalorder %s6, 5
      %p79 = pnand %p77, %p78
      %p80 = pneg %p79
      // Predicated region
      $region47: #{reverse.1} parent=5 // pred_check
        _
      $region48: #{reverse.1} parent=5 // pred_check_branch
        %82 = sbr.rel (%p79) target = $region50
      $region49: #{reverse.1} parent=5 // pred_region
        %s83 = ssub.s32 %s6, 1
        %s84 = sand.u32 %s11, 1
        %s85 = sand.u32 %s11, 1
        %s86 = scalar_lea.vmem [#allocation1], %s85
        %s87 = sand.u32 %s11, 1
        %s88 = sand.u32 %s11, 1
        %s89 = scalar_lea.vmem [#allocation1], %s88
        %s90 = sand.u32 %s11, 1
        %s91 = sand.u32 %s11, 1
        %s92 = scalar_lea.vmem [#allocation3], %s91
        %s94 = ssub.s32 4, 1
        %s95 = sshrl.u32 %s94, 1
        %s96 = sor.u32 %s94, %s95
        %s97 = sand.u32 %s96, 85
        %s98 = sshrl.u32 %s97, 1
        %s99 = sor.u32 %s97, %s98
        %s100 = sand.u32 51, %s99
        %s101 = sshrl.u32 %s100, 2
        %s102 = sor.u32 %s100, %s101
        %s103 = sand.u32 15, %s102
        %v104 = vld [vmem:[%s89] sm:%s103]
        %v105 = vunpack.c.l.bf16 %v104
        %v106 = vunpack.c.h.bf16 %v104
        %107 = vst [vmem:[#allocation0] sm:%s94] %v105
        %s108 = ssub.s32 3, %s16
        %v109 = vld [vmem:[#allocation0] sm:$0xff]
        %110 = vperm.xlu0 %4, %v109
        %v111 = vpop.permute.xlu0 %110
        %112 = vst [vmem:[#allocation2] sm:$0xff] %v111
        %s114 = ssub.s32 4, 1
        %v115 = vld [vmem:[#allocation2] sm:%s114]
        %v116 = vpack.c.bf16 0.0, %v115
        %s118 = ssub.s32 2, 1
        %119 = vst [vmem:[%s92] sm:%s118] %v116
        %s120 = sand.u32 %s11, 1
        %s121 = sand.u32 %s11, 1
        %s122 = scalar_lea.vmem [#allocation3], %s121
        %s123 = smul.addr %s15, 4
        %s124 = sadd.s32 %s16, %s123
        %s125 = scalar_lea.vmem %s1, %s124
        // Predicated region
        $region51: #{reverse.1} parent=49 // pred_check
          _
        $region52: #{reverse.1} parent=49 // pred_check_branch
          %127 = sbr.rel (0) target = $region54
        $region53: #{reverse.1} parent=49 // pred_region
          // Predicated region
          $region55: #{reverse.1} parent=53 // pred_check
            _
          $region56: #{reverse.1} parent=53 // pred_check_branch
            %129 = sbr.rel target = $region58
          $region57: #{reverse.1} parent=53 // pred_region
            // Predicated region
            $region70: #{reverse.1} parent=57 // pred_check
              _
            $region71: #{reverse.1} parent=57 // pred_check_branch
              %145 = sbr.rel (0) target = $region73
            $region72: #{reverse.1} parent=57 // pred_region
              %s147 = ssub.s32 2, 1
              loop: start=0, step=1, limit=1
              $region74: #{reverse.1} parent=72 // loop_pre_header
                _
              $region75: #{reverse.1} parent=72 // loop_header
                %s149 = sphi 0, %s153
                %p150 = scmp.ge.s32.totalorder %s149, 1
                %s154 = sphi %s122, %s122
                %s155 = sphi %s125, %s125
              $region76: #{reverse.1} parent=72 // loop_header_branch
                %152 = sbr.rel (%p150) target = $region80
              $region77: #{reverse.1} parent=72 // loop_body
                %v156 = vld [vmem:[%s154] sm:%s147]
                %157 = vst [vmem:[%s155] sm:%s147] %v156
              $region78: #{reverse.1} parent=72 // loop_footer
                %s153 = sadd.s32 1, %s149
              $region79: #{reverse.1} parent=72 // loop_footer_branch
                %148 = sbr.rel target = $region75
              $region80: #{reverse.1} parent=72 // loop_exit
                _
            $region73: #{reverse.1} parent=57 // pred_fallthru
              _
          $region58: #{reverse.1} parent=53 // pred_fallthru
            _
          // Predicated region
          $region59: #{reverse.1} parent=53 // pred_check
            _
          $region60: #{reverse.1} parent=53 // pred_check_branch
            %131 = sbr.rel (0) target = $region62
          $region61: #{reverse.1} parent=53 // pred_region
            %s133 = ssub.s32 2, 1
            loop: start=0, step=1, limit=1
            $region63: #{reverse.1} parent=61 // loop_pre_header
              _
            $region64: #{reverse.1} parent=61 // loop_header
              %s135 = sphi 0, %s139
              %p136 = scmp.ge.s32.totalorder %s135, 1
              %s140 = sphi %s122, %s122
              %s141 = sphi %s125, %s125
            $region65: #{reverse.1} parent=61 // loop_header_branch
              %138 = sbr.rel (%p136) target = $region69
            $region66: #{reverse.1} parent=61 // loop_body
              %v142 = vld [vmem:[%s140] sm:%s133]
              %143 = vst [vmem:[%s141] sm:%s133] %v142
            $region67: #{reverse.1} parent=61 // loop_footer
              %s139 = sadd.s32 1, %s135
            $region68: #{reverse.1} parent=61 // loop_footer_branch
              %134 = sbr.rel target = $region64
            $region69: #{reverse.1} parent=61 // loop_exit
              _
          $region62: #{reverse.1} parent=53 // pred_fallthru
            _
        $region54: #{reverse.1} parent=49 // pred_fallthru
          _
        %158 = vnop
      $region50: #{reverse.1} parent=5 // pred_fallthru
        _
      %p159 = scmp.le.s32.totalorder 2, %s6
      // Predicated region
      $region81: #{reverse.1} parent=5 // pred_check
        %p160 = pneg %p159
      $region82: #{reverse.1} parent=5 // pred_check_branch
        %162 = sbr.rel (%p160) target = $region84
      $region83: #{reverse.1} parent=5 // pred_region
        %s163 = ssub.s32 %s6, 2
        %s164 = sand.u32 %s12, 1
        %s165 = sand.u32 %s12, 1
        %s166 = scalar_lea.vmem [#allocation3], %s165
      $region84: #{reverse.1} parent=5 // pred_fallthru
        _
    $region6: #{reverse.1} parent=1 // loop_footer
      %s10 = sadd.s32 1, %s6
    $region7: #{reverse.1} parent=1 // loop_footer_branch
      %5 = sbr.rel target = $region3
    $region8: #{reverse.1} parent=1 // loop_exit
      _

// kernel: _log_mel_impl.1
$region0: #{_log_mel_impl.1}
  #allocation0 [shape = 'u32[]', space=smem, size = 0x4, offset = 0x4, fixed_abs, tag = 'smem constant byte address 0x4 - core index']
  #allocation1 [shape = 'u32[72,128]{1,0:T(1,128)}', space=vmem, size = 0x9000, scoped, tag = 'internal scratch']
  %s0 = inlined_call_operand.vmem [shape: bf16[128,1024], index: 0, kind: input, shape index: {}]
  %s1 = inlined_call_operand.vmem [shape: bf16[512,512], index: 1, kind: input, shape index: {}]
  %s2 = inlined_call_operand.vmem [shape: bf16[512,512], index: 2, kind: input, shape index: {}]
  %s3 = inlined_call_operand.vmem [shape: bf16[512,128], index: 3, kind: input, shape index: {}]
  %s4 = inlined_call_operand.vmem [shape: f32[2,256], index: 4, kind: input, shape index: {}]
  %s5 = inlined_call_operand.vmem [shape: f32[128,128], index: 5, kind: output, shape index: {}]
  %s6 = sld [smem:[#allocation0]]
  $region30: #{_log_mel_impl.1} parent=0
    _
  %s8 = ssub.s32 1, %s6
  %s9 = scalar_select 0, %s8, %s6
  // Predicated region
  $region2: #{_log_mel_impl.1} parent=0 // pred_check
    _
  $region3: #{_log_mel_impl.1} parent=0 // pred_check_branch
    %11 = sbr.rel (0) target = $region5
  $region4: #{_log_mel_impl.1} parent=0 // pred_region
    _
  $region5: #{_log_mel_impl.1} parent=0 // pred_fallthru
    _
  // Predicated region
  $region6: #{_log_mel_impl.1} parent=0 // pred_check
    _
  $region7: #{_log_mel_impl.1} parent=0 // pred_check_branch
    %13 = sbr.rel (0) target = $region9
  $region8: #{_log_mel_impl.1} parent=0 // pred_region
    _
  $region9: #{_log_mel_impl.1} parent=0 // pred_fallthru
    _
  // Predicated region
  $region10: #{_log_mel_impl.1} parent=0 // pred_check
    _
  $region11: #{_log_mel_impl.1} parent=0 // pred_check_branch
    %15 = sbr.rel (0) target = $region13
  $region12: #{_log_mel_impl.1} parent=0 // pred_region
    _
  $region13: #{_log_mel_impl.1} parent=0 // pred_fallthru
    _
  // Predicated region
  $region14: #{_log_mel_impl.1} parent=0 // pred_check
    _
  $region15: #{_log_mel_impl.1} parent=0 // pred_check_branch
    %17 = sbr.rel (0) target = $region17
  $region16: #{_log_mel_impl.1} parent=0 // pred_region
    _
  $region17: #{_log_mel_impl.1} parent=0 // pred_fallthru
    _
  // Predicated region
  $region18: #{_log_mel_impl.1} parent=0 // pred_check
    _
  $region19: #{_log_mel_impl.1} parent=0 // pred_check_branch
    %19 = sbr.rel (0) target = $region21
  $region20: #{_log_mel_impl.1} parent=0 // pred_region
    _
  $region21: #{_log_mel_impl.1} parent=0 // pred_fallthru
    _
  %v20 = vld [vmem:[%s0] sm:$0xff]
  %v21 = vld [vmem:[%s0 + $0x8] sm:$0xff]
  %v22 = vld [vmem:[%s0 + $0x20] sm:$0xff]
  %v23 = vld [vmem:[%s0 + $0x28] sm:$0xff]
  %v24 = vld [vmem:[%s0 + $0x40] sm:$0xff]
  %v25 = vld [vmem:[%s0 + $0x48] sm:$0xff]
  %v26 = vld [vmem:[%s0 + $0x60] sm:$0xff]
  %v27 = vld [vmem:[%s0 + $0x68] sm:$0xff]
  %v28 = vld [vmem:[%s0 + $0x80] sm:$0xff]
  %v29 = vld [vmem:[%s0 + $0x88] sm:$0xff]
  %v30 = vld [vmem:[%s0 + $0xa0] sm:$0xff]
  %v31 = vld [vmem:[%s0 + $0xa8] sm:$0xff]
  %v32 = vld [vmem:[%s0 + $0xc0] sm:$0xff]
  %v33 = vld [vmem:[%s0 + $0xc8] sm:$0xff]
  %v34 = vld [vmem:[%s0 + $0xe0] sm:$0xff]
  %v35 = vld [vmem:[%s0 + $0xe8] sm:$0xff]
  %v36 = vld [vmem:[%s0 + $0x100] sm:$0xff]
  %v37 = vld [vmem:[%s0 + $0x108] sm:$0xff]
  %v38 = vld [vmem:[%s0 + $0x120] sm:$0xff]
  %v39 = vld [vmem:[%s0 + $0x128] sm:$0xff]
  %v40 = vld [vmem:[%s0 + $0x140] sm:$0xff]
  %v41 = vld [vmem:[%s0 + $0x148] sm:$0xff]
  %v42 = vld [vmem:[%s0 + $0x160] sm:$0xff]
  %v43 = vld [vmem:[%s0 + $0x168] sm:$0xff]
  %v44 = vld [vmem:[%s0 + $0x180] sm:$0xff]
  %v45 = vld [vmem:[%s0 + $0x188] sm:$0xff]
  %v46 = vld [vmem:[%s0 + $0x1a0] sm:$0xff]
  %v47 = vld [vmem:[%s0 + $0x1a8] sm:$0xff]
  %v48 = vld [vmem:[%s0 + $0x1c0] sm:$0xff]
  %v49 = vld [vmem:[%s0 + $0x1c8] sm:$0xff]
  %v50 = vld [vmem:[%s0 + $0x1e0] sm:$0xff]
  %v51 = vld [vmem:[%s0 + $0x1e8] sm:$0xff]
  %v52 = vld [vmem:[%s0 + $0x10] sm:$0xff]
  %v53 = vld [vmem:[%s0 + $0x18] sm:$0xff]
  %v54 = vld [vmem:[%s0 + $0x30] sm:$0xff]
  %v55 = vld [vmem:[%s0 + $0x38] sm:$0xff]
  %v56 = vld [vmem:[%s0 + $0x50] sm:$0xff]
  %v57 = vld [vmem:[%s0 + $0x58] sm:$0xff]
  %v58 = vld [vmem:[%s0 + $0x70] sm:$0xff]
  %v59 = vld [vmem:[%s0 + $0x78] sm:$0xff]
  %v60 = vld [vmem:[%s0 + $0x90] sm:$0xff]
  %v61 = vld [vmem:[%s0 + $0x98] sm:$0xff]
  %v62 = vld [vmem:[%s0 + $0xb0] sm:$0xff]
  %v63 = vld [vmem:[%s0 + $0xb8] sm:$0xff]
  %v64 = vld [vmem:[%s0 + $0xd0] sm:$0xff]
  %v65 = vld [vmem:[%s0 + $0xd8] sm:$0xff]
  %v66 = vld [vmem:[%s0 + $0xf0] sm:$0xff]
  %v67 = vld [vmem:[%s0 + $0xf8] sm:$0xff]
  %v68 = vld [vmem:[%s0 + $0x110] sm:$0xff]
  %v69 = vld [vmem:[%s0 + $0x118] sm:$0xff]
  %v70 = vld [vmem:[%s0 + $0x130] sm:$0xff]
  %v71 = vld [vmem:[%s0 + $0x138] sm:$0xff]
  %v72 = vld [vmem:[%s0 + $0x150] sm:$0xff]
  %v73 = vld [vmem:[%s0 + $0x158] sm:$0xff]
  %v74 = vld [vmem:[%s0 + $0x170] sm:$0xff]
  %v75 = vld [vmem:[%s0 + $0x178] sm:$0xff]
  %v76 = vld [vmem:[%s0 + $0x190] sm:$0xff]
  %v77 = vld [vmem:[%s0 + $0x198] sm:$0xff]
  %v78 = vld [vmem:[%s0 + $0x1b0] sm:$0xff]
  %v79 = vld [vmem:[%s0 + $0x1b8] sm:$0xff]
  %v80 = vld [vmem:[%s0 + $0x1d0] sm:$0xff]
  %v81 = vld [vmem:[%s0 + $0x1d8] sm:$0xff]
  %v82 = vld [vmem:[%s0 + $0x1f0] sm:$0xff]
  %v83 = vld [vmem:[%s0 + $0x1f8] sm:$0xff]
  %v84 = vld [vmem:[%s1] sm:$0xff]
  %v85 = vld [vmem:[%s1 + $0x8] sm:$0xff]
  %v86 = vld [vmem:[%s1 + $0x10] sm:$0xff]
  %v87 = vld [vmem:[%s1 + $0x18] sm:$0xff]
  %v88 = vld [vmem:[%s1 + $0x20] sm:$0xff]
  %v89 = vld [vmem:[%s1 + $0x28] sm:$0xff]
  %v90 = vld [vmem:[%s1 + $0x30] sm:$0xff]
  %v91 = vld [vmem:[%s1 + $0x38] sm:$0xff]
  %v92 = vld [vmem:[%s1 + $0x40] sm:$0xff]
  %v93 = vld [vmem:[%s1 + $0x48] sm:$0xff]
  %v94 = vld [vmem:[%s1 + $0x50] sm:$0xff]
  %v95 = vld [vmem:[%s1 + $0x58] sm:$0xff]
  %v96 = vld [vmem:[%s1 + $0x60] sm:$0xff]
  %v97 = vld [vmem:[%s1 + $0x68] sm:$0xff]
  %v98 = vld [vmem:[%s1 + $0x70] sm:$0xff]
  %v99 = vld [vmem:[%s1 + $0x78] sm:$0xff]
  %v100 = vld [vmem:[%s1 + $0x80] sm:$0xff]
  %v101 = vld [vmem:[%s1 + $0x88] sm:$0xff]
  %v102 = vld [vmem:[%s1 + $0x90] sm:$0xff]
  %v103 = vld [vmem:[%s1 + $0x98] sm:$0xff]
  %v104 = vld [vmem:[%s1 + $0xa0] sm:$0xff]
  %v105 = vld [vmem:[%s1 + $0xa8] sm:$0xff]
  %v106 = vld [vmem:[%s1 + $0xb0] sm:$0xff]
  %v107 = vld [vmem:[%s1 + $0xb8] sm:$0xff]
  %v108 = vld [vmem:[%s1 + $0xc0] sm:$0xff]
  %v109 = vld [vmem:[%s1 + $0xc8] sm:$0xff]
  %v110 = vld [vmem:[%s1 + $0xd0] sm:$0xff]
  %v111 = vld [vmem:[%s1 + $0xd8] sm:$0xff]
  %v112 = vld [vmem:[%s1 + $0xe0] sm:$0xff]
  %v113 = vld [vmem:[%s1 + $0xe8] sm:$0xff]
  %v114 = vld [vmem:[%s1 + $0xf0] sm:$0xff]
  %v115 = vld [vmem:[%s1 + $0xf8] sm:$0xff]
  %v116 = vld [vmem:[%s1 + $0x100] sm:$0xff]
  %v117 = vld [vmem:[%s1 + $0x108] sm:$0xff]
  %v118 = vld [vmem:[%s1 + $0x110] sm:$0xff]
  %v119 = vld [vmem:[%s1 + $0x118] sm:$0xff]
  %v120 = vld [vmem:[%s1 + $0x120] sm:$0xff]
  %v121 = vld [vmem:[%s1 + $0x128] sm:$0xff]
  %v122 = vld [vmem:[%s1 + $0x130] sm:$0xff]
  %v123 = vld [vmem:[%s1 + $0x138] sm:$0xff]
  %v124 = vld [vmem:[%s1 + $0x140] sm:$0xff]
  %v125 = vld [vmem:[%s1 + $0x148] sm:$0xff]
  %v126 = vld [vmem:[%s1 + $0x150] sm:$0xff]
  %v127 = vld [vmem:[%s1 + $0x158] sm:$0xff]
  %v128 = vld [vmem:[%s1 + $0x160] sm:$0xff]
  %v129 = vld [vmem:[%s1 + $0x168] sm:$0xff]
  %v130 = vld [vmem:[%s1 + $0x170] sm:$0xff]
  %v131 = vld [vmem:[%s1 + $0x178] sm:$0xff]
  %v132 = vld [vmem:[%s1 + $0x180] sm:$0xff]
  %v133 = vld [vmem:[%s1 + $0x188] sm:$0xff]
  %v134 = vld [vmem:[%s1 + $0x190] sm:$0xff]
  %v135 = vld [vmem:[%s1 + $0x198] sm:$0xff]
  %v136 = vld [vmem:[%s1 + $0x1a0] sm:$0xff]
  %v137 = vld [vmem:[%s1 + $0x1a8] sm:$0xff]
  %v138 = vld [vmem:[%s1 + $0x1b0] sm:$0xff]
  %v139 = vld [vmem:[%s1 + $0x1b8] sm:$0xff]
  %v140 = vld [vmem:[%s1 + $0x1c0] sm:$0xff]
  %v141 = vld [vmem:[%s1 + $0x1c8] sm:$0xff]
  %v142 = vld [vmem:[%s1 + $0x1d0] sm:$0xff]
  %v143 = vld [vmem:[%s1 + $0x1d8] sm:$0xff]
  %v144 = vld [vmem:[%s1 + $0x1e0] sm:$0xff]
  %v145 = vld [vmem:[%s1 + $0x1e8] sm:$0xff]
  %v146 = vld [vmem:[%s1 + $0x1f0] sm:$0xff]
  %v147 = vld [vmem:[%s1 + $0x1f8] sm:$0xff]
  %v148 = vld [vmem:[%s1 + $0x200] sm:$0xff]
  %v149 = vld [vmem:[%s1 + $0x208] sm:$0xff]
  %v150 = vld [vmem:[%s1 + $0x210] sm:$0xff]
  %v151 = vld [vmem:[%s1 + $0x218] sm:$0xff]
  %v152 = vld [vmem:[%s1 + $0x220] sm:$0xff]
  %v153 = vld [vmem:[%s1 + $0x228] sm:$0xff]
  %v154 = vld [vmem:[%s1 + $0x230] sm:$0xff]
  %v155 = vld [vmem:[%s1 + $0x238] sm:$0xff]
  %v156 = vld [vmem:[%s1 + $0x240] sm:$0xff]
  %v157 = vld [vmem:[%s1 + $0x248] sm:$0xff]
  %v158 = vld [vmem:[%s1 + $0x250] sm:$0xff]
  %v159 = vld [vmem:[%s1 + $0x258] sm:$0xff]
  %v160 = vld [vmem:[%s1 + $0x260] sm:$0xff]
  %v161 = vld [vmem:[%s1 + $0x268] sm:$0xff]
  %v162 = vld [vmem:[%s1 + $0x270] sm:$0xff]
  %v163 = vld [vmem:[%s1 + $0x278] sm:$0xff]
  %v164 = vld [vmem:[%s1 + $0x280] sm:$0xff]
  %v165 = vld [vmem:[%s1 + $0x288] sm:$0xff]
  %v166 = vld [vmem:[%s1 + $0x290] sm:$0xff]
  %v167 = vld [vmem:[%s1 + $0x298] sm:$0xff]
  %v168 = vld [vmem:[%s1 + $0x2a0] sm:$0xff]
  %v169 = vld [vmem:[%s1 + $0x2a8] sm:$0xff]
  %v170 = vld [vmem:[%s1 + $0x2b0] sm:$0xff]
  %v171 = vld [vmem:[%s1 + $0x2b8] sm:$0xff]
  %v172 = vld [vmem:[%s1 + $0x2c0] sm:$0xff]
  %v173 = vld [vmem:[%s1 + $0x2c8] sm:$0xff]
  %v174 = vld [vmem:[%s1 + $0x2d0] sm:$0xff]
  %v175 = vld [vmem:[%s1 + $0x2d8] sm:$0xff]
  %v176 = vld [vmem:[%s1 + $0x2e0] sm:$0xff]
  %v177 = vld [vmem:[%s1 + $0x2e8] sm:$0xff]
  %v178 = vld [vmem:[%s1 + $0x2f0] sm:$0xff]
  %v179 = vld [vmem:[%s1 + $0x2f8] sm:$0xff]
  %v180 = vld [vmem:[%s1 + $0x300] sm:$0xff]
  %v181 = vld [vmem:[%s1 + $0x308] sm:$0xff]
  %v182 = vld [vmem:[%s1 + $0x310] sm:$0xff]
  %v183 = vld [vmem:[%s1 + $0x318] sm:$0xff]
  %v184 = vld [vmem:[%s1 + $0x320] sm:$0xff]
  %v185 = vld [vmem:[%s1 + $0x328] sm:$0xff]
  %v186 = vld [vmem:[%s1 + $0x330] sm:$0xff]
  %v187 = vld [vmem:[%s1 + $0x338] sm:$0xff]
  %v188 = vld [vmem:[%s1 + $0x340] sm:$0xff]
  %v189 = vld [vmem:[%s1 + $0x348] sm:$0xff]
  %v190 = vld [vmem:[%s1 + $0x350] sm:$0xff]
  %v191 = vld [vmem:[%s1 + $0x358] sm:$0xff]
  %v192 = vld [vmem:[%s1 + $0x360] sm:$0xff]
  %v193 = vld [vmem:[%s1 + $0x368] sm:$0xff]
  %v194 = vld [vmem:[%s1 + $0x370] sm:$0xff]
  %v195 = vld [vmem:[%s1 + $0x378] sm:$0xff]
  %v196 = vld [vmem:[%s1 + $0x380] sm:$0xff]
  %v197 = vld [vmem:[%s1 + $0x388] sm:$0xff]
  %v198 = vld [vmem:[%s1 + $0x390] sm:$0xff]
  %v199 = vld [vmem:[%s1 + $0x398] sm:$0xff]
  %v200 = vld [vmem:[%s1 + $0x3a0] sm:$0xff]
  %v201 = vld [vmem:[%s1 + $0x3a8] sm:$0xff]
  %v202 = vld [vmem:[%s1 + $0x3b0] sm:$0xff]
  %v203 = vld [vmem:[%s1 + $0x3b8] sm:$0xff]
  %v204 = vld [vmem:[%s1 + $0x3c0] sm:$0xff]
  %v205 = vld [vmem:[%s1 + $0x3c8] sm:$0xff]
  %v206 = vld [vmem:[%s1 + $0x3d0] sm:$0xff]
  %v207 = vld [vmem:[%s1 + $0x3d8] sm:$0xff]
  %v208 = vld [vmem:[%s1 + $0x3e0] sm:$0xff]
  %v209 = vld [vmem:[%s1 + $0x3e8] sm:$0xff]
  %v210 = vld [vmem:[%s1 + $0x3f0] sm:$0xff]
  %v211 = vld [vmem:[%s1 + $0x3f8] sm:$0xff]
  %v244 = vunpack.c.l.b16 %v20
  %v245 = vunpack.c.h.b16 %v20
  %v246 = vunpack.c.l.b16 %v21
  %v247 = vunpack.c.h.b16 %v21
  %v248 = vunpack.c.l.b16 %v22
  %v249 = vunpack.c.h.b16 %v22
  %v250 = vunpack.c.l.b16 %v23
  %v251 = vunpack.c.h.b16 %v23
  %v252 = vunpack.c.l.b16 %v24
  %v253 = vunpack.c.h.b16 %v24
  %v254 = vunpack.c.l.b16 %v25
  %v255 = vunpack.c.h.b16 %v25
  %v256 = vunpack.c.l.b16 %v26
  %v257 = vunpack.c.h.b16 %v26
  %v258 = vunpack.c.l.b16 %v27
  %v259 = vunpack.c.h.b16 %v27
  %v260 = vunpack.c.l.b16 %v28
  %v261 = vunpack.c.h.b16 %v28
  %v262 = vunpack.c.l.b16 %v29
  %v263 = vunpack.c.h.b16 %v29
  %v264 = vunpack.c.l.b16 %v30
  %v265 = vunpack.c.h.b16 %v30
  %v266 = vunpack.c.l.b16 %v31
  %v267 = vunpack.c.h.b16 %v31
  %v268 = vunpack.c.l.b16 %v32
  %v269 = vunpack.c.h.b16 %v32
  %v270 = vunpack.c.l.b16 %v33
  %v271 = vunpack.c.h.b16 %v33
  %v272 = vunpack.c.l.b16 %v34
  %v273 = vunpack.c.h.b16 %v34
  %v274 = vunpack.c.l.b16 %v35
  %v275 = vunpack.c.h.b16 %v35
  %v276 = vunpack.c.l.b16 %v36
  %v277 = vunpack.c.h.b16 %v36
  %v278 = vunpack.c.l.b16 %v37
  %v279 = vunpack.c.h.b16 %v37
  %v280 = vunpack.c.l.b16 %v38
  %v281 = vunpack.c.h.b16 %v38
  %v282 = vunpack.c.l.b16 %v39
  %v283 = vunpack.c.h.b16 %v39
  %v284 = vunpack.c.l.b16 %v40
  %v285 = vunpack.c.h.b16 %v40
  %v286 = vunpack.c.l.b16 %v41
  %v287 = vunpack.c.h.b16 %v41
  %v288 = vunpack.c.l.b16 %v42
  %v289 = vunpack.c.h.b16 %v42
  %v290 = vunpack.c.l.b16 %v43
  %v291 = vunpack.c.h.b16 %v43
  %v292 = vunpack.c.l.b16 %v44
  %v293 = vunpack.c.h.b16 %v44
  %v294 = vunpack.c.l.b16 %v45
  %v295 = vunpack.c.h.b16 %v45
  %v296 = vunpack.c.l.b16 %v46
  %v297 = vunpack.c.h.b16 %v46
  %v298 = vunpack.c.l.b16 %v47
  %v299 = vunpack.c.h.b16 %v47
  %v300 = vunpack.c.l.b16 %v48
  %v301 = vunpack.c.h.b16 %v48
  %v302 = vunpack.c.l.b16 %v49
  %v303 = vunpack.c.h.b16 %v49
  %v304 = vunpack.c.l.b16 %v50
  %v305 = vunpack.c.h.b16 %v50
  %v306 = vunpack.c.l.b16 %v51
  %v307 = vunpack.c.h.b16 %v51
  %v308 = vpack.c.b16 %v248, %v244
  %v309 = vpack.c.b16 %v249, %v245
  %v310 = vpack.c.b16 %v250, %v246
  %v311 = vpack.c.b16 %v251, %v247
  %v312 = vpack.c.b16 %v256, %v252
  %v313 = vpack.c.b16 %v257, %v253
  %v314 = vpack.c.b16 %v258, %v254
  %v315 = vpack.c.b16 %v259, %v255
  %v316 = vpack.c.b16 %v264, %v260
  %v317 = vpack.c.b16 %v265, %v261
  %v318 = vpack.c.b16 %v266, %v262
  %v319 = vpack.c.b16 %v267, %v263
  %v320 = vpack.c.b16 %v272, %v268
  %v321 = vpack.c.b16 %v273, %v269
  %v322 = vpack.c.b16 %v274, %v270
  %v323 = vpack.c.b16 %v275, %v271
  %v324 = vpack.c.b16 %v280, %v276
  %v325 = vpack.c.b16 %v281, %v277
  %v326 = vpack.c.b16 %v282, %v278
  %v327 = vpack.c.b16 %v283, %v279
  %v328 = vpack.c.b16 %v288, %v284
  %v329 = vpack.c.b16 %v289, %v285
  %v330 = vpack.c.b16 %v290, %v286
  %v331 = vpack.c.b16 %v291, %v287
  %v332 = vpack.c.b16 %v296, %v292
  %v333 = vpack.c.b16 %v297, %v293
  %v334 = vpack.c.b16 %v298, %v294
  %v335 = vpack.c.b16 %v299, %v295
  %v336 = vpack.c.b16 %v304, %v300
  %v337 = vpack.c.b16 %v305, %v301
  %v338 = vpack.c.b16 %v306, %v302
  %v339 = vpack.c.b16 %v307, %v303
  %v500 = vunpack.c.l.b16 %v84
  %v501 = vunpack.c.h.b16 %v84
  %v502 = vunpack.c.l.b16 %v85
  %v503 = vunpack.c.h.b16 %v85
  %v504 = vunpack.c.l.b16 %v86
  %v505 = vunpack.c.h.b16 %v86
  %v506 = vunpack.c.l.b16 %v87
  %v507 = vunpack.c.h.b16 %v87
  %v508 = vunpack.c.l.b16 %v88
  %v509 = vunpack.c.h.b16 %v88
  %v510 = vunpack.c.l.b16 %v89
  %v511 = vunpack.c.h.b16 %v89
  %v512 = vunpack.c.l.b16 %v90
  %v513 = vunpack.c.h.b16 %v90
  %v514 = vunpack.c.l.b16 %v91
  %v515 = vunpack.c.h.b16 %v91
  %v516 = vunpack.c.l.b16 %v92
  %v517 = vunpack.c.h.b16 %v92
  %v518 = vunpack.c.l.b16 %v93
  %v519 = vunpack.c.h.b16 %v93
  %v520 = vunpack.c.l.b16 %v94
  %v521 = vunpack.c.h.b16 %v94
  %v522 = vunpack.c.l.b16 %v95
  %v523 = vunpack.c.h.b16 %v95
  %v524 = vunpack.c.l.b16 %v96
  %v525 = vunpack.c.h.b16 %v96
  %v526 = vunpack.c.l.b16 %v97
  %v527 = vunpack.c.h.b16 %v97
  %v528 = vunpack.c.l.b16 %v98
  %v529 = vunpack.c.h.b16 %v98
  %v530 = vunpack.c.l.b16 %v99
  %v531 = vunpack.c.h.b16 %v99
  %v532 = vunpack.c.l.b16 %v100
  %v533 = vunpack.c.h.b16 %v100
  %v534 = vunpack.c.l.b16 %v101
  %v535 = vunpack.c.h.b16 %v101
  %v536 = vunpack.c.l.b16 %v102
  %v537 = vunpack.c.h.b16 %v102
  %v538 = vunpack.c.l.b16 %v103
  %v539 = vunpack.c.h.b16 %v103
  %v540 = vunpack.c.l.b16 %v104
  %v541 = vunpack.c.h.b16 %v104
  %v542 = vunpack.c.l.b16 %v105
  %v543 = vunpack.c.h.b16 %v105
  %v544 = vunpack.c.l.b16 %v106
  %v545 = vunpack.c.h.b16 %v106
  %v546 = vunpack.c.l.b16 %v107
  %v547 = vunpack.c.h.b16 %v107
  %v548 = vunpack.c.l.b16 %v108
  %v549 = vunpack.c.h.b16 %v108
  %v550 = vunpack.c.l.b16 %v109
  %v551 = vunpack.c.h.b16 %v109
  %v552 = vunpack.c.l.b16 %v110
  %v553 = vunpack.c.h.b16 %v110
  %v554 = vunpack.c.l.b16 %v111
  %v555 = vunpack.c.h.b16 %v111
  %v556 = vunpack.c.l.b16 %v112
  %v557 = vunpack.c.h.b16 %v112
  %v558 = vunpack.c.l.b16 %v113
  %v559 = vunpack.c.h.b16 %v113
  %v560 = vunpack.c.l.b16 %v114
  %v561 = vunpack.c.h.b16 %v114
  %v562 = vunpack.c.l.b16 %v115
  %v563 = vunpack.c.h.b16 %v115
  %v564 = vunpack.c.l.b16 %v116
  %v565 = vunpack.c.h.b16 %v116
  %v566 = vunpack.c.l.b16 %v117
  %v567 = vunpack.c.h.b16 %v117
  %v568 = vunpack.c.l.b16 %v118
  %v569 = vunpack.c.h.b16 %v118
  %v570 = vunpack.c.l.b16 %v119
  %v571 = vunpack.c.h.b16 %v119
  %v572 = vunpack.c.l.b16 %v120
  %v573 = vunpack.c.h.b16 %v120
  %v574 = vunpack.c.l.b16 %v121
  %v575 = vunpack.c.h.b16 %v121
  %v576 = vunpack.c.l.b16 %v122
  %v577 = vunpack.c.h.b16 %v122
  %v578 = vunpack.c.l.b16 %v123
  %v579 = vunpack.c.h.b16 %v123
  %v580 = vunpack.c.l.b16 %v124
  %v581 = vunpack.c.h.b16 %v124
  %v582 = vunpack.c.l.b16 %v125
  %v583 = vunpack.c.h.b16 %v125
  %v584 = vunpack.c.l.b16 %v126
  %v585 = vunpack.c.h.b16 %v126
  %v586 = vunpack.c.l.b16 %v127
  %v587 = vunpack.c.h.b16 %v127
  %v588 = vunpack.c.l.b16 %v128
  %v589 = vunpack.c.h.b16 %v128
  %v590 = vunpack.c.l.b16 %v129
  %v591 = vunpack.c.h.b16 %v129
  %v592 = vunpack.c.l.b16 %v130
  %v593 = vunpack.c.h.b16 %v130
  %v594 = vunpack.c.l.b16 %v131
  %v595 = vunpack.c.h.b16 %v131
  %v596 = vunpack.c.l.b16 %v132
  %v597 = vunpack.c.h.b16 %v132
  %v598 = vunpack.c.l.b16 %v133
  %v599 = vunpack.c.h.b16 %v133
  %v600 = vunpack.c.l.b16 %v134
  %v601 = vunpack.c.h.b16 %v134
  %v602 = vunpack.c.l.b16 %v135
  %v603 = vunpack.c.h.b16 %v135
  %v604 = vunpack.c.l.b16 %v136
  %v605 = vunpack.c.h.b16 %v136
  %v606 = vunpack.c.l.b16 %v137
  %v607 = vunpack.c.h.b16 %v137
  %v608 = vunpack.c.l.b16 %v138
  %v609 = vunpack.c.h.b16 %v138
  %v610 = vunpack.c.l.b16 %v139
  %v611 = vunpack.c.h.b16 %v139
  %v612 = vunpack.c.l.b16 %v140
  %v613 = vunpack.c.h.b16 %v140
  %v614 = vunpack.c.l.b16 %v141
  %v615 = vunpack.c.h.b16 %v141
  %v616 = vunpack.c.l.b16 %v142
  %v617 = vunpack.c.h.b16 %v142
  %v618 = vunpack.c.l.b16 %v143
  %v619 = vunpack.c.h.b16 %v143
  %v620 = vunpack.c.l.b16 %v144
  %v621 = vunpack.c.h.b16 %v144
  %v622 = vunpack.c.l.b16 %v145
  %v623 = vunpack.c.h.b16 %v145
  %v624 = vunpack.c.l.b16 %v146
  %v625 = vunpack.c.h.b16 %v146
  %v626 = vunpack.c.l.b16 %v147
  %v627 = vunpack.c.h.b16 %v147
  %v628 = vunpack.c.l.b16 %v148
  %v629 = vunpack.c.h.b16 %v148
  %v630 = vunpack.c.l.b16 %v149
  %v631 = vunpack.c.h.b16 %v149
  %v632 = vunpack.c.l.b16 %v150
  %v633 = vunpack.c.h.b16 %v150
  %v634 = vunpack.c.l.b16 %v151
  %v635 = vunpack.c.h.b16 %v151
  %v636 = vunpack.c.l.b16 %v152
  %v637 = vunpack.c.h.b16 %v152
  %v638 = vunpack.c.l.b16 %v153
  %v639 = vunpack.c.h.b16 %v153
  %v640 = vunpack.c.l.b16 %v154
  %v641 = vunpack.c.h.b16 %v154
  %v642 = vunpack.c.l.b16 %v155
  %v643 = vunpack.c.h.b16 %v155
  %v644 = vunpack.c.l.b16 %v156
  %v645 = vunpack.c.h.b16 %v156
  %v646 = vunpack.c.l.b16 %v157
  %v647 = vunpack.c.h.b16 %v157
  %v648 = vunpack.c.l.b16 %v158
  %v649 = vunpack.c.h.b16 %v158
  %v650 = vunpack.c.l.b16 %v159
  %v651 = vunpack.c.h.b16 %v159
  %v652 = vunpack.c.l.b16 %v160
  %v653 = vunpack.c.h.b16 %v160
  %v654 = vunpack.c.l.b16 %v161
  %v655 = vunpack.c.h.b16 %v161
  %v656 = vunpack.c.l.b16 %v162
  %v657 = vunpack.c.h.b16 %v162
  %v658 = vunpack.c.l.b16 %v163
  %v659 = vunpack.c.h.b16 %v163
  %v660 = vunpack.c.l.b16 %v164
  %v661 = vunpack.c.h.b16 %v164
  %v662 = vunpack.c.l.b16 %v165
  %v663 = vunpack.c.h.b16 %v165
  %v664 = vunpack.c.l.b16 %v166
  %v665 = vunpack.c.h.b16 %v166
  %v666 = vunpack.c.l.b16 %v167
  %v667 = vunpack.c.h.b16 %v167
  %v668 = vunpack.c.l.b16 %v168
  %v669 = vunpack.c.h.b16 %v168
  %v670 = vunpack.c.l.b16 %v169
  %v671 = vunpack.c.h.b16 %v169
  %v672 = vunpack.c.l.b16 %v170
  %v673 = vunpack.c.h.b16 %v170
  %v674 = vunpack.c.l.b16 %v171
  %v675 = vunpack.c.h.b16 %v171
  %v676 = vunpack.c.l.b16 %v172
  %v677 = vunpack.c.h.b16 %v172
  %v678 = vunpack.c.l.b16 %v173
  %v679 = vunpack.c.h.b16 %v173
  %v680 = vunpack.c.l.b16 %v174
  %v681 = vunpack.c.h.b16 %v174
  %v682 = vunpack.c.l.b16 %v175
  %v683 = vunpack.c.h.b16 %v175
  %v684 = vunpack.c.l.b16 %v176
  %v685 = vunpack.c.h.b16 %v176
  %v686 = vunpack.c.l.b16 %v177
  %v687 = vunpack.c.h.b16 %v177
  %v688 = vunpack.c.l.b16 %v178
  %v689 = vunpack.c.h.b16 %v178
  %v690 = vunpack.c.l.b16 %v179
  %v691 = vunpack.c.h.b16 %v179
  %v692 = vunpack.c.l.b16 %v180
  %v693 = vunpack.c.h.b16 %v180
  %v694 = vunpack.c.l.b16 %v181
  %v695 = vunpack.c.h.b16 %v181
  %v696 = vunpack.c.l.b16 %v182
  %v697 = vunpack.c.h.b16 %v182
  %v698 = vunpack.c.l.b16 %v183
  %v699 = vunpack.c.h.b16 %v183
  %v700 = vunpack.c.l.b16 %v184
  %v701 = vunpack.c.h.b16 %v184
  %v702 = vunpack.c.l.b16 %v185
  %v703 = vunpack.c.h.b16 %v185
  %v704 = vunpack.c.l.b16 %v186
  %v705 = vunpack.c.h.b16 %v186
  %v706 = vunpack.c.l.b16 %v187
  %v707 = vunpack.c.h.b16 %v187
  %v708 = vunpack.c.l.b16 %v188
  %v709 = vunpack.c.h.b16 %v188
  %v710 = vunpack.c.l.b16 %v189
  %v711 = vunpack.c.h.b16 %v189
  %v712 = vunpack.c.l.b16 %v190
  %v713 = vunpack.c.h.b16 %v190
  %v714 = vunpack.c.l.b16 %v191
  %v715 = vunpack.c.h.b16 %v191
  %v716 = vunpack.c.l.b16 %v192
  %v717 = vunpack.c.h.b16 %v192
  %v718 = vunpack.c.l.b16 %v193
  %v719 = vunpack.c.h.b16 %v193
  %v720 = vunpack.c.l.b16 %v194
  %v721 = vunpack.c.h.b16 %v194
  %v722 = vunpack.c.l.b16 %v195
  %v723 = vunpack.c.h.b16 %v195
  %v724 = vunpack.c.l.b16 %v196
  %v725 = vunpack.c.h.b16 %v196
  %v726 = vunpack.c.l.b16 %v197
  %v727 = vunpack.c.h.b16 %v197
  %v728 = vunpack.c.l.b16 %v198
  %v729 = vunpack.c.h.b16 %v198
  %v730 = vunpack.c.l.b16 %v199
  %v731 = vunpack.c.h.b16 %v199
  %v732 = vunpack.c.l.b16 %v200
  %v733 = vunpack.c.h.b16 %v200
  %v734 = vunpack.c.l.b16 %v201
  %v735 = vunpack.c.h.b16 %v201
  %v736 = vunpack.c.l.b16 %v202
  %v737 = vunpack.c.h.b16 %v202
  %v738 = vunpack.c.l.b16 %v203
  %v739 = vunpack.c.h.b16 %v203
  %v740 = vunpack.c.l.b16 %v204
  %v741 = vunpack.c.h.b16 %v204
  %v742 = vunpack.c.l.b16 %v205
  %v743 = vunpack.c.h.b16 %v205
  %v744 = vunpack.c.l.b16 %v206
  %v745 = vunpack.c.h.b16 %v206
  %v746 = vunpack.c.l.b16 %v207
  %v747 = vunpack.c.h.b16 %v207
  %v748 = vunpack.c.l.b16 %v208
  %v749 = vunpack.c.h.b16 %v208
  %v750 = vunpack.c.l.b16 %v209
  %v751 = vunpack.c.h.b16 %v209
  %v752 = vunpack.c.l.b16 %v210
  %v753 = vunpack.c.h.b16 %v210
  %v754 = vunpack.c.l.b16 %v211
  %v755 = vunpack.c.h.b16 %v211
  %v756 = vpack.c.b16 %v504, %v500
  %v757 = vpack.c.b16 %v505, %v501
  %v758 = vpack.c.b16 %v506, %v502
  %v759 = vpack.c.b16 %v507, %v503
  %v760 = vpack.c.b16 %v512, %v508
  %v761 = vpack.c.b16 %v513, %v509
  %v762 = vpack.c.b16 %v514, %v510
  %v763 = vpack.c.b16 %v515, %v511
  %v764 = vpack.c.b16 %v520, %v516
  %v765 = vpack.c.b16 %v521, %v517
  %v766 = vpack.c.b16 %v522, %v518
  %v767 = vpack.c.b16 %v523, %v519
  %v768 = vpack.c.b16 %v528, %v524
  %v769 = vpack.c.b16 %v529, %v525
  %v770 = vpack.c.b16 %v530, %v526
  %v771 = vpack.c.b16 %v531, %v527
  %v772 = vpack.c.b16 %v536, %v532
  %v773 = vpack.c.b16 %v537, %v533
  %v774 = vpack.c.b16 %v538, %v534
  %v775 = vpack.c.b16 %v539, %v535
  %v776 = vpack.c.b16 %v544, %v540
  %v777 = vpack.c.b16 %v545, %v541
  %v778 = vpack.c.b16 %v546, %v542
  %v779 = vpack.c.b16 %v547, %v543
  %v780 = vpack.c.b16 %v552, %v548
  %v781 = vpack.c.b16 %v553, %v549
  %v782 = vpack.c.b16 %v554, %v550
  %v783 = vpack.c.b16 %v555, %v551
  %v784 = vpack.c.b16 %v560, %v556
  %v785 = vpack.c.b16 %v561, %v557
  %v786 = vpack.c.b16 %v562, %v558
  %v787 = vpack.c.b16 %v563, %v559
  %v788 = vpack.c.b16 %v568, %v564
  %v789 = vpack.c.b16 %v569, %v565
  %v790 = vpack.c.b16 %v570, %v566
  %v791 = vpack.c.b16 %v571, %v567
  %v792 = vpack.c.b16 %v576, %v572
  %v793 = vpack.c.b16 %v577, %v573
  %v794 = vpack.c.b16 %v578, %v574
  %v795 = vpack.c.b16 %v579, %v575
  %v796 = vpack.c.b16 %v584, %v580
  %v797 = vpack.c.b16 %v585, %v581
  %v798 = vpack.c.b16 %v586, %v582
  %v799 = vpack.c.b16 %v587, %v583
  %v800 = vpack.c.b16 %v592, %v588
  %v801 = vpack.c.b16 %v593, %v589
  %v802 = vpack.c.b16 %v594, %v590
  %v803 = vpack.c.b16 %v595, %v591
  %v804 = vpack.c.b16 %v600, %v596
  %v805 = vpack.c.b16 %v601, %v597
  %v806 = vpack.c.b16 %v602, %v598
  %v807 = vpack.c.b16 %v603, %v599
  %v808 = vpack.c.b16 %v608, %v604
  %v809 = vpack.c.b16 %v609, %v605
  %v810 = vpack.c.b16 %v610, %v606
  %v811 = vpack.c.b16 %v611, %v607
  %v812 = vpack.c.b16 %v616, %v612
  %v813 = vpack.c.b16 %v617, %v613
  %v814 = vpack.c.b16 %v618, %v614
  %v815 = vpack.c.b16 %v619, %v615
  %v816 = vpack.c.b16 %v624, %v620
  %v817 = vpack.c.b16 %v625, %v621
  %v818 = vpack.c.b16 %v626, %v622
  %v819 = vpack.c.b16 %v627, %v623
  %v820 = vpack.c.b16 %v632, %v628
  %v821 = vpack.c.b16 %v633, %v629
  %v822 = vpack.c.b16 %v634, %v630
  %v823 = vpack.c.b16 %v635, %v631
  %v824 = vpack.c.b16 %v640, %v636
  %v825 = vpack.c.b16 %v641, %v637
  %v826 = vpack.c.b16 %v642, %v638
  %v827 = vpack.c.b16 %v643, %v639
  %v828 = vpack.c.b16 %v648, %v644
  %v829 = vpack.c.b16 %v649, %v645
  %v830 = vpack.c.b16 %v650, %v646
  %v831 = vpack.c.b16 %v651, %v647
  %v832 = vpack.c.b16 %v656, %v652
  %v833 = vpack.c.b16 %v657, %v653
  %v834 = vpack.c.b16 %v658, %v654
  %v835 = vpack.c.b16 %v659, %v655
  %v836 = vpack.c.b16 %v664, %v660
  %v837 = vpack.c.b16 %v665, %v661
  %v838 = vpack.c.b16 %v666, %v662
  %v839 = vpack.c.b16 %v667, %v663
  %v840 = vpack.c.b16 %v672, %v668
  %v841 = vpack.c.b16 %v673, %v669
  %v842 = vpack.c.b16 %v674, %v670
  %v843 = vpack.c.b16 %v675, %v671
  %v844 = vpack.c.b16 %v680, %v676
  %v845 = vpack.c.b16 %v681, %v677
  %v846 = vpack.c.b16 %v682, %v678
  %v847 = vpack.c.b16 %v683, %v679
  %v848 = vpack.c.b16 %v688, %v684
  %v849 = vpack.c.b16 %v689, %v685
  %v850 = vpack.c.b16 %v690, %v686
  %v851 = vpack.c.b16 %v691, %v687
  %v852 = vpack.c.b16 %v696, %v692
  %v853 = vpack.c.b16 %v697, %v693
  %v854 = vpack.c.b16 %v698, %v694
  %v855 = vpack.c.b16 %v699, %v695
  %v856 = vpack.c.b16 %v704, %v700
  %v857 = vpack.c.b16 %v705, %v701
  %v858 = vpack.c.b16 %v706, %v702
  %v859 = vpack.c.b16 %v707, %v703
  %v860 = vpack.c.b16 %v712, %v708
  %v861 = vpack.c.b16 %v713, %v709
  %v862 = vpack.c.b16 %v714, %v710
  %v863 = vpack.c.b16 %v715, %v711
  %v864 = vpack.c.b16 %v720, %v716
  %v865 = vpack.c.b16 %v721, %v717
  %v866 = vpack.c.b16 %v722, %v718
  %v867 = vpack.c.b16 %v723, %v719
  %v868 = vpack.c.b16 %v728, %v724
  %v869 = vpack.c.b16 %v729, %v725
  %v870 = vpack.c.b16 %v730, %v726
  %v871 = vpack.c.b16 %v731, %v727
  %v872 = vpack.c.b16 %v736, %v732
  %v873 = vpack.c.b16 %v737, %v733
  %v874 = vpack.c.b16 %v738, %v734
  %v875 = vpack.c.b16 %v739, %v735
  %v876 = vpack.c.b16 %v744, %v740
  %v877 = vpack.c.b16 %v745, %v741
  %v878 = vpack.c.b16 %v746, %v742
  %v879 = vpack.c.b16 %v747, %v743
  %v880 = vpack.c.b16 %v752, %v748
  %v881 = vpack.c.b16 %v753, %v749
  %v882 = vpack.c.b16 %v754, %v750
  %v883 = vpack.c.b16 %v755, %v751
  %1012 = vmatpush.bf16.msra.mxu0 %v784
  %1013 = vmatpush.bf16.msra.mxu0 %v780
  %1014 = vmatpush.bf16.msra.mxu0 %v776
  %1015 = vmatpush.bf16.msra.mxu0 %v772
  %1016 = vmatpush.bf16.msra.mxu0 %v768
  %1017 = vmatpush.bf16.msra.mxu0 %v764
  %1018 = vmatpush.bf16.msra.mxu0 %v760
  %1019 = vmatpush.bf16.msra.mxu0 %v756
  %1020 = vmatmul.bf16.gmra.mxu0 %v308
  %v1021 = vpop.f32.mrf.mxu0
  %v1022 = vadd.f32 0.0, %v1021
  %v1023 = vpop.f32.mrf.mxu0
  %v1024 = vadd.f32 0.0, %v1023
  %1025 = vmatmul.bf16.gmra.mxu0 %v312
  %v1026 = vpop.f32.mrf.mxu0
  %v1027 = vadd.f32 0.0, %v1026
  %v1028 = vpop.f32.mrf.mxu0
  %v1029 = vadd.f32 0.0, %v1028
  %1030 = vmatmul.bf16.gmra.mxu0 %v316
  %v1031 = vpop.f32.mrf.mxu0
  %v1032 = vadd.f32 0.0, %v1031
  %v1033 = vpop.f32.mrf.mxu0
  %v1034 = vadd.f32 0.0, %v1033
  %1035 = vmatmul.bf16.gmra.mxu0 %v320
  %v1036 = vpop.f32.mrf.mxu0
  %v1037 = vadd.f32 0.0, %v1036
  %v1038 = vpop.f32.mrf.mxu0
  %v1039 = vadd.f32 0.0, %v1038
  %1040 = vmatmul.bf16.gmra.mxu0 %v324
  %v1041 = vpop.f32.mrf.mxu0
  %v1042 = vadd.f32 0.0, %v1041
  %v1043 = vpop.f32.mrf.mxu0
  %v1044 = vadd.f32 0.0, %v1043
  %1045 = vmatmul.bf16.gmra.mxu0 %v328
  %v1046 = vpop.f32.mrf.mxu0
  %v1047 = vadd.f32 0.0, %v1046
  %v1048 = vpop.f32.mrf.mxu0
  %v1049 = vadd.f32 0.0, %v1048
  %1050 = vmatmul.bf16.gmra.mxu0 %v332
  %v1051 = vpop.f32.mrf.mxu0
  %v1052 = vadd.f32 0.0, %v1051
  %v1053 = vpop.f32.mrf.mxu0
  %v1054 = vadd.f32 0.0, %v1053
  %1055 = vmatmul.bf16.gmra.mxu0 %v336
  %v1056 = vpop.f32.mrf.mxu0
  %v1057 = vadd.f32 0.0, %v1056
  %v1058 = vpop.f32.mrf.mxu0
  %v1059 = vadd.f32 0.0, %v1058
  %1060 = vdwg.mxu0
  %1061 = vmatpush.bf16.msra.mxu0 %v816
  %1062 = vmatpush.bf16.msra.mxu0 %v812
  %1063 = vmatpush.bf16.msra.mxu0 %v808
  %1064 = vmatpush.bf16.msra.mxu0 %v804
  %1065 = vmatpush.bf16.msra.mxu0 %v800
  %1066 = vmatpush.bf16.msra.mxu0 %v796
  %1067 = vmatpush.bf16.msra.mxu0 %v792
  %1068 = vmatpush.bf16.msra.mxu0 %v788
  %1069 = vmatmul.bf16.gmra.mxu0 %v309
  %v1070 = vpop.f32.mrf.mxu0
  %v1071 = vadd.f32 %v1022, %v1070
  %v1072 = vpop.f32.mrf.mxu0
  %v1073 = vadd.f32 %v1024, %v1072
  %1074 = vmatmul.bf16.gmra.mxu0 %v313
  %v1075 = vpop.f32.mrf.mxu0
  %v1076 = vadd.f32 %v1027, %v1075
  %v1077 = vpop.f32.mrf.mxu0
  %v1078 = vadd.f32 %v1029, %v1077
  %1079 = vmatmul.bf16.gmra.mxu0 %v317
  %v1080 = vpop.f32.mrf.mxu0
  %v1081 = vadd.f32 %v1032, %v1080
  %v1082 = vpop.f32.mrf.mxu0
  %v1083 = vadd.f32 %v1034, %v1082
  %1084 = vmatmul.bf16.gmra.mxu0 %v321
  %v1085 = vpop.f32.mrf.mxu0
  %v1086 = vadd.f32 %v1037, %v1085
  %v1087 = vpop.f32.mrf.mxu0
  %v1088 = vadd.f32 %v1039, %v1087
  %1089 = vmatmul.bf16.gmra.mxu0 %v325
  %v1090 = vpop.f32.mrf.mxu0
  %v1091 = vadd.f32 %v1042, %v1090
  %v1092 = vpop.f32.mrf.mxu0
  %v1093 = vadd.f32 %v1044, %v1092
  %1094 = vmatmul.bf16.gmra.mxu0 %v329
  %v1095 = vpop.f32.mrf.mxu0
  %v1096 = vadd.f32 %v1047, %v1095
  %v1097 = vpop.f32.mrf.mxu0
  %v1098 = vadd.f32 %v1049, %v1097
  %1099 = vmatmul.bf16.gmra.mxu0 %v333
  %v1100 = vpop.f32.mrf.mxu0
  %v1101 = vadd.f32 %v1052, %v1100
  %v1102 = vpop.f32.mrf.mxu0
  %v1103 = vadd.f32 %v1054, %v1102
  %1104 = vmatmul.bf16.gmra.mxu0 %v337
  %v1105 = vpop.f32.mrf.mxu0
  %v1106 = vadd.f32 %v1057, %v1105
  %v1107 = vpop.f32.mrf.mxu0
  %v1108 = vadd.f32 %v1059, %v1107
  %1109 = vdwg.mxu0
  %1110 = vmatpush.bf16.msra.mxu0 %v848
  %1111 = vmatpush.bf16.msra.mxu0 %v844
  %1112 = vmatpush.bf16.msra.mxu0 %v840
  %1113 = vmatpush.bf16.msra.mxu0 %v836
  %1114 = vmatpush.bf16.msra.mxu0 %v832
  %1115 = vmatpush.bf16.msra.mxu0 %v828
  %1116 = vmatpush.bf16.msra.mxu0 %v824
  %1117 = vmatpush.bf16.msra.mxu0 %v820
  %1118 = vmatmul.bf16.gmra.mxu0 %v310
  %v1119 = vpop.f32.mrf.mxu0
  %v1120 = vadd.f32 %v1071, %v1119
  %v1121 = vpop.f32.mrf.mxu0
  %v1122 = vadd.f32 %v1073, %v1121
  %1123 = vmatmul.bf16.gmra.mxu0 %v314
  %v1124 = vpop.f32.mrf.mxu0
  %v1125 = vadd.f32 %v1076, %v1124
  %v1126 = vpop.f32.mrf.mxu0
  %v1127 = vadd.f32 %v1078, %v1126
  %1128 = vmatmul.bf16.gmra.mxu0 %v318
  %v1129 = vpop.f32.mrf.mxu0
  %v1130 = vadd.f32 %v1081, %v1129
  %v1131 = vpop.f32.mrf.mxu0
  %v1132 = vadd.f32 %v1083, %v1131
  %1133 = vmatmul.bf16.gmra.mxu0 %v322
  %v1134 = vpop.f32.mrf.mxu0
  %v1135 = vadd.f32 %v1086, %v1134
  %v1136 = vpop.f32.mrf.mxu0
  %v1137 = vadd.f32 %v1088, %v1136
  %1138 = vmatmul.bf16.gmra.mxu0 %v326
  %v1139 = vpop.f32.mrf.mxu0
  %v1140 = vadd.f32 %v1091, %v1139
  %v1141 = vpop.f32.mrf.mxu0
  %v1142 = vadd.f32 %v1093, %v1141
  %1143 = vmatmul.bf16.gmra.mxu0 %v330
  %v1144 = vpop.f32.mrf.mxu0
  %v1145 = vadd.f32 %v1096, %v1144
  %v1146 = vpop.f32.mrf.mxu0
  %v1147 = vadd.f32 %v1098, %v1146
  %1148 = vmatmul.bf16.gmra.mxu0 %v334
  %v1149 = vpop.f32.mrf.mxu0
  %v1150 = vadd.f32 %v1101, %v1149
  %v1151 = vpop.f32.mrf.mxu0
  %v1152 = vadd.f32 %v1103, %v1151
  %1153 = vmatmul.bf16.gmra.mxu0 %v338
  %v1154 = vpop.f32.mrf.mxu0
  %v1155 = vadd.f32 %v1106, %v1154
  %v1156 = vpop.f32.mrf.mxu0
  %v1157 = vadd.f32 %v1108, %v1156
  %1158 = vdwg.mxu0
  %1159 = vmatpush.bf16.msra.mxu0 %v880
  %1160 = vmatpush.bf16.msra.mxu0 %v876
  %1161 = vmatpush.bf16.msra.mxu0 %v872
  %1162 = vmatpush.bf16.msra.mxu0 %v868
  %1163 = vmatpush.bf16.msra.mxu0 %v864
  %1164 = vmatpush.bf16.msra.mxu0 %v860
  %1165 = vmatpush.bf16.msra.mxu0 %v856
  %1166 = vmatpush.bf16.msra.mxu0 %v852
  %1167 = vmatmul.bf16.gmra.mxu0 %v311
  %v1168 = vpop.f32.mrf.mxu0
  %v1169 = vadd.f32 %v1120, %v1168
  %v1170 = vpop.f32.mrf.mxu0
  %v1171 = vadd.f32 %v1122, %v1170
  %1172 = vmatmul.bf16.gmra.mxu0 %v315
  %v1173 = vpop.f32.mrf.mxu0
  %v1174 = vadd.f32 %v1125, %v1173
  %v1175 = vpop.f32.mrf.mxu0
  %v1176 = vadd.f32 %v1127, %v1175
  %1177 = vmatmul.bf16.gmra.mxu0 %v319
  %v1178 = vpop.f32.mrf.mxu0
  %v1179 = vadd.f32 %v1130, %v1178
  %v1180 = vpop.f32.mrf.mxu0
  %v1181 = vadd.f32 %v1132, %v1180
  %1182 = vmatmul.bf16.gmra.mxu0 %v323
  %v1183 = vpop.f32.mrf.mxu0
  %v1184 = vadd.f32 %v1135, %v1183
  %v1185 = vpop.f32.mrf.mxu0
  %v1186 = vadd.f32 %v1137, %v1185
  %1187 = vmatmul.bf16.gmra.mxu0 %v327
  %v1188 = vpop.f32.mrf.mxu0
  %v1189 = vadd.f32 %v1140, %v1188
  %v1190 = vpop.f32.mrf.mxu0
  %v1191 = vadd.f32 %v1142, %v1190
  %1192 = vmatmul.bf16.gmra.mxu0 %v331
  %v1193 = vpop.f32.mrf.mxu0
  %v1194 = vadd.f32 %v1145, %v1193
  %v1195 = vpop.f32.mrf.mxu0
  %v1196 = vadd.f32 %v1147, %v1195
  %1197 = vmatmul.bf16.gmra.mxu0 %v335
  %v1198 = vpop.f32.mrf.mxu0
  %v1199 = vadd.f32 %v1150, %v1198
  %v1200 = vpop.f32.mrf.mxu0
  %v1201 = vadd.f32 %v1152, %v1200
  %1202 = vmatmul.bf16.gmra.mxu0 %v339
  %v1203 = vpop.f32.mrf.mxu0
  %v1204 = vadd.f32 %v1155, %v1203
  %v1205 = vpop.f32.mrf.mxu0
  %v1206 = vadd.f32 %v1157, %v1205
  %1207 = vdwg.mxu0
  %1208 = vmatpush.bf16.msra.mxu0 %v785
  %1209 = vmatpush.bf16.msra.mxu0 %v781
  %1210 = vmatpush.bf16.msra.mxu0 %v777
  %1211 = vmatpush.bf16.msra.mxu0 %v773
  %1212 = vmatpush.bf16.msra.mxu0 %v769
  %1213 = vmatpush.bf16.msra.mxu0 %v765
  %1214 = vmatpush.bf16.msra.mxu0 %v761
  %1215 = vmatpush.bf16.msra.mxu0 %v757
  %1216 = vmatmul.bf16.gmra.mxu0 %v308
  %v1217 = vpop.f32.mrf.mxu0
  %v1218 = vadd.f32 0.0, %v1217
  %v1219 = vpop.f32.mrf.mxu0
  %v1220 = vadd.f32 0.0, %v1219
  %1221 = vmatmul.bf16.gmra.mxu0 %v312
  %v1222 = vpop.f32.mrf.mxu0
  %v1223 = vadd.f32 0.0, %v1222
  %v1224 = vpop.f32.mrf.mxu0
  %v1225 = vadd.f32 0.0, %v1224
  %1226 = vmatmul.bf16.gmra.mxu0 %v316
  %v1227 = vpop.f32.mrf.mxu0
  %v1228 = vadd.f32 0.0, %v1227
  %v1229 = vpop.f32.mrf.mxu0
  %v1230 = vadd.f32 0.0, %v1229
  %1231 = vmatmul.bf16.gmra.mxu0 %v320
  %v1232 = vpop.f32.mrf.mxu0
  %v1233 = vadd.f32 0.0, %v1232
  %v1234 = vpop.f32.mrf.mxu0
  %v1235 = vadd.f32 0.0, %v1234
  %1236 = vmatmul.bf16.gmra.mxu0 %v324
  %v1237 = vpop.f32.mrf.mxu0
  %v1238 = vadd.f32 0.0, %v1237
  %v1239 = vpop.f32.mrf.mxu0
  %v1240 = vadd.f32 0.0, %v1239
  %1241 = vmatmul.bf16.gmra.mxu0 %v328
  %v1242 = vpop.f32.mrf.mxu0
  %v1243 = vadd.f32 0.0, %v1242
  %v1244 = vpop.f32.mrf.mxu0
  %v1245 = vadd.f32 0.0, %v1244
  %1246 = vmatmul.bf16.gmra.mxu0 %v332
  %v1247 = vpop.f32.mrf.mxu0
  %v1248 = vadd.f32 0.0, %v1247
  %v1249 = vpop.f32.mrf.mxu0
  %v1250 = vadd.f32 0.0, %v1249
  %1251 = vmatmul.bf16.gmra.mxu0 %v336
  %v1252 = vpop.f32.mrf.mxu0
  %v1253 = vadd.f32 0.0, %v1252
  %v1254 = vpop.f32.mrf.mxu0
  %v1255 = vadd.f32 0.0, %v1254
  %1256 = vdwg.mxu0
  %1257 = vmatpush.bf16.msra.mxu0 %v817
  %1258 = vmatpush.bf16.msra.mxu0 %v813
  %1259 = vmatpush.bf16.msra.mxu0 %v809
  %1260 = vmatpush.bf16.msra.mxu0 %v805
  %1261 = vmatpush.bf16.msra.mxu0 %v801
  %1262 = vmatpush.bf16.msra.mxu0 %v797
  %1263 = vmatpush.bf16.msra.mxu0 %v793
  %1264 = vmatpush.bf16.msra.mxu0 %v789
  %1265 = vmatmul.bf16.gmra.mxu0 %v309
  %v1266 = vpop.f32.mrf.mxu0
  %v1267 = vadd.f32 %v1218, %v1266
  %v1268 = vpop.f32.mrf.mxu0
  %v1269 = vadd.f32 %v1220, %v1268
  %1270 = vmatmul.bf16.gmra.mxu0 %v313
  %v1271 = vpop.f32.mrf.mxu0
  %v1272 = vadd.f32 %v1223, %v1271
  %v1273 = vpop.f32.mrf.mxu0
  %v1274 = vadd.f32 %v1225, %v1273
  %1275 = vmatmul.bf16.gmra.mxu0 %v317
  %v1276 = vpop.f32.mrf.mxu0
  %v1277 = vadd.f32 %v1228, %v1276
  %v1278 = vpop.f32.mrf.mxu0
  %v1279 = vadd.f32 %v1230, %v1278
  %1280 = vmatmul.bf16.gmra.mxu0 %v321
  %v1281 = vpop.f32.mrf.mxu0
  %v1282 = vadd.f32 %v1233, %v1281
  %v1283 = vpop.f32.mrf.mxu0
  %v1284 = vadd.f32 %v1235, %v1283
  %1285 = vmatmul.bf16.gmra.mxu0 %v325
  %v1286 = vpop.f32.mrf.mxu0
  %v1287 = vadd.f32 %v1238, %v1286
  %v1288 = vpop.f32.mrf.mxu0
  %v1289 = vadd.f32 %v1240, %v1288
  %1290 = vmatmul.bf16.gmra.mxu0 %v329
  %v1291 = vpop.f32.mrf.mxu0
  %v1292 = vadd.f32 %v1243, %v1291
  %v1293 = vpop.f32.mrf.mxu0
  %v1294 = vadd.f32 %v1245, %v1293
  %1295 = vmatmul.bf16.gmra.mxu0 %v333
  %v1296 = vpop.f32.mrf.mxu0
  %v1297 = vadd.f32 %v1248, %v1296
  %v1298 = vpop.f32.mrf.mxu0
  %v1299 = vadd.f32 %v1250, %v1298
  %1300 = vmatmul.bf16.gmra.mxu0 %v337
  %v1301 = vpop.f32.mrf.mxu0
  %v1302 = vadd.f32 %v1253, %v1301
  %v1303 = vpop.f32.mrf.mxu0
  %v1304 = vadd.f32 %v1255, %v1303
  %1305 = vdwg.mxu0
  %1306 = vmatpush.bf16.msra.mxu0 %v849
  %1307 = vmatpush.bf16.msra.mxu0 %v845
  %1308 = vmatpush.bf16.msra.mxu0 %v841
  %1309 = vmatpush.bf16.msra.mxu0 %v837
  %1310 = vmatpush.bf16.msra.mxu0 %v833
  %1311 = vmatpush.bf16.msra.mxu0 %v829
  %1312 = vmatpush.bf16.msra.mxu0 %v825
  %1313 = vmatpush.bf16.msra.mxu0 %v821
  %1314 = vmatmul.bf16.gmra.mxu0 %v310
  %v1315 = vpop.f32.mrf.mxu0
  %v1316 = vadd.f32 %v1267, %v1315
  %v1317 = vpop.f32.mrf.mxu0
  %v1318 = vadd.f32 %v1269, %v1317
  %1319 = vmatmul.bf16.gmra.mxu0 %v314
  %v1320 = vpop.f32.mrf.mxu0
  %v1321 = vadd.f32 %v1272, %v1320
  %v1322 = vpop.f32.mrf.mxu0
  %v1323 = vadd.f32 %v1274, %v1322
  %1324 = vmatmul.bf16.gmra.mxu0 %v318
  %v1325 = vpop.f32.mrf.mxu0
  %v1326 = vadd.f32 %v1277, %v1325
  %v1327 = vpop.f32.mrf.mxu0
  %v1328 = vadd.f32 %v1279, %v1327
  %1329 = vmatmul.bf16.gmra.mxu0 %v322
  %v1330 = vpop.f32.mrf.mxu0
  %v1331 = vadd.f32 %v1282, %v1330
  %v1332 = vpop.f32.mrf.mxu0
  %v1333 = vadd.f32 %v1284, %v1332
  %1334 = vmatmul.bf16.gmra.mxu0 %v326
  %v1335 = vpop.f32.mrf.mxu0
  %v1336 = vadd.f32 %v1287, %v1335
  %v1337 = vpop.f32.mrf.mxu0
  %v1338 = vadd.f32 %v1289, %v1337
  %1339 = vmatmul.bf16.gmra.mxu0 %v330
  %v1340 = vpop.f32.mrf.mxu0
  %v1341 = vadd.f32 %v1292, %v1340
  %v1342 = vpop.f32.mrf.mxu0
  %v1343 = vadd.f32 %v1294, %v1342
  %1344 = vmatmul.bf16.gmra.mxu0 %v334
  %v1345 = vpop.f32.mrf.mxu0
  %v1346 = vadd.f32 %v1297, %v1345
  %v1347 = vpop.f32.mrf.mxu0
  %v1348 = vadd.f32 %v1299, %v1347
  %1349 = vmatmul.bf16.gmra.mxu0 %v338
  %v1350 = vpop.f32.mrf.mxu0
  %v1351 = vadd.f32 %v1302, %v1350
  %v1352 = vpop.f32.mrf.mxu0
  %v1353 = vadd.f32 %v1304, %v1352
  %1354 = vdwg.mxu0
  %1355 = vmatpush.bf16.msra.mxu0 %v881
  %1356 = vmatpush.bf16.msra.mxu0 %v877
  %1357 = vmatpush.bf16.msra.mxu0 %v873
  %1358 = vmatpush.bf16.msra.mxu0 %v869
  %1359 = vmatpush.bf16.msra.mxu0 %v865
  %1360 = vmatpush.bf16.msra.mxu0 %v861
  %1361 = vmatpush.bf16.msra.mxu0 %v857
  %1362 = vmatpush.bf16.msra.mxu0 %v853
  %1363 = vmatmul.bf16.gmra.mxu0 %v311
  %v1364 = vpop.f32.mrf.mxu0
  %v1365 = vadd.f32 %v1316, %v1364
  %v1366 = vpop.f32.mrf.mxu0
  %v1367 = vadd.f32 %v1318, %v1366
  %1368 = vmatmul.bf16.gmra.mxu0 %v315
  %v1369 = vpop.f32.mrf.mxu0
  %v1370 = vadd.f32 %v1321, %v1369
  %v1371 = vpop.f32.mrf.mxu0
  %v1372 = vadd.f32 %v1323, %v1371
  %1373 = vmatmul.bf16.gmra.mxu0 %v319
  %v1374 = vpop.f32.mrf.mxu0
  %v1375 = vadd.f32 %v1326, %v1374
  %v1376 = vpop.f32.mrf.mxu0
  %v1377 = vadd.f32 %v1328, %v1376
  %1378 = vmatmul.bf16.gmra.mxu0 %v323
  %v1379 = vpop.f32.mrf.mxu0
  %v1380 = vadd.f32 %v1331, %v1379
  %v1381 = vpop.f32.mrf.mxu0
  %v1382 = vadd.f32 %v1333, %v1381
  %1383 = vmatmul.bf16.gmra.mxu0 %v327
  %v1384 = vpop.f32.mrf.mxu0
  %v1385 = vadd.f32 %v1336, %v1384
  %v1386 = vpop.f32.mrf.mxu0
  %v1387 = vadd.f32 %v1338, %v1386
  %1388 = vmatmul.bf16.gmra.mxu0 %v331
  %v1389 = vpop.f32.mrf.mxu0
  %v1390 = vadd.f32 %v1341, %v1389
  %v1391 = vpop.f32.mrf.mxu0
  %v1392 = vadd.f32 %v1343, %v1391
  %1393 = vmatmul.bf16.gmra.mxu0 %v335
  %v1394 = vpop.f32.mrf.mxu0
  %v1395 = vadd.f32 %v1346, %v1394
  %v1396 = vpop.f32.mrf.mxu0
  %v1397 = vadd.f32 %v1348, %v1396
  %1398 = vmatmul.bf16.gmra.mxu0 %v339
  %v1399 = vpop.f32.mrf.mxu0
  %v1400 = vadd.f32 %v1351, %v1399
  %v1401 = vpop.f32.mrf.mxu0
  %v1402 = vadd.f32 %v1353, %v1401
  %1403 = vdwg.mxu0
  %1404 = vmatpush.bf16.msra.mxu0 %v786
  %1405 = vmatpush.bf16.msra.mxu0 %v782
  %1406 = vmatpush.bf16.msra.mxu0 %v778
  %1407 = vmatpush.bf16.msra.mxu0 %v774
  %1408 = vmatpush.bf16.msra.mxu0 %v770
  %1409 = vmatpush.bf16.msra.mxu0 %v766
  %1410 = vmatpush.bf16.msra.mxu0 %v762
  %1411 = vmatpush.bf16.msra.mxu0 %v758
  %1412 = vmatmul.bf16.gmra.mxu0 %v308
  %v1413 = vpop.f32.mrf.mxu0
  %v1414 = vadd.f32 0.0, %v1413
  %v1415 = vpop.f32.mrf.mxu0
  %v1416 = vadd.f32 0.0, %v1415
  %1417 = vmatmul.bf16.gmra.mxu0 %v312
  %v1418 = vpop.f32.mrf.mxu0
  %v1419 = vadd.f32 0.0, %v1418
  %v1420 = vpop.f32.mrf.mxu0
  %v1421 = vadd.f32 0.0, %v1420
  %1422 = vmatmul.bf16.gmra.mxu0 %v316
  %v1423 = vpop.f32.mrf.mxu0
  %v1424 = vadd.f32 0.0, %v1423
  %v1425 = vpop.f32.mrf.mxu0
  %v1426 = vadd.f32 0.0, %v1425
  %1427 = vmatmul.bf16.gmra.mxu0 %v320
  %v1428 = vpop.f32.mrf.mxu0
  %v1429 = vadd.f32 0.0, %v1428
  %v1430 = vpop.f32.mrf.mxu0
  %v1431 = vadd.f32 0.0, %v1430
  %1432 = vmatmul.bf16.gmra.mxu0 %v324
  %v1433 = vpop.f32.mrf.mxu0
  %v1434 = vadd.f32 0.0, %v1433
  %v1435 = vpop.f32.mrf.mxu0
  %v1436 = vadd.f32 0.0, %v1435
  %1437 = vmatmul.bf16.gmra.mxu0 %v328
  %v1438 = vpop.f32.mrf.mxu0
  %v1439 = vadd.f32 0.0, %v1438
  %v1440 = vpop.f32.mrf.mxu0
  %v1441 = vadd.f32 0.0, %v1440
  %1442 = vmatmul.bf16.gmra.mxu0 %v332
  %v1443 = vpop.f32.mrf.mxu0
  %v1444 = vadd.f32 0.0, %v1443
  %v1445 = vpop.f32.mrf.mxu0
  %v1446 = vadd.f32 0.0, %v1445
  %1447 = vmatmul.bf16.gmra.mxu0 %v336
  %v1448 = vpop.f32.mrf.mxu0
  %v1449 = vadd.f32 0.0, %v1448
  %v1450 = vpop.f32.mrf.mxu0
  %v1451 = vadd.f32 0.0, %v1450
  %1452 = vdwg.mxu0
  %1453 = vmatpush.bf16.msra.mxu0 %v818
  %1454 = vmatpush.bf16.msra.mxu0 %v814
  %1455 = vmatpush.bf16.msra.mxu0 %v810
  %1456 = vmatpush.bf16.msra.mxu0 %v806
  %1457 = vmatpush.bf16.msra.mxu0 %v802
  %1458 = vmatpush.bf16.msra.mxu0 %v798
  %1459 = vmatpush.bf16.msra.mxu0 %v794
  %1460 = vmatpush.bf16.msra.mxu0 %v790
  %1461 = vmatmul.bf16.gmra.mxu0 %v309
  %v1462 = vpop.f32.mrf.mxu0
  %v1463 = vadd.f32 %v1414, %v1462
  %v1464 = vpop.f32.mrf.mxu0
  %v1465 = vadd.f32 %v1416, %v1464
  %1466 = vmatmul.bf16.gmra.mxu0 %v313
  %v1467 = vpop.f32.mrf.mxu0
  %v1468 = vadd.f32 %v1419, %v1467
  %v1469 = vpop.f32.mrf.mxu0
  %v1470 = vadd.f32 %v1421, %v1469
  %1471 = vmatmul.bf16.gmra.mxu0 %v317
  %v1472 = vpop.f32.mrf.mxu0
  %v1473 = vadd.f32 %v1424, %v1472
  %v1474 = vpop.f32.mrf.mxu0
  %v1475 = vadd.f32 %v1426, %v1474
  %1476 = vmatmul.bf16.gmra.mxu0 %v321
  %v1477 = vpop.f32.mrf.mxu0
  %v1478 = vadd.f32 %v1429, %v1477
  %v1479 = vpop.f32.mrf.mxu0
  %v1480 = vadd.f32 %v1431, %v1479
  %1481 = vmatmul.bf16.gmra.mxu0 %v325
  %v1482 = vpop.f32.mrf.mxu0
  %v1483 = vadd.f32 %v1434, %v1482
  %v1484 = vpop.f32.mrf.mxu0
  %v1485 = vadd.f32 %v1436, %v1484
  %1486 = vmatmul.bf16.gmra.mxu0 %v329
  %v1487 = vpop.f32.mrf.mxu0
  %v1488 = vadd.f32 %v1439, %v1487
  %v1489 = vpop.f32.mrf.mxu0
  %v1490 = vadd.f32 %v1441, %v1489
  %1491 = vmatmul.bf16.gmra.mxu0 %v333
  %v1492 = vpop.f32.mrf.mxu0
  %v1493 = vadd.f32 %v1444, %v1492
  %v1494 = vpop.f32.mrf.mxu0
  %v1495 = vadd.f32 %v1446, %v1494
  %1496 = vmatmul.bf16.gmra.mxu0 %v337
  %v1497 = vpop.f32.mrf.mxu0
  %v1498 = vadd.f32 %v1449, %v1497
  %v1499 = vpop.f32.mrf.mxu0
  %v1500 = vadd.f32 %v1451, %v1499
  %1501 = vdwg.mxu0
  %1502 = vmatpush.bf16.msra.mxu0 %v850
  %1503 = vmatpush.bf16.msra.mxu0 %v846
  %1504 = vmatpush.bf16.msra.mxu0 %v842
  %1505 = vmatpush.bf16.msra.mxu0 %v838
  %1506 = vmatpush.bf16.msra.mxu0 %v834
  %1507 = vmatpush.bf16.msra.mxu0 %v830
  %1508 = vmatpush.bf16.msra.mxu0 %v826
  %1509 = vmatpush.bf16.msra.mxu0 %v822
  %1510 = vmatmul.bf16.gmra.mxu0 %v310
  %v1511 = vpop.f32.mrf.mxu0
  %v1512 = vadd.f32 %v1463, %v1511
  %v1513 = vpop.f32.mrf.mxu0
  %v1514 = vadd.f32 %v1465, %v1513
  %1515 = vmatmul.bf16.gmra.mxu0 %v314
  %v1516 = vpop.f32.mrf.mxu0
  %v1517 = vadd.f32 %v1468, %v1516
  %v1518 = vpop.f32.mrf.mxu0
  %v1519 = vadd.f32 %v1470, %v1518
  %1520 = vmatmul.bf16.gmra.mxu0 %v318
  %v1521 = vpop.f32.mrf.mxu0
  %v1522 = vadd.f32 %v1473, %v1521
  %v1523 = vpop.f32.mrf.mxu0
  %v1524 = vadd.f32 %v1475, %v1523
  %1525 = vmatmul.bf16.gmra.mxu0 %v322
  %v1526 = vpop.f32.mrf.mxu0
  %v1527 = vadd.f32 %v1478, %v1526
  %v1528 = vpop.f32.mrf.mxu0
  %v1529 = vadd.f32 %v1480, %v1528
  %1530 = vmatmul.bf16.gmra.mxu0 %v326
  %v1531 = vpop.f32.mrf.mxu0
  %v1532 = vadd.f32 %v1483, %v1531
  %v1533 = vpop.f32.mrf.mxu0
  %v1534 = vadd.f32 %v1485, %v1533
  %1535 = vmatmul.bf16.gmra.mxu0 %v330
  %v1536 = vpop.f32.mrf.mxu0
  %v1537 = vadd.f32 %v1488, %v1536
  %v1538 = vpop.f32.mrf.mxu0
  %v1539 = vadd.f32 %v1490, %v1538
  %1540 = vmatmul.bf16.gmra.mxu0 %v334
  %v1541 = vpop.f32.mrf.mxu0
  %v1542 = vadd.f32 %v1493, %v1541
  %v1543 = vpop.f32.mrf.mxu0
  %v1544 = vadd.f32 %v1495, %v1543
  %1545 = vmatmul.bf16.gmra.mxu0 %v338
  %v1546 = vpop.f32.mrf.mxu0
  %v1547 = vadd.f32 %v1498, %v1546
  %v1548 = vpop.f32.mrf.mxu0
  %v1549 = vadd.f32 %v1500, %v1548
  %1550 = vdwg.mxu0
  %1551 = vmatpush.bf16.msra.mxu0 %v882
  %1552 = vmatpush.bf16.msra.mxu0 %v878
  %1553 = vmatpush.bf16.msra.mxu0 %v874
  %1554 = vmatpush.bf16.msra.mxu0 %v870
  %1555 = vmatpush.bf16.msra.mxu0 %v866
  %1556 = vmatpush.bf16.msra.mxu0 %v862
  %1557 = vmatpush.bf16.msra.mxu0 %v858
  %1558 = vmatpush.bf16.msra.mxu0 %v854
  %1559 = vmatmul.bf16.gmra.mxu0 %v311
  %v1560 = vpop.f32.mrf.mxu0
  %v1561 = vadd.f32 %v1512, %v1560
  %v1562 = vpop.f32.mrf.mxu0
  %v1563 = vadd.f32 %v1514, %v1562
  %1564 = vmatmul.bf16.gmra.mxu0 %v315
  %v1565 = vpop.f32.mrf.mxu0
  %v1566 = vadd.f32 %v1517, %v1565
  %v1567 = vpop.f32.mrf.mxu0
  %v1568 = vadd.f32 %v1519, %v1567
  %1569 = vmatmul.bf16.gmra.mxu0 %v319
  %v1570 = vpop.f32.mrf.mxu0
  %v1571 = vadd.f32 %v1522, %v1570
  %v1572 = vpop.f32.mrf.mxu0
  %v1573 = vadd.f32 %v1524, %v1572
  %1574 = vmatmul.bf16.gmra.mxu0 %v323
  %v1575 = vpop.f32.mrf.mxu0
  %v1576 = vadd.f32 %v1527, %v1575
  %v1577 = vpop.f32.mrf.mxu0
  %v1578 = vadd.f32 %v1529, %v1577
  %1579 = vmatmul.bf16.gmra.mxu0 %v327
  %v1580 = vpop.f32.mrf.mxu0
  %v1581 = vadd.f32 %v1532, %v1580
  %v1582 = vpop.f32.mrf.mxu0
  %v1583 = vadd.f32 %v1534, %v1582
  %1584 = vmatmul.bf16.gmra.mxu0 %v331
  %v1585 = vpop.f32.mrf.mxu0
  %v1586 = vadd.f32 %v1537, %v1585
  %v1587 = vpop.f32.mrf.mxu0
  %v1588 = vadd.f32 %v1539, %v1587
  %1589 = vmatmul.bf16.gmra.mxu0 %v335
  %v1590 = vpop.f32.mrf.mxu0
  %v1591 = vadd.f32 %v1542, %v1590
  %v1592 = vpop.f32.mrf.mxu0
  %v1593 = vadd.f32 %v1544, %v1592
  %1594 = vmatmul.bf16.gmra.mxu0 %v339
  %v1595 = vpop.f32.mrf.mxu0
  %v1596 = vadd.f32 %v1547, %v1595
  %v1597 = vpop.f32.mrf.mxu0
  %v1598 = vadd.f32 %v1549, %v1597
  %1599 = vdwg.mxu0
  %1600 = vmatpush.bf16.msra.mxu0 %v787
  %1601 = vmatpush.bf16.msra.mxu0 %v783
  %1602 = vmatpush.bf16.msra.mxu0 %v779
  %1603 = vmatpush.bf16.msra.mxu0 %v775
  %1604 = vmatpush.bf16.msra.mxu0 %v771
  %1605 = vmatpush.bf16.msra.mxu0 %v767
  %1606 = vmatpush.bf16.msra.mxu0 %v763
  %1607 = vmatpush.bf16.msra.mxu0 %v759
  %1608 = vmatmul.bf16.gmra.mxu0 %v308
  %v1609 = vpop.f32.mrf.mxu0
  %v1610 = vadd.f32 0.0, %v1609
  %v1611 = vpop.f32.mrf.mxu0
  %v1612 = vadd.f32 0.0, %v1611
  %1613 = vmatmul.bf16.gmra.mxu0 %v312
  %v1614 = vpop.f32.mrf.mxu0
  %v1615 = vadd.f32 0.0, %v1614
  %v1616 = vpop.f32.mrf.mxu0
  %v1617 = vadd.f32 0.0, %v1616
  %1618 = vmatmul.bf16.gmra.mxu0 %v316
  %v1619 = vpop.f32.mrf.mxu0
  %v1620 = vadd.f32 0.0, %v1619
  %v1621 = vpop.f32.mrf.mxu0
  %v1622 = vadd.f32 0.0, %v1621
  %1623 = vmatmul.bf16.gmra.mxu0 %v320
  %v1624 = vpop.f32.mrf.mxu0
  %v1625 = vadd.f32 0.0, %v1624
  %v1626 = vpop.f32.mrf.mxu0
  %v1627 = vadd.f32 0.0, %v1626
  %1628 = vmatmul.bf16.gmra.mxu0 %v324
  %v1629 = vpop.f32.mrf.mxu0
  %v1630 = vadd.f32 0.0, %v1629
  %v1631 = vpop.f32.mrf.mxu0
  %v1632 = vadd.f32 0.0, %v1631
  %1633 = vmatmul.bf16.gmra.mxu0 %v328
  %v1634 = vpop.f32.mrf.mxu0
  %v1635 = vadd.f32 0.0, %v1634
  %v1636 = vpop.f32.mrf.mxu0
  %v1637 = vadd.f32 0.0, %v1636
  %1638 = vmatmul.bf16.gmra.mxu0 %v332
  %v1639 = vpop.f32.mrf.mxu0
  %v1640 = vadd.f32 0.0, %v1639
  %v1641 = vpop.f32.mrf.mxu0
  %v1642 = vadd.f32 0.0, %v1641
  %1643 = vmatmul.bf16.gmra.mxu0 %v336
  %v1644 = vpop.f32.mrf.mxu0
  %v1645 = vadd.f32 0.0, %v1644
  %v1646 = vpop.f32.mrf.mxu0
  %v1647 = vadd.f32 0.0, %v1646
  %1648 = vdwg.mxu0
  %1649 = vmatpush.bf16.msra.mxu0 %v819
  %1650 = vmatpush.bf16.msra.mxu0 %v815
  %1651 = vmatpush.bf16.msra.mxu0 %v811
  %1652 = vmatpush.bf16.msra.mxu0 %v807
  %1653 = vmatpush.bf16.msra.mxu0 %v803
  %1654 = vmatpush.bf16.msra.mxu0 %v799
  %1655 = vmatpush.bf16.msra.mxu0 %v795
  %1656 = vmatpush.bf16.msra.mxu0 %v791
  %1657 = vmatmul.bf16.gmra.mxu0 %v309
  %v1658 = vpop.f32.mrf.mxu0
  %v1659 = vadd.f32 %v1610, %v1658
  %v1660 = vpop.f32.mrf.mxu0
  %v1661 = vadd.f32 %v1612, %v1660
  %1662 = vmatmul.bf16.gmra.mxu0 %v313
  %v1663 = vpop.f32.mrf.mxu0
  %v1664 = vadd.f32 %v1615, %v1663
  %v1665 = vpop.f32.mrf.mxu0
  %v1666 = vadd.f32 %v1617, %v1665
  %1667 = vmatmul.bf16.gmra.mxu0 %v317
  %v1668 = vpop.f32.mrf.mxu0
  %v1669 = vadd.f32 %v1620, %v1668
  %v1670 = vpop.f32.mrf.mxu0
  %v1671 = vadd.f32 %v1622, %v1670
  %1672 = vmatmul.bf16.gmra.mxu0 %v321
  %v1673 = vpop.f32.mrf.mxu0
  %v1674 = vadd.f32 %v1625, %v1673
  %v1675 = vpop.f32.mrf.mxu0
  %v1676 = vadd.f32 %v1627, %v1675
  %1677 = vmatmul.bf16.gmra.mxu0 %v325
  %v1678 = vpop.f32.mrf.mxu0
  %v1679 = vadd.f32 %v1630, %v1678
  %v1680 = vpop.f32.mrf.mxu0
  %v1681 = vadd.f32 %v1632, %v1680
  %1682 = vmatmul.bf16.gmra.mxu0 %v329
  %v1683 = vpop.f32.mrf.mxu0
  %v1684 = vadd.f32 %v1635, %v1683
  %v1685 = vpop.f32.mrf.mxu0
  %v1686 = vadd.f32 %v1637, %v1685
  %1687 = vmatmul.bf16.gmra.mxu0 %v333
  %v1688 = vpop.f32.mrf.mxu0
  %v1689 = vadd.f32 %v1640, %v1688
  %v1690 = vpop.f32.mrf.mxu0
  %v1691 = vadd.f32 %v1642, %v1690
  %1692 = vmatmul.bf16.gmra.mxu0 %v337
  %v1693 = vpop.f32.mrf.mxu0
  %v1694 = vadd.f32 %v1645, %v1693
  %v1695 = vpop.f32.mrf.mxu0
  %v1696 = vadd.f32 %v1647, %v1695
  %1697 = vdwg.mxu0
  %1698 = vmatpush.bf16.msra.mxu0 %v851
  %1699 = vmatpush.bf16.msra.mxu0 %v847
  %1700 = vmatpush.bf16.msra.mxu0 %v843
  %1701 = vmatpush.bf16.msra.mxu0 %v839
  %1702 = vmatpush.bf16.msra.mxu0 %v835
  %1703 = vmatpush.bf16.msra.mxu0 %v831
  %1704 = vmatpush.bf16.msra.mxu0 %v827
  %1705 = vmatpush.bf16.msra.mxu0 %v823
  %1706 = vmatmul.bf16.gmra.mxu0 %v310
  %v1707 = vpop.f32.mrf.mxu0
  %v1708 = vadd.f32 %v1659, %v1707
  %v1709 = vpop.f32.mrf.mxu0
  %v1710 = vadd.f32 %v1661, %v1709
  %1711 = vmatmul.bf16.gmra.mxu0 %v314
  %v1712 = vpop.f32.mrf.mxu0
  %v1713 = vadd.f32 %v1664, %v1712
  %v1714 = vpop.f32.mrf.mxu0
  %v1715 = vadd.f32 %v1666, %v1714
  %1716 = vmatmul.bf16.gmra.mxu0 %v318
  %v1717 = vpop.f32.mrf.mxu0
  %v1718 = vadd.f32 %v1669, %v1717
  %v1719 = vpop.f32.mrf.mxu0
  %v1720 = vadd.f32 %v1671, %v1719
  %1721 = vmatmul.bf16.gmra.mxu0 %v322
  %v1722 = vpop.f32.mrf.mxu0
  %v1723 = vadd.f32 %v1674, %v1722
  %v1724 = vpop.f32.mrf.mxu0
  %v1725 = vadd.f32 %v1676, %v1724
  %1726 = vmatmul.bf16.gmra.mxu0 %v326
  %v1727 = vpop.f32.mrf.mxu0
  %v1728 = vadd.f32 %v1679, %v1727
  %v1729 = vpop.f32.mrf.mxu0
  %v1730 = vadd.f32 %v1681, %v1729
  %1731 = vmatmul.bf16.gmra.mxu0 %v330
  %v1732 = vpop.f32.mrf.mxu0
  %v1733 = vadd.f32 %v1684, %v1732
  %v1734 = vpop.f32.mrf.mxu0
  %v1735 = vadd.f32 %v1686, %v1734
  %1736 = vmatmul.bf16.gmra.mxu0 %v334
  %v1737 = vpop.f32.mrf.mxu0
  %v1738 = vadd.f32 %v1689, %v1737
  %v1739 = vpop.f32.mrf.mxu0
  %v1740 = vadd.f32 %v1691, %v1739
  %1741 = vmatmul.bf16.gmra.mxu0 %v338
  %v1742 = vpop.f32.mrf.mxu0
  %v1743 = vadd.f32 %v1694, %v1742
  %v1744 = vpop.f32.mrf.mxu0
  %v1745 = vadd.f32 %v1696, %v1744
  %1746 = vdwg.mxu0
  %1747 = vmatpush.bf16.msra.mxu0 %v883
  %1748 = vmatpush.bf16.msra.mxu0 %v879
  %1749 = vmatpush.bf16.msra.mxu0 %v875
  %1750 = vmatpush.bf16.msra.mxu0 %v871
  %1751 = vmatpush.bf16.msra.mxu0 %v867
  %1752 = vmatpush.bf16.msra.mxu0 %v863
  %1753 = vmatpush.bf16.msra.mxu0 %v859
  %1754 = vmatpush.bf16.msra.mxu0 %v855
  %1755 = vmatmul.bf16.gmra.mxu0 %v311
  %v1756 = vpop.f32.mrf.mxu0
  %v1757 = vadd.f32 %v1708, %v1756
  %v1758 = vpop.f32.mrf.mxu0
  %v1759 = vadd.f32 %v1710, %v1758
  %1760 = vmatmul.bf16.gmra.mxu0 %v315
  %v1761 = vpop.f32.mrf.mxu0
  %v1762 = vadd.f32 %v1713, %v1761
  %v1763 = vpop.f32.mrf.mxu0
  %v1764 = vadd.f32 %v1715, %v1763
  %1765 = vmatmul.bf16.gmra.mxu0 %v319
  %v1766 = vpop.f32.mrf.mxu0
  %v1767 = vadd.f32 %v1718, %v1766
  %v1768 = vpop.f32.mrf.mxu0
  %v1769 = vadd.f32 %v1720, %v1768
  %1770 = vmatmul.bf16.gmra.mxu0 %v323
  %v1771 = vpop.f32.mrf.mxu0
  %v1772 = vadd.f32 %v1723, %v1771
  %v1773 = vpop.f32.mrf.mxu0
  %v1774 = vadd.f32 %v1725, %v1773
  %1775 = vmatmul.bf16.gmra.mxu0 %v327
  %v1776 = vpop.f32.mrf.mxu0
  %v1777 = vadd.f32 %v1728, %v1776
  %v1778 = vpop.f32.mrf.mxu0
  %v1779 = vadd.f32 %v1730, %v1778
  %1780 = vmatmul.bf16.gmra.mxu0 %v331
  %v1781 = vpop.f32.mrf.mxu0
  %v1782 = vadd.f32 %v1733, %v1781
  %v1783 = vpop.f32.mrf.mxu0
  %v1784 = vadd.f32 %v1735, %v1783
  %1785 = vmatmul.bf16.gmra.mxu0 %v335
  %v1786 = vpop.f32.mrf.mxu0
  %v1787 = vadd.f32 %v1738, %v1786
  %v1788 = vpop.f32.mrf.mxu0
  %v1789 = vadd.f32 %v1740, %v1788
  %1790 = vmatmul.bf16.gmra.mxu0 %v339
  %v1791 = vpop.f32.mrf.mxu0
  %v1792 = vadd.f32 %v1743, %v1791
  %v1793 = vpop.f32.mrf.mxu0
  %v1794 = vadd.f32 %v1745, %v1793
  %1795 = vdwg.mxu0
  %v1796 = vld [vmem:[%s2] sm:$0xff]
  %v1797 = vld [vmem:[%s2 + $0x8] sm:$0xff]
  %v1798 = vld [vmem:[%s2 + $0x10] sm:$0xff]
  %v1799 = vld [vmem:[%s2 + $0x18] sm:$0xff]
  %v1800 = vld [vmem:[%s2 + $0x20] sm:$0xff]
  %v1801 = vld [vmem:[%s2 + $0x28] sm:$0xff]
  %v1802 = vld [vmem:[%s2 + $0x30] sm:$0xff]
  %v1803 = vld [vmem:[%s2 + $0x38] sm:$0xff]
  %v1804 = vld [vmem:[%s2 + $0x40] sm:$0xff]
  %v1805 = vld [vmem:[%s2 + $0x48] sm:$0xff]
  %v1806 = vld [vmem:[%s2 + $0x50] sm:$0xff]
  %v1807 = vld [vmem:[%s2 + $0x58] sm:$0xff]
  %v1808 = vld [vmem:[%s2 + $0x60] sm:$0xff]
  %v1809 = vld [vmem:[%s2 + $0x68] sm:$0xff]
  %v1810 = vld [vmem:[%s2 + $0x70] sm:$0xff]
  %v1811 = vld [vmem:[%s2 + $0x78] sm:$0xff]
  %v1812 = vld [vmem:[%s2 + $0x80] sm:$0xff]
  %v1813 = vld [vmem:[%s2 + $0x88] sm:$0xff]
  %v1814 = vld [vmem:[%s2 + $0x90] sm:$0xff]
  %v1815 = vld [vmem:[%s2 + $0x98] sm:$0xff]
  %v1816 = vld [vmem:[%s2 + $0xa0] sm:$0xff]
  %v1817 = vld [vmem:[%s2 + $0xa8] sm:$0xff]
  %v1818 = vld [vmem:[%s2 + $0xb0] sm:$0xff]
  %v1819 = vld [vmem:[%s2 + $0xb8] sm:$0xff]
  %v1820 = vld [vmem:[%s2 + $0xc0] sm:$0xff]
  %v1821 = vld [vmem:[%s2 + $0xc8] sm:$0xff]
  %v1822 = vld [vmem:[%s2 + $0xd0] sm:$0xff]
  %v1823 = vld [vmem:[%s2 + $0xd8] sm:$0xff]
  %v1824 = vld [vmem:[%s2 + $0xe0] sm:$0xff]
  %v1825 = vld [vmem:[%s2 + $0xe8] sm:$0xff]
  %v1826 = vld [vmem:[%s2 + $0xf0] sm:$0xff]
  %v1827 = vld [vmem:[%s2 + $0xf8] sm:$0xff]
  %v1828 = vld [vmem:[%s2 + $0x100] sm:$0xff]
  %v1829 = vld [vmem:[%s2 + $0x108] sm:$0xff]
  %v1830 = vld [vmem:[%s2 + $0x110] sm:$0xff]
  %v1831 = vld [vmem:[%s2 + $0x118] sm:$0xff]
  %v1832 = vld [vmem:[%s2 + $0x120] sm:$0xff]
  %v1833 = vld [vmem:[%s2 + $0x128] sm:$0xff]
  %v1834 = vld [vmem:[%s2 + $0x130] sm:$0xff]
  %v1835 = vld [vmem:[%s2 + $0x138] sm:$0xff]
  %v1836 = vld [vmem:[%s2 + $0x140] sm:$0xff]
  %v1837 = vld [vmem:[%s2 + $0x148] sm:$0xff]
  %v1838 = vld [vmem:[%s2 + $0x150] sm:$0xff]
  %v1839 = vld [vmem:[%s2 + $0x158] sm:$0xff]
  %v1840 = vld [vmem:[%s2 + $0x160] sm:$0xff]
  %v1841 = vld [vmem:[%s2 + $0x168] sm:$0xff]
  %v1842 = vld [vmem:[%s2 + $0x170] sm:$0xff]
  %v1843 = vld [vmem:[%s2 + $0x178] sm:$0xff]
  %v1844 = vld [vmem:[%s2 + $0x180] sm:$0xff]
  %v1845 = vld [vmem:[%s2 + $0x188] sm:$0xff]
  %v1846 = vld [vmem:[%s2 + $0x190] sm:$0xff]
  %v1847 = vld [vmem:[%s2 + $0x198] sm:$0xff]
  %v1848 = vld [vmem:[%s2 + $0x1a0] sm:$0xff]
  %v1849 = vld [vmem:[%s2 + $0x1a8] sm:$0xff]
  %v1850 = vld [vmem:[%s2 + $0x1b0] sm:$0xff]
  %v1851 = vld [vmem:[%s2 + $0x1b8] sm:$0xff]
  %v1852 = vld [vmem:[%s2 + $0x1c0] sm:$0xff]
  %v1853 = vld [vmem:[%s2 + $0x1c8] sm:$0xff]
  %v1854 = vld [vmem:[%s2 + $0x1d0] sm:$0xff]
  %v1855 = vld [vmem:[%s2 + $0x1d8] sm:$0xff]
  %v1856 = vld [vmem:[%s2 + $0x1e0] sm:$0xff]
  %v1857 = vld [vmem:[%s2 + $0x1e8] sm:$0xff]
  %v1858 = vld [vmem:[%s2 + $0x1f0] sm:$0xff]
  %v1859 = vld [vmem:[%s2 + $0x1f8] sm:$0xff]
  %v1860 = vld [vmem:[%s2 + $0x200] sm:$0xff]
  %v1861 = vld [vmem:[%s2 + $0x208] sm:$0xff]
  %v1862 = vld [vmem:[%s2 + $0x210] sm:$0xff]
  %v1863 = vld [vmem:[%s2 + $0x218] sm:$0xff]
  %v1864 = vld [vmem:[%s2 + $0x220] sm:$0xff]
  %v1865 = vld [vmem:[%s2 + $0x228] sm:$0xff]
  %v1866 = vld [vmem:[%s2 + $0x230] sm:$0xff]
  %v1867 = vld [vmem:[%s2 + $0x238] sm:$0xff]
  %v1868 = vld [vmem:[%s2 + $0x240] sm:$0xff]
  %v1869 = vld [vmem:[%s2 + $0x248] sm:$0xff]
  %v1870 = vld [vmem:[%s2 + $0x250] sm:$0xff]
  %v1871 = vld [vmem:[%s2 + $0x258] sm:$0xff]
  %v1872 = vld [vmem:[%s2 + $0x260] sm:$0xff]
  %v1873 = vld [vmem:[%s2 + $0x268] sm:$0xff]
  %v1874 = vld [vmem:[%s2 + $0x270] sm:$0xff]
  %v1875 = vld [vmem:[%s2 + $0x278] sm:$0xff]
  %v1876 = vld [vmem:[%s2 + $0x280] sm:$0xff]
  %v1877 = vld [vmem:[%s2 + $0x288] sm:$0xff]
  %v1878 = vld [vmem:[%s2 + $0x290] sm:$0xff]
  %v1879 = vld [vmem:[%s2 + $0x298] sm:$0xff]
  %v1880 = vld [vmem:[%s2 + $0x2a0] sm:$0xff]
  %v1881 = vld [vmem:[%s2 + $0x2a8] sm:$0xff]
  %v1882 = vld [vmem:[%s2 + $0x2b0] sm:$0xff]
  %v1883 = vld [vmem:[%s2 + $0x2b8] sm:$0xff]
  %v1884 = vld [vmem:[%s2 + $0x2c0] sm:$0xff]
  %v1885 = vld [vmem:[%s2 + $0x2c8] sm:$0xff]
  %v1886 = vld [vmem:[%s2 + $0x2d0] sm:$0xff]
  %v1887 = vld [vmem:[%s2 + $0x2d8] sm:$0xff]
  %v1888 = vld [vmem:[%s2 + $0x2e0] sm:$0xff]
  %v1889 = vld [vmem:[%s2 + $0x2e8] sm:$0xff]
  %v1890 = vld [vmem:[%s2 + $0x2f0] sm:$0xff]
  %v1891 = vld [vmem:[%s2 + $0x2f8] sm:$0xff]
  %v1892 = vld [vmem:[%s2 + $0x300] sm:$0xff]
  %v1893 = vld [vmem:[%s2 + $0x308] sm:$0xff]
  %v1894 = vld [vmem:[%s2 + $0x310] sm:$0xff]
  %v1895 = vld [vmem:[%s2 + $0x318] sm:$0xff]
  %v1896 = vld [vmem:[%s2 + $0x320] sm:$0xff]
  %v1897 = vld [vmem:[%s2 + $0x328] sm:$0xff]
  %v1898 = vld [vmem:[%s2 + $0x330] sm:$0xff]
  %v1899 = vld [vmem:[%s2 + $0x338] sm:$0xff]
  %v1900 = vld [vmem:[%s2 + $0x340] sm:$0xff]
  %v1901 = vld [vmem:[%s2 + $0x348] sm:$0xff]
  %v1902 = vld [vmem:[%s2 + $0x350] sm:$0xff]
  %v1903 = vld [vmem:[%s2 + $0x358] sm:$0xff]
  %v1904 = vld [vmem:[%s2 + $0x360] sm:$0xff]
  %v1905 = vld [vmem:[%s2 + $0x368] sm:$0xff]
  %v1906 = vld [vmem:[%s2 + $0x370] sm:$0xff]
  %v1907 = vld [vmem:[%s2 + $0x378] sm:$0xff]
  %v1908 = vld [vmem:[%s2 + $0x380] sm:$0xff]
  %v1909 = vld [vmem:[%s2 + $0x388] sm:$0xff]
  %v1910 = vld [vmem:[%s2 + $0x390] sm:$0xff]
  %v1911 = vld [vmem:[%s2 + $0x398] sm:$0xff]
  %v1912 = vld [vmem:[%s2 + $0x3a0] sm:$0xff]
  %v1913 = vld [vmem:[%s2 + $0x3a8] sm:$0xff]
  %v1914 = vld [vmem:[%s2 + $0x3b0] sm:$0xff]
  %v1915 = vld [vmem:[%s2 + $0x3b8] sm:$0xff]
  %v1916 = vld [vmem:[%s2 + $0x3c0] sm:$0xff]
  %v1917 = vld [vmem:[%s2 + $0x3c8] sm:$0xff]
  %v1918 = vld [vmem:[%s2 + $0x3d0] sm:$0xff]
  %v1919 = vld [vmem:[%s2 + $0x3d8] sm:$0xff]
  %v1920 = vld [vmem:[%s2 + $0x3e0] sm:$0xff]
  %v1921 = vld [vmem:[%s2 + $0x3e8] sm:$0xff]
  %v1922 = vld [vmem:[%s2 + $0x3f0] sm:$0xff]
  %v1923 = vld [vmem:[%s2 + $0x3f8] sm:$0xff]
  %v1956 = vunpack.c.l.b16 %v52
  %v1957 = vunpack.c.h.b16 %v52
  %v1958 = vunpack.c.l.b16 %v53
  %v1959 = vunpack.c.h.b16 %v53
  %v1960 = vunpack.c.l.b16 %v54
  %v1961 = vunpack.c.h.b16 %v54
  %v1962 = vunpack.c.l.b16 %v55
  %v1963 = vunpack.c.h.b16 %v55
  %v1964 = vunpack.c.l.b16 %v56
  %v1965 = vunpack.c.h.b16 %v56
  %v1966 = vunpack.c.l.b16 %v57
  %v1967 = vunpack.c.h.b16 %v57
  %v1968 = vunpack.c.l.b16 %v58
  %v1969 = vunpack.c.h.b16 %v58
  %v1970 = vunpack.c.l.b16 %v59
  %v1971 = vunpack.c.h.b16 %v59
  %v1972 = vunpack.c.l.b16 %v60
  %v1973 = vunpack.c.h.b16 %v60
  %v1974 = vunpack.c.l.b16 %v61
  %v1975 = vunpack.c.h.b16 %v61
  %v1976 = vunpack.c.l.b16 %v62
  %v1977 = vunpack.c.h.b16 %v62
  %v1978 = vunpack.c.l.b16 %v63
  %v1979 = vunpack.c.h.b16 %v63
  %v1980 = vunpack.c.l.b16 %v64
  %v1981 = vunpack.c.h.b16 %v64
  %v1982 = vunpack.c.l.b16 %v65
  %v1983 = vunpack.c.h.b16 %v65
  %v1984 = vunpack.c.l.b16 %v66
  %v1985 = vunpack.c.h.b16 %v66
  %v1986 = vunpack.c.l.b16 %v67
  %v1987 = vunpack.c.h.b16 %v67
  %v1988 = vunpack.c.l.b16 %v68
  %v1989 = vunpack.c.h.b16 %v68
  %v1990 = vunpack.c.l.b16 %v69
  %v1991 = vunpack.c.h.b16 %v69
  %v1992 = vunpack.c.l.b16 %v70
  %v1993 = vunpack.c.h.b16 %v70
  %v1994 = vunpack.c.l.b16 %v71
  %v1995 = vunpack.c.h.b16 %v71
  %v1996 = vunpack.c.l.b16 %v72
  %v1997 = vunpack.c.h.b16 %v72
  %v1998 = vunpack.c.l.b16 %v73
  %v1999 = vunpack.c.h.b16 %v73
  %v2000 = vunpack.c.l.b16 %v74
  %v2001 = vunpack.c.h.b16 %v74
  %v2002 = vunpack.c.l.b16 %v75
  %v2003 = vunpack.c.h.b16 %v75
  %v2004 = vunpack.c.l.b16 %v76
  %v2005 = vunpack.c.h.b16 %v76
  %v2006 = vunpack.c.l.b16 %v77
  %v2007 = vunpack.c.h.b16 %v77
  %v2008 = vunpack.c.l.b16 %v78
  %v2009 = vunpack.c.h.b16 %v78
  %v2010 = vunpack.c.l.b16 %v79
  %v2011 = vunpack.c.h.b16 %v79
  %v2012 = vunpack.c.l.b16 %v80
  %v2013 = vunpack.c.h.b16 %v80
  %v2014 = vunpack.c.l.b16 %v81
  %v2015 = vunpack.c.h.b16 %v81
  %v2016 = vunpack.c.l.b16 %v82
  %v2017 = vunpack.c.h.b16 %v82
  %v2018 = vunpack.c.l.b16 %v83
  %v2019 = vunpack.c.h.b16 %v83
  %v2020 = vpack.c.b16 %v1960, %v1956
  %v2021 = vpack.c.b16 %v1961, %v1957
  %v2022 = vpack.c.b16 %v1962, %v1958
  %v2023 = vpack.c.b16 %v1963, %v1959
  %v2024 = vpack.c.b16 %v1968, %v1964
  %v2025 = vpack.c.b16 %v1969, %v1965
  %v2026 = vpack.c.b16 %v1970, %v1966
  %v2027 = vpack.c.b16 %v1971, %v1967
  %v2028 = vpack.c.b16 %v1976, %v1972
  %v2029 = vpack.c.b16 %v1977, %v1973
  %v2030 = vpack.c.b16 %v1978, %v1974
  %v2031 = vpack.c.b16 %v1979, %v1975
  %v2032 = vpack.c.b16 %v1984, %v1980
  %v2033 = vpack.c.b16 %v1985, %v1981
  %v2034 = vpack.c.b16 %v1986, %v1982
  %v2035 = vpack.c.b16 %v1987, %v1983
  %v2036 = vpack.c.b16 %v1992, %v1988
  %v2037 = vpack.c.b16 %v1993, %v1989
  %v2038 = vpack.c.b16 %v1994, %v1990
  %v2039 = vpack.c.b16 %v1995, %v1991
  %v2040 = vpack.c.b16 %v2000, %v1996
  %v2041 = vpack.c.b16 %v2001, %v1997
  %v2042 = vpack.c.b16 %v2002, %v1998
  %v2043 = vpack.c.b16 %v2003, %v1999
  %v2044 = vpack.c.b16 %v2008, %v2004
  %v2045 = vpack.c.b16 %v2009, %v2005
  %v2046 = vpack.c.b16 %v2010, %v2006
  %v2047 = vpack.c.b16 %v2011, %v2007
  %v2048 = vpack.c.b16 %v2016, %v2012
  %v2049 = vpack.c.b16 %v2017, %v2013
  %v2050 = vpack.c.b16 %v2018, %v2014
  %v2051 = vpack.c.b16 %v2019, %v2015
  %v2212 = vunpack.c.l.b16 %v1796
  %v2213 = vunpack.c.h.b16 %v1796
  %v2214 = vunpack.c.l.b16 %v1797
  %v2215 = vunpack.c.h.b16 %v1797
  %v2216 = vunpack.c.l.b16 %v1798
  %v2217 = vunpack.c.h.b16 %v1798
  %v2218 = vunpack.c.l.b16 %v1799
  %v2219 = vunpack.c.h.b16 %v1799
  %v2220 = vunpack.c.l.b16 %v1800
  %v2221 = vunpack.c.h.b16 %v1800
  %v2222 = vunpack.c.l.b16 %v1801
  %v2223 = vunpack.c.h.b16 %v1801
  %v2224 = vunpack.c.l.b16 %v1802
  %v2225 = vunpack.c.h.b16 %v1802
  %v2226 = vunpack.c.l.b16 %v1803
  %v2227 = vunpack.c.h.b16 %v1803
  %v2228 = vunpack.c.l.b16 %v1804
  %v2229 = vunpack.c.h.b16 %v1804
  %v2230 = vunpack.c.l.b16 %v1805
  %v2231 = vunpack.c.h.b16 %v1805
  %v2232 = vunpack.c.l.b16 %v1806
  %v2233 = vunpack.c.h.b16 %v1806
  %v2234 = vunpack.c.l.b16 %v1807
  %v2235 = vunpack.c.h.b16 %v1807
  %v2236 = vunpack.c.l.b16 %v1808
  %v2237 = vunpack.c.h.b16 %v1808
  %v2238 = vunpack.c.l.b16 %v1809
  %v2239 = vunpack.c.h.b16 %v1809
  %v2240 = vunpack.c.l.b16 %v1810
  %v2241 = vunpack.c.h.b16 %v1810
  %v2242 = vunpack.c.l.b16 %v1811
  %v2243 = vunpack.c.h.b16 %v1811
  %v2244 = vunpack.c.l.b16 %v1812
  %v2245 = vunpack.c.h.b16 %v1812
  %v2246 = vunpack.c.l.b16 %v1813
  %v2247 = vunpack.c.h.b16 %v1813
  %v2248 = vunpack.c.l.b16 %v1814
  %v2249 = vunpack.c.h.b16 %v1814
  %v2250 = vunpack.c.l.b16 %v1815
  %v2251 = vunpack.c.h.b16 %v1815
  %v2252 = vunpack.c.l.b16 %v1816
  %v2253 = vunpack.c.h.b16 %v1816
  %v2254 = vunpack.c.l.b16 %v1817
  %v2255 = vunpack.c.h.b16 %v1817
  %v2256 = vunpack.c.l.b16 %v1818
  %v2257 = vunpack.c.h.b16 %v1818
  %v2258 = vunpack.c.l.b16 %v1819
  %v2259 = vunpack.c.h.b16 %v1819
  %v2260 = vunpack.c.l.b16 %v1820
  %v2261 = vunpack.c.h.b16 %v1820
  %v2262 = vunpack.c.l.b16 %v1821
  %v2263 = vunpack.c.h.b16 %v1821
  %v2264 = vunpack.c.l.b16 %v1822
  %v2265 = vunpack.c.h.b16 %v1822
  %v2266 = vunpack.c.l.b16 %v1823
  %v2267 = vunpack.c.h.b16 %v1823
  %v2268 = vunpack.c.l.b16 %v1824
  %v2269 = vunpack.c.h.b16 %v1824
  %v2270 = vunpack.c.l.b16 %v1825
  %v2271 = vunpack.c.h.b16 %v1825
  %v2272 = vunpack.c.l.b16 %v1826
  %v2273 = vunpack.c.h.b16 %v1826
  %v2274 = vunpack.c.l.b16 %v1827
  %v2275 = vunpack.c.h.b16 %v1827
  %v2276 = vunpack.c.l.b16 %v1828
  %v2277 = vunpack.c.h.b16 %v1828
  %v2278 = vunpack.c.l.b16 %v1829
  %v2279 = vunpack.c.h.b16 %v1829
  %v2280 = vunpack.c.l.b16 %v1830
  %v2281 = vunpack.c.h.b16 %v1830
  %v2282 = vunpack.c.l.b16 %v1831
  %v2283 = vunpack.c.h.b16 %v1831
  %v2284 = vunpack.c.l.b16 %v1832
  %v2285 = vunpack.c.h.b16 %v1832
  %v2286 = vunpack.c.l.b16 %v1833
  %v2287 = vunpack.c.h.b16 %v1833
  %v2288 = vunpack.c.l.b16 %v1834
  %v2289 = vunpack.c.h.b16 %v1834
  %v2290 = vunpack.c.l.b16 %v1835
  %v2291 = vunpack.c.h.b16 %v1835
  %v2292 = vunpack.c.l.b16 %v1836
  %v2293 = vunpack.c.h.b16 %v1836
  %v2294 = vunpack.c.l.b16 %v1837
  %v2295 = vunpack.c.h.b16 %v1837
  %v2296 = vunpack.c.l.b16 %v1838
  %v2297 = vunpack.c.h.b16 %v1838
  %v2298 = vunpack.c.l.b16 %v1839
  %v2299 = vunpack.c.h.b16 %v1839
  %v2300 = vunpack.c.l.b16 %v1840
  %v2301 = vunpack.c.h.b16 %v1840
  %v2302 = vunpack.c.l.b16 %v1841
  %v2303 = vunpack.c.h.b16 %v1841
  %v2304 = vunpack.c.l.b16 %v1842
  %v2305 = vunpack.c.h.b16 %v1842
  %v2306 = vunpack.c.l.b16 %v1843
  %v2307 = vunpack.c.h.b16 %v1843
  %v2308 = vunpack.c.l.b16 %v1844
  %v2309 = vunpack.c.h.b16 %v1844
  %v2310 = vunpack.c.l.b16 %v1845
  %v2311 = vunpack.c.h.b16 %v1845
  %v2312 = vunpack.c.l.b16 %v1846
  %v2313 = vunpack.c.h.b16 %v1846
  %v2314 = vunpack.c.l.b16 %v1847
  %v2315 = vunpack.c.h.b16 %v1847
  %v2316 = vunpack.c.l.b16 %v1848
  %v2317 = vunpack.c.h.b16 %v1848
  %v2318 = vunpack.c.l.b16 %v1849
  %v2319 = vunpack.c.h.b16 %v1849
  %v2320 = vunpack.c.l.b16 %v1850
  %v2321 = vunpack.c.h.b16 %v1850
  %v2322 = vunpack.c.l.b16 %v1851
  %v2323 = vunpack.c.h.b16 %v1851
  %v2324 = vunpack.c.l.b16 %v1852
  %v2325 = vunpack.c.h.b16 %v1852
  %v2326 = vunpack.c.l.b16 %v1853
  %v2327 = vunpack.c.h.b16 %v1853
  %v2328 = vunpack.c.l.b16 %v1854
  %v2329 = vunpack.c.h.b16 %v1854
  %v2330 = vunpack.c.l.b16 %v1855
  %v2331 = vunpack.c.h.b16 %v1855
  %v2332 = vunpack.c.l.b16 %v1856
  %v2333 = vunpack.c.h.b16 %v1856
  %v2334 = vunpack.c.l.b16 %v1857
  %v2335 = vunpack.c.h.b16 %v1857
  %v2336 = vunpack.c.l.b16 %v1858
  %v2337 = vunpack.c.h.b16 %v1858
  %v2338 = vunpack.c.l.b16 %v1859
  %v2339 = vunpack.c.h.b16 %v1859
  %v2340 = vunpack.c.l.b16 %v1860
  %v2341 = vunpack.c.h.b16 %v1860
  %v2342 = vunpack.c.l.b16 %v1861
  %v2343 = vunpack.c.h.b16 %v1861
  %v2344 = vunpack.c.l.b16 %v1862
  %v2345 = vunpack.c.h.b16 %v1862
  %v2346 = vunpack.c.l.b16 %v1863
  %v2347 = vunpack.c.h.b16 %v1863
  %v2348 = vunpack.c.l.b16 %v1864
  %v2349 = vunpack.c.h.b16 %v1864
  %v2350 = vunpack.c.l.b16 %v1865
  %v2351 = vunpack.c.h.b16 %v1865
  %v2352 = vunpack.c.l.b16 %v1866
  %v2353 = vunpack.c.h.b16 %v1866
  %v2354 = vunpack.c.l.b16 %v1867
  %v2355 = vunpack.c.h.b16 %v1867
  %v2356 = vunpack.c.l.b16 %v1868
  %v2357 = vunpack.c.h.b16 %v1868
  %v2358 = vunpack.c.l.b16 %v1869
  %v2359 = vunpack.c.h.b16 %v1869
  %v2360 = vunpack.c.l.b16 %v1870
  %v2361 = vunpack.c.h.b16 %v1870
  %v2362 = vunpack.c.l.b16 %v1871
  %v2363 = vunpack.c.h.b16 %v1871
  %v2364 = vunpack.c.l.b16 %v1872
  %v2365 = vunpack.c.h.b16 %v1872
  %v2366 = vunpack.c.l.b16 %v1873
  %v2367 = vunpack.c.h.b16 %v1873
  %v2368 = vunpack.c.l.b16 %v1874
  %v2369 = vunpack.c.h.b16 %v1874
  %v2370 = vunpack.c.l.b16 %v1875
  %v2371 = vunpack.c.h.b16 %v1875
  %v2372 = vunpack.c.l.b16 %v1876
  %v2373 = vunpack.c.h.b16 %v1876
  %v2374 = vunpack.c.l.b16 %v1877
  %v2375 = vunpack.c.h.b16 %v1877
  %v2376 = vunpack.c.l.b16 %v1878
  %v2377 = vunpack.c.h.b16 %v1878
  %v2378 = vunpack.c.l.b16 %v1879
  %v2379 = vunpack.c.h.b16 %v1879
  %v2380 = vunpack.c.l.b16 %v1880
  %v2381 = vunpack.c.h.b16 %v1880
  %v2382 = vunpack.c.l.b16 %v1881
  %v2383 = vunpack.c.h.b16 %v1881
  %v2384 = vunpack.c.l.b16 %v1882
  %v2385 = vunpack.c.h.b16 %v1882
  %v2386 = vunpack.c.l.b16 %v1883
  %v2387 = vunpack.c.h.b16 %v1883
  %v2388 = vunpack.c.l.b16 %v1884
  %v2389 = vunpack.c.h.b16 %v1884
  %v2390 = vunpack.c.l.b16 %v1885
  %v2391 = vunpack.c.h.b16 %v1885
  %v2392 = vunpack.c.l.b16 %v1886
  %v2393 = vunpack.c.h.b16 %v1886
  %v2394 = vunpack.c.l.b16 %v1887
  %v2395 = vunpack.c.h.b16 %v1887
  %v2396 = vunpack.c.l.b16 %v1888
  %v2397 = vunpack.c.h.b16 %v1888
  %v2398 = vunpack.c.l.b16 %v1889
  %v2399 = vunpack.c.h.b16 %v1889
  %v2400 = vunpack.c.l.b16 %v1890
  %v2401 = vunpack.c.h.b16 %v1890
  %v2402 = vunpack.c.l.b16 %v1891
  %v2403 = vunpack.c.h.b16 %v1891
  %v2404 = vunpack.c.l.b16 %v1892
  %v2405 = vunpack.c.h.b16 %v1892
  %v2406 = vunpack.c.l.b16 %v1893
  %v2407 = vunpack.c.h.b16 %v1893
  %v2408 = vunpack.c.l.b16 %v1894
  %v2409 = vunpack.c.h.b16 %v1894
  %v2410 = vunpack.c.l.b16 %v1895
  %v2411 = vunpack.c.h.b16 %v1895
  %v2412 = vunpack.c.l.b16 %v1896
  %v2413 = vunpack.c.h.b16 %v1896
  %v2414 = vunpack.c.l.b16 %v1897
  %v2415 = vunpack.c.h.b16 %v1897
  %v2416 = vunpack.c.l.b16 %v1898
  %v2417 = vunpack.c.h.b16 %v1898
  %v2418 = vunpack.c.l.b16 %v1899
  %v2419 = vunpack.c.h.b16 %v1899
  %v2420 = vunpack.c.l.b16 %v1900
  %v2421 = vunpack.c.h.b16 %v1900
  %v2422 = vunpack.c.l.b16 %v1901
  %v2423 = vunpack.c.h.b16 %v1901
  %v2424 = vunpack.c.l.b16 %v1902
  %v2425 = vunpack.c.h.b16 %v1902
  %v2426 = vunpack.c.l.b16 %v1903
  %v2427 = vunpack.c.h.b16 %v1903
  %v2428 = vunpack.c.l.b16 %v1904
  %v2429 = vunpack.c.h.b16 %v1904
  %v2430 = vunpack.c.l.b16 %v1905
  %v2431 = vunpack.c.h.b16 %v1905
  %v2432 = vunpack.c.l.b16 %v1906
  %v2433 = vunpack.c.h.b16 %v1906
  %v2434 = vunpack.c.l.b16 %v1907
  %v2435 = vunpack.c.h.b16 %v1907
  %v2436 = vunpack.c.l.b16 %v1908
  %v2437 = vunpack.c.h.b16 %v1908
  %v2438 = vunpack.c.l.b16 %v1909
  %v2439 = vunpack.c.h.b16 %v1909
  %v2440 = vunpack.c.l.b16 %v1910
  %v2441 = vunpack.c.h.b16 %v1910
  %v2442 = vunpack.c.l.b16 %v1911
  %v2443 = vunpack.c.h.b16 %v1911
  %v2444 = vunpack.c.l.b16 %v1912
  %v2445 = vunpack.c.h.b16 %v1912
  %v2446 = vunpack.c.l.b16 %v1913
  %v2447 = vunpack.c.h.b16 %v1913
  %v2448 = vunpack.c.l.b16 %v1914
  %v2449 = vunpack.c.h.b16 %v1914
  %v2450 = vunpack.c.l.b16 %v1915
  %v2451 = vunpack.c.h.b16 %v1915
  %v2452 = vunpack.c.l.b16 %v1916
  %v2453 = vunpack.c.h.b16 %v1916
  %v2454 = vunpack.c.l.b16 %v1917
  %v2455 = vunpack.c.h.b16 %v1917
  %v2456 = vunpack.c.l.b16 %v1918
  %v2457 = vunpack.c.h.b16 %v1918
  %v2458 = vunpack.c.l.b16 %v1919
  %v2459 = vunpack.c.h.b16 %v1919
  %v2460 = vunpack.c.l.b16 %v1920
  %v2461 = vunpack.c.h.b16 %v1920
  %v2462 = vunpack.c.l.b16 %v1921
  %v2463 = vunpack.c.h.b16 %v1921
  %v2464 = vunpack.c.l.b16 %v1922
  %v2465 = vunpack.c.h.b16 %v1922
  %v2466 = vunpack.c.l.b16 %v1923
  %v2467 = vunpack.c.h.b16 %v1923
  %v2468 = vpack.c.b16 %v2216, %v2212
  %v2469 = vpack.c.b16 %v2217, %v2213
  %v2470 = vpack.c.b16 %v2218, %v2214
  %v2471 = vpack.c.b16 %v2219, %v2215
  %v2472 = vpack.c.b16 %v2224, %v2220
  %v2473 = vpack.c.b16 %v2225, %v2221
  %v2474 = vpack.c.b16 %v2226, %v2222
  %v2475 = vpack.c.b16 %v2227, %v2223
  %v2476 = vpack.c.b16 %v2232, %v2228
  %v2477 = vpack.c.b16 %v2233, %v2229
  %v2478 = vpack.c.b16 %v2234, %v2230
  %v2479 = vpack.c.b16 %v2235, %v2231
  %v2480 = vpack.c.b16 %v2240, %v2236
  %v2481 = vpack.c.b16 %v2241, %v2237
  %v2482 = vpack.c.b16 %v2242, %v2238
  %v2483 = vpack.c.b16 %v2243, %v2239
  %v2484 = vpack.c.b16 %v2248, %v2244
  %v2485 = vpack.c.b16 %v2249, %v2245
  %v2486 = vpack.c.b16 %v2250, %v2246
  %v2487 = vpack.c.b16 %v2251, %v2247
  %v2488 = vpack.c.b16 %v2256, %v2252
  %v2489 = vpack.c.b16 %v2257, %v2253
  %v2490 = vpack.c.b16 %v2258, %v2254
  %v2491 = vpack.c.b16 %v2259, %v2255
  %v2492 = vpack.c.b16 %v2264, %v2260
  %v2493 = vpack.c.b16 %v2265, %v2261
  %v2494 = vpack.c.b16 %v2266, %v2262
  %v2495 = vpack.c.b16 %v2267, %v2263
  %v2496 = vpack.c.b16 %v2272, %v2268
  %v2497 = vpack.c.b16 %v2273, %v2269
  %v2498 = vpack.c.b16 %v2274, %v2270
  %v2499 = vpack.c.b16 %v2275, %v2271
  %v2500 = vpack.c.b16 %v2280, %v2276
  %v2501 = vpack.c.b16 %v2281, %v2277
  %v2502 = vpack.c.b16 %v2282, %v2278
  %v2503 = vpack.c.b16 %v2283, %v2279
  %v2504 = vpack.c.b16 %v2288, %v2284
  %v2505 = vpack.c.b16 %v2289, %v2285
  %v2506 = vpack.c.b16 %v2290, %v2286
  %v2507 = vpack.c.b16 %v2291, %v2287
  %v2508 = vpack.c.b16 %v2296, %v2292
  %v2509 = vpack.c.b16 %v2297, %v2293
  %v2510 = vpack.c.b16 %v2298, %v2294
  %v2511 = vpack.c.b16 %v2299, %v2295
  %v2512 = vpack.c.b16 %v2304, %v2300
  %v2513 = vpack.c.b16 %v2305, %v2301
  %v2514 = vpack.c.b16 %v2306, %v2302
  %v2515 = vpack.c.b16 %v2307, %v2303
  %v2516 = vpack.c.b16 %v2312, %v2308
  %v2517 = vpack.c.b16 %v2313, %v2309
  %v2518 = vpack.c.b16 %v2314, %v2310
  %v2519 = vpack.c.b16 %v2315, %v2311
  %v2520 = vpack.c.b16 %v2320, %v2316
  %v2521 = vpack.c.b16 %v2321, %v2317
  %v2522 = vpack.c.b16 %v2322, %v2318
  %v2523 = vpack.c.b16 %v2323, %v2319
  %v2524 = vpack.c.b16 %v2328, %v2324
  %v2525 = vpack.c.b16 %v2329, %v2325
  %v2526 = vpack.c.b16 %v2330, %v2326
  %v2527 = vpack.c.b16 %v2331, %v2327
  %v2528 = vpack.c.b16 %v2336, %v2332
  %v2529 = vpack.c.b16 %v2337, %v2333
  %v2530 = vpack.c.b16 %v2338, %v2334
  %v2531 = vpack.c.b16 %v2339, %v2335
  %v2532 = vpack.c.b16 %v2344, %v2340
  %v2533 = vpack.c.b16 %v2345, %v2341
  %v2534 = vpack.c.b16 %v2346, %v2342
  %v2535 = vpack.c.b16 %v2347, %v2343
  %v2536 = vpack.c.b16 %v2352, %v2348
  %v2537 = vpack.c.b16 %v2353, %v2349
  %v2538 = vpack.c.b16 %v2354, %v2350
  %v2539 = vpack.c.b16 %v2355, %v2351
  %v2540 = vpack.c.b16 %v2360, %v2356
  %v2541 = vpack.c.b16 %v2361, %v2357
  %v2542 = vpack.c.b16 %v2362, %v2358
  %v2543 = vpack.c.b16 %v2363, %v2359
  %v2544 = vpack.c.b16 %v2368, %v2364
  %v2545 = vpack.c.b16 %v2369, %v2365
  %v2546 = vpack.c.b16 %v2370, %v2366
  %v2547 = vpack.c.b16 %v2371, %v2367
  %v2548 = vpack.c.b16 %v2376, %v2372
  %v2549 = vpack.c.b16 %v2377, %v2373
  %v2550 = vpack.c.b16 %v2378, %v2374
  %v2551 = vpack.c.b16 %v2379, %v2375
  %v2552 = vpack.c.b16 %v2384, %v2380
  %v2553 = vpack.c.b16 %v2385, %v2381
  %v2554 = vpack.c.b16 %v2386, %v2382
  %v2555 = vpack.c.b16 %v2387, %v2383
  %v2556 = vpack.c.b16 %v2392, %v2388
  %v2557 = vpack.c.b16 %v2393, %v2389
  %v2558 = vpack.c.b16 %v2394, %v2390
  %v2559 = vpack.c.b16 %v2395, %v2391
  %v2560 = vpack.c.b16 %v2400, %v2396
  %v2561 = vpack.c.b16 %v2401, %v2397
  %v2562 = vpack.c.b16 %v2402, %v2398
  %v2563 = vpack.c.b16 %v2403, %v2399
  %v2564 = vpack.c.b16 %v2408, %v2404
  %v2565 = vpack.c.b16 %v2409, %v2405
  %v2566 = vpack.c.b16 %v2410, %v2406
  %v2567 = vpack.c.b16 %v2411, %v2407
  %v2568 = vpack.c.b16 %v2416, %v2412
  %v2569 = vpack.c.b16 %v2417, %v2413
  %v2570 = vpack.c.b16 %v2418, %v2414
  %v2571 = vpack.c.b16 %v2419, %v2415
  %v2572 = vpack.c.b16 %v2424, %v2420
  %v2573 = vpack.c.b16 %v2425, %v2421
  %v2574 = vpack.c.b16 %v2426, %v2422
  %v2575 = vpack.c.b16 %v2427, %v2423
  %v2576 = vpack.c.b16 %v2432, %v2428
  %v2577 = vpack.c.b16 %v2433, %v2429
  %v2578 = vpack.c.b16 %v2434, %v2430
  %v2579 = vpack.c.b16 %v2435, %v2431
  %v2580 = vpack.c.b16 %v2440, %v2436
  %v2581 = vpack.c.b16 %v2441, %v2437
  %v2582 = vpack.c.b16 %v2442, %v2438
  %v2583 = vpack.c.b16 %v2443, %v2439
  %v2584 = vpack.c.b16 %v2448, %v2444
  %v2585 = vpack.c.b16 %v2449, %v2445
  %v2586 = vpack.c.b16 %v2450, %v2446
  %v2587 = vpack.c.b16 %v2451, %v2447
  %v2588 = vpack.c.b16 %v2456, %v2452
  %v2589 = vpack.c.b16 %v2457, %v2453
  %v2590 = vpack.c.b16 %v2458, %v2454
  %v2591 = vpack.c.b16 %v2459, %v2455
  %v2592 = vpack.c.b16 %v2464, %v2460
  %v2593 = vpack.c.b16 %v2465, %v2461
  %v2594 = vpack.c.b16 %v2466, %v2462
  %v2595 = vpack.c.b16 %v2467, %v2463
  %2724 = vmatpush.bf16.msra.mxu0 %v2496
  %2725 = vmatpush.bf16.msra.mxu0 %v2492
  %2726 = vmatpush.bf16.msra.mxu0 %v2488
  %2727 = vmatpush.bf16.msra.mxu0 %v2484
  %2728 = vmatpush.bf16.msra.mxu0 %v2480
  %2729 = vmatpush.bf16.msra.mxu0 %v2476
  %2730 = vmatpush.bf16.msra.mxu0 %v2472
  %2731 = vmatpush.bf16.msra.mxu0 %v2468
  %2732 = vmatmul.bf16.gmra.mxu0 %v2020
  %v2733 = vpop.f32.mrf.mxu0
  %v2734 = vadd.f32 0.0, %v2733
  %v2735 = vpop.f32.mrf.mxu0
  %v2736 = vadd.f32 0.0, %v2735
  %2737 = vmatmul.bf16.gmra.mxu0 %v2024
  %v2738 = vpop.f32.mrf.mxu0
  %v2739 = vadd.f32 0.0, %v2738
  %v2740 = vpop.f32.mrf.mxu0
  %v2741 = vadd.f32 0.0, %v2740
  %2742 = vmatmul.bf16.gmra.mxu0 %v2028
  %v2743 = vpop.f32.mrf.mxu0
  %v2744 = vadd.f32 0.0, %v2743
  %v2745 = vpop.f32.mrf.mxu0
  %v2746 = vadd.f32 0.0, %v2745
  %2747 = vmatmul.bf16.gmra.mxu0 %v2032
  %v2748 = vpop.f32.mrf.mxu0
  %v2749 = vadd.f32 0.0, %v2748
  %v2750 = vpop.f32.mrf.mxu0
  %v2751 = vadd.f32 0.0, %v2750
  %2752 = vmatmul.bf16.gmra.mxu0 %v2036
  %v2753 = vpop.f32.mrf.mxu0
  %v2754 = vadd.f32 0.0, %v2753
  %v2755 = vpop.f32.mrf.mxu0
  %v2756 = vadd.f32 0.0, %v2755
  %2757 = vmatmul.bf16.gmra.mxu0 %v2040
  %v2758 = vpop.f32.mrf.mxu0
  %v2759 = vadd.f32 0.0, %v2758
  %v2760 = vpop.f32.mrf.mxu0
  %v2761 = vadd.f32 0.0, %v2760
  %2762 = vmatmul.bf16.gmra.mxu0 %v2044
  %v2763 = vpop.f32.mrf.mxu0
  %v2764 = vadd.f32 0.0, %v2763
  %v2765 = vpop.f32.mrf.mxu0
  %v2766 = vadd.f32 0.0, %v2765
  %2767 = vmatmul.bf16.gmra.mxu0 %v2048
  %v2768 = vpop.f32.mrf.mxu0
  %v2769 = vadd.f32 0.0, %v2768
  %v2770 = vpop.f32.mrf.mxu0
  %v2771 = vadd.f32 0.0, %v2770
  %2772 = vdwg.mxu0
  %2773 = vmatpush.bf16.msra.mxu0 %v2528
  %2774 = vmatpush.bf16.msra.mxu0 %v2524
  %2775 = vmatpush.bf16.msra.mxu0 %v2520
  %2776 = vmatpush.bf16.msra.mxu0 %v2516
  %2777 = vmatpush.bf16.msra.mxu0 %v2512
  %2778 = vmatpush.bf16.msra.mxu0 %v2508
  %2779 = vmatpush.bf16.msra.mxu0 %v2504
  %2780 = vmatpush.bf16.msra.mxu0 %v2500
  %2781 = vmatmul.bf16.gmra.mxu0 %v2021
  %v2782 = vpop.f32.mrf.mxu0
  %v2783 = vadd.f32 %v2734, %v2782
  %v2784 = vpop.f32.mrf.mxu0
  %v2785 = vadd.f32 %v2736, %v2784
  %2786 = vmatmul.bf16.gmra.mxu0 %v2025
  %v2787 = vpop.f32.mrf.mxu0
  %v2788 = vadd.f32 %v2739, %v2787
  %v2789 = vpop.f32.mrf.mxu0
  %v2790 = vadd.f32 %v2741, %v2789
  %2791 = vmatmul.bf16.gmra.mxu0 %v2029
  %v2792 = vpop.f32.mrf.mxu0
  %v2793 = vadd.f32 %v2744, %v2792
  %v2794 = vpop.f32.mrf.mxu0
  %v2795 = vadd.f32 %v2746, %v2794
  %2796 = vmatmul.bf16.gmra.mxu0 %v2033
  %v2797 = vpop.f32.mrf.mxu0
  %v2798 = vadd.f32 %v2749, %v2797
  %v2799 = vpop.f32.mrf.mxu0
  %v2800 = vadd.f32 %v2751, %v2799
  %2801 = vmatmul.bf16.gmra.mxu0 %v2037
  %v2802 = vpop.f32.mrf.mxu0
  %v2803 = vadd.f32 %v2754, %v2802
  %v2804 = vpop.f32.mrf.mxu0
  %v2805 = vadd.f32 %v2756, %v2804
  %2806 = vmatmul.bf16.gmra.mxu0 %v2041
  %v2807 = vpop.f32.mrf.mxu0
  %v2808 = vadd.f32 %v2759, %v2807
  %v2809 = vpop.f32.mrf.mxu0
  %v2810 = vadd.f32 %v2761, %v2809
  %2811 = vmatmul.bf16.gmra.mxu0 %v2045
  %v2812 = vpop.f32.mrf.mxu0
  %v2813 = vadd.f32 %v2764, %v2812
  %v2814 = vpop.f32.mrf.mxu0
  %v2815 = vadd.f32 %v2766, %v2814
  %2816 = vmatmul.bf16.gmra.mxu0 %v2049
  %v2817 = vpop.f32.mrf.mxu0
  %v2818 = vadd.f32 %v2769, %v2817
  %v2819 = vpop.f32.mrf.mxu0
  %v2820 = vadd.f32 %v2771, %v2819
  %2821 = vdwg.mxu0
  %2822 = vmatpush.bf16.msra.mxu0 %v2560
  %2823 = vmatpush.bf16.msra.mxu0 %v2556
  %2824 = vmatpush.bf16.msra.mxu0 %v2552
  %2825 = vmatpush.bf16.msra.mxu0 %v2548
  %2826 = vmatpush.bf16.msra.mxu0 %v2544
  %2827 = vmatpush.bf16.msra.mxu0 %v2540
  %2828 = vmatpush.bf16.msra.mxu0 %v2536
  %2829 = vmatpush.bf16.msra.mxu0 %v2532
  %2830 = vmatmul.bf16.gmra.mxu0 %v2022
  %v2831 = vpop.f32.mrf.mxu0
  %v2832 = vadd.f32 %v2783, %v2831
  %v2833 = vpop.f32.mrf.mxu0
  %v2834 = vadd.f32 %v2785, %v2833
  %2835 = vmatmul.bf16.gmra.mxu0 %v2026
  %v2836 = vpop.f32.mrf.mxu0
  %v2837 = vadd.f32 %v2788, %v2836
  %v2838 = vpop.f32.mrf.mxu0
  %v2839 = vadd.f32 %v2790, %v2838
  %2840 = vmatmul.bf16.gmra.mxu0 %v2030
  %v2841 = vpop.f32.mrf.mxu0
  %v2842 = vadd.f32 %v2793, %v2841
  %v2843 = vpop.f32.mrf.mxu0
  %v2844 = vadd.f32 %v2795, %v2843
  %2845 = vmatmul.bf16.gmra.mxu0 %v2034
  %v2846 = vpop.f32.mrf.mxu0
  %v2847 = vadd.f32 %v2798, %v2846
  %v2848 = vpop.f32.mrf.mxu0
  %v2849 = vadd.f32 %v2800, %v2848
  %2850 = vmatmul.bf16.gmra.mxu0 %v2038
  %v2851 = vpop.f32.mrf.mxu0
  %v2852 = vadd.f32 %v2803, %v2851
  %v2853 = vpop.f32.mrf.mxu0
  %v2854 = vadd.f32 %v2805, %v2853
  %2855 = vmatmul.bf16.gmra.mxu0 %v2042
  %v2856 = vpop.f32.mrf.mxu0
  %v2857 = vadd.f32 %v2808, %v2856
  %v2858 = vpop.f32.mrf.mxu0
  %v2859 = vadd.f32 %v2810, %v2858
  %2860 = vmatmul.bf16.gmra.mxu0 %v2046
  %v2861 = vpop.f32.mrf.mxu0
  %v2862 = vadd.f32 %v2813, %v2861
  %v2863 = vpop.f32.mrf.mxu0
  %v2864 = vadd.f32 %v2815, %v2863
  %2865 = vmatmul.bf16.gmra.mxu0 %v2050
  %v2866 = vpop.f32.mrf.mxu0
  %v2867 = vadd.f32 %v2818, %v2866
  %v2868 = vpop.f32.mrf.mxu0
  %v2869 = vadd.f32 %v2820, %v2868
  %2870 = vdwg.mxu0
  %2871 = vmatpush.bf16.msra.mxu0 %v2592
  %2872 = vmatpush.bf16.msra.mxu0 %v2588
  %2873 = vmatpush.bf16.msra.mxu0 %v2584
  %2874 = vmatpush.bf16.msra.mxu0 %v2580
  %2875 = vmatpush.bf16.msra.mxu0 %v2576
  %2876 = vmatpush.bf16.msra.mxu0 %v2572
  %2877 = vmatpush.bf16.msra.mxu0 %v2568
  %2878 = vmatpush.bf16.msra.mxu0 %v2564
  %2879 = vmatmul.bf16.gmra.mxu0 %v2023
  %v2880 = vpop.f32.mrf.mxu0
  %v2881 = vadd.f32 %v2832, %v2880
  %v2882 = vpop.f32.mrf.mxu0
  %v2883 = vadd.f32 %v2834, %v2882
  %2884 = vmatmul.bf16.gmra.mxu0 %v2027
  %v2885 = vpop.f32.mrf.mxu0
  %v2886 = vadd.f32 %v2837, %v2885
  %v2887 = vpop.f32.mrf.mxu0
  %v2888 = vadd.f32 %v2839, %v2887
  %2889 = vmatmul.bf16.gmra.mxu0 %v2031
  %v2890 = vpop.f32.mrf.mxu0
  %v2891 = vadd.f32 %v2842, %v2890
  %v2892 = vpop.f32.mrf.mxu0
  %v2893 = vadd.f32 %v2844, %v2892
  %2894 = vmatmul.bf16.gmra.mxu0 %v2035
  %v2895 = vpop.f32.mrf.mxu0
  %v2896 = vadd.f32 %v2847, %v2895
  %v2897 = vpop.f32.mrf.mxu0
  %v2898 = vadd.f32 %v2849, %v2897
  %2899 = vmatmul.bf16.gmra.mxu0 %v2039
  %v2900 = vpop.f32.mrf.mxu0
  %v2901 = vadd.f32 %v2852, %v2900
  %v2902 = vpop.f32.mrf.mxu0
  %v2903 = vadd.f32 %v2854, %v2902
  %2904 = vmatmul.bf16.gmra.mxu0 %v2043
  %v2905 = vpop.f32.mrf.mxu0
  %v2906 = vadd.f32 %v2857, %v2905
  %v2907 = vpop.f32.mrf.mxu0
  %v2908 = vadd.f32 %v2859, %v2907
  %2909 = vmatmul.bf16.gmra.mxu0 %v2047
  %v2910 = vpop.f32.mrf.mxu0
  %v2911 = vadd.f32 %v2862, %v2910
  %v2912 = vpop.f32.mrf.mxu0
  %v2913 = vadd.f32 %v2864, %v2912
  %2914 = vmatmul.bf16.gmra.mxu0 %v2051
  %v2915 = vpop.f32.mrf.mxu0
  %v2916 = vadd.f32 %v2867, %v2915
  %v2917 = vpop.f32.mrf.mxu0
  %v2918 = vadd.f32 %v2869, %v2917
  %2919 = vdwg.mxu0
  %2920 = vmatpush.bf16.msra.mxu0 %v2497
  %2921 = vmatpush.bf16.msra.mxu0 %v2493
  %2922 = vmatpush.bf16.msra.mxu0 %v2489
  %2923 = vmatpush.bf16.msra.mxu0 %v2485
  %2924 = vmatpush.bf16.msra.mxu0 %v2481
  %2925 = vmatpush.bf16.msra.mxu0 %v2477
  %2926 = vmatpush.bf16.msra.mxu0 %v2473
  %2927 = vmatpush.bf16.msra.mxu0 %v2469
  %2928 = vmatmul.bf16.gmra.mxu0 %v2020
  %v2929 = vpop.f32.mrf.mxu0
  %v2930 = vadd.f32 0.0, %v2929
  %v2931 = vpop.f32.mrf.mxu0
  %v2932 = vadd.f32 0.0, %v2931
  %2933 = vmatmul.bf16.gmra.mxu0 %v2024
  %v2934 = vpop.f32.mrf.mxu0
  %v2935 = vadd.f32 0.0, %v2934
  %v2936 = vpop.f32.mrf.mxu0
  %v2937 = vadd.f32 0.0, %v2936
  %2938 = vmatmul.bf16.gmra.mxu0 %v2028
  %v2939 = vpop.f32.mrf.mxu0
  %v2940 = vadd.f32 0.0, %v2939
  %v2941 = vpop.f32.mrf.mxu0
  %v2942 = vadd.f32 0.0, %v2941
  %2943 = vmatmul.bf16.gmra.mxu0 %v2032
  %v2944 = vpop.f32.mrf.mxu0
  %v2945 = vadd.f32 0.0, %v2944
  %v2946 = vpop.f32.mrf.mxu0
  %v2947 = vadd.f32 0.0, %v2946
  %2948 = vmatmul.bf16.gmra.mxu0 %v2036
  %v2949 = vpop.f32.mrf.mxu0
  %v2950 = vadd.f32 0.0, %v2949
  %v2951 = vpop.f32.mrf.mxu0
  %v2952 = vadd.f32 0.0, %v2951
  %2953 = vmatmul.bf16.gmra.mxu0 %v2040
  %v2954 = vpop.f32.mrf.mxu0
  %v2955 = vadd.f32 0.0, %v2954
  %v2956 = vpop.f32.mrf.mxu0
  %v2957 = vadd.f32 0.0, %v2956
  %2958 = vmatmul.bf16.gmra.mxu0 %v2044
  %v2959 = vpop.f32.mrf.mxu0
  %v2960 = vadd.f32 0.0, %v2959
  %v2961 = vpop.f32.mrf.mxu0
  %v2962 = vadd.f32 0.0, %v2961
  %2963 = vmatmul.bf16.gmra.mxu0 %v2048
  %v2964 = vpop.f32.mrf.mxu0
  %v2965 = vadd.f32 0.0, %v2964
  %v2966 = vpop.f32.mrf.mxu0
  %v2967 = vadd.f32 0.0, %v2966
  %2968 = vdwg.mxu0
  %2969 = vmatpush.bf16.msra.mxu0 %v2529
  %2970 = vmatpush.bf16.msra.mxu0 %v2525
  %2971 = vmatpush.bf16.msra.mxu0 %v2521
  %2972 = vmatpush.bf16.msra.mxu0 %v2517
  %2973 = vmatpush.bf16.msra.mxu0 %v2513
  %2974 = vmatpush.bf16.msra.mxu0 %v2509
  %2975 = vmatpush.bf16.msra.mxu0 %v2505
  %2976 = vmatpush.bf16.msra.mxu0 %v2501
  %2977 = vmatmul.bf16.gmra.mxu0 %v2021
  %v2978 = vpop.f32.mrf.mxu0
  %v2979 = vadd.f32 %v2930, %v2978
  %v2980 = vpop.f32.mrf.mxu0
  %v2981 = vadd.f32 %v2932, %v2980
  %2982 = vmatmul.bf16.gmra.mxu0 %v2025
  %v2983 = vpop.f32.mrf.mxu0
  %v2984 = vadd.f32 %v2935, %v2983
  %v2985 = vpop.f32.mrf.mxu0
  %v2986 = vadd.f32 %v2937, %v2985
  %2987 = vmatmul.bf16.gmra.mxu0 %v2029
  %v2988 = vpop.f32.mrf.mxu0
  %v2989 = vadd.f32 %v2940, %v2988
  %v2990 = vpop.f32.mrf.mxu0
  %v2991 = vadd.f32 %v2942, %v2990
  %2992 = vmatmul.bf16.gmra.mxu0 %v2033
  %v2993 = vpop.f32.mrf.mxu0
  %v2994 = vadd.f32 %v2945, %v2993
  %v2995 = vpop.f32.mrf.mxu0
  %v2996 = vadd.f32 %v2947, %v2995
  %2997 = vmatmul.bf16.gmra.mxu0 %v2037
  %v2998 = vpop.f32.mrf.mxu0
  %v2999 = vadd.f32 %v2950, %v2998
  %v3000 = vpop.f32.mrf.mxu0
  %v3001 = vadd.f32 %v2952, %v3000
  %3002 = vmatmul.bf16.gmra.mxu0 %v2041
  %v3003 = vpop.f32.mrf.mxu0
  %v3004 = vadd.f32 %v2955, %v3003
  %v3005 = vpop.f32.mrf.mxu0
  %v3006 = vadd.f32 %v2957, %v3005
  %3007 = vmatmul.bf16.gmra.mxu0 %v2045
  %v3008 = vpop.f32.mrf.mxu0
  %v3009 = vadd.f32 %v2960, %v3008
  %v3010 = vpop.f32.mrf.mxu0
  %v3011 = vadd.f32 %v2962, %v3010
  %3012 = vmatmul.bf16.gmra.mxu0 %v2049
  %v3013 = vpop.f32.mrf.mxu0
  %v3014 = vadd.f32 %v2965, %v3013
  %v3015 = vpop.f32.mrf.mxu0
  %v3016 = vadd.f32 %v2967, %v3015
  %3017 = vdwg.mxu0
  %3018 = vmatpush.bf16.msra.mxu0 %v2561
  %3019 = vmatpush.bf16.msra.mxu0 %v2557
  %3020 = vmatpush.bf16.msra.mxu0 %v2553
  %3021 = vmatpush.bf16.msra.mxu0 %v2549
  %3022 = vmatpush.bf16.msra.mxu0 %v2545
  %3023 = vmatpush.bf16.msra.mxu0 %v2541
  %3024 = vmatpush.bf16.msra.mxu0 %v2537
  %3025 = vmatpush.bf16.msra.mxu0 %v2533
  %3026 = vmatmul.bf16.gmra.mxu0 %v2022
  %v3027 = vpop.f32.mrf.mxu0
  %v3028 = vadd.f32 %v2979, %v3027
  %v3029 = vpop.f32.mrf.mxu0
  %v3030 = vadd.f32 %v2981, %v3029
  %3031 = vmatmul.bf16.gmra.mxu0 %v2026
  %v3032 = vpop.f32.mrf.mxu0
  %v3033 = vadd.f32 %v2984, %v3032
  %v3034 = vpop.f32.mrf.mxu0
  %v3035 = vadd.f32 %v2986, %v3034
  %3036 = vmatmul.bf16.gmra.mxu0 %v2030
  %v3037 = vpop.f32.mrf.mxu0
  %v3038 = vadd.f32 %v2989, %v3037
  %v3039 = vpop.f32.mrf.mxu0
  %v3040 = vadd.f32 %v2991, %v3039
  %3041 = vmatmul.bf16.gmra.mxu0 %v2034
  %v3042 = vpop.f32.mrf.mxu0
  %v3043 = vadd.f32 %v2994, %v3042
  %v3044 = vpop.f32.mrf.mxu0
  %v3045 = vadd.f32 %v2996, %v3044
  %3046 = vmatmul.bf16.gmra.mxu0 %v2038
  %v3047 = vpop.f32.mrf.mxu0
  %v3048 = vadd.f32 %v2999, %v3047
  %v3049 = vpop.f32.mrf.mxu0
  %v3050 = vadd.f32 %v3001, %v3049
  %3051 = vmatmul.bf16.gmra.mxu0 %v2042
  %v3052 = vpop.f32.mrf.mxu0
  %v3053 = vadd.f32 %v3004, %v3052
  %v3054 = vpop.f32.mrf.mxu0
  %v3055 = vadd.f32 %v3006, %v3054
  %3056 = vmatmul.bf16.gmra.mxu0 %v2046
  %v3057 = vpop.f32.mrf.mxu0
  %v3058 = vadd.f32 %v3009, %v3057
  %v3059 = vpop.f32.mrf.mxu0
  %v3060 = vadd.f32 %v3011, %v3059
  %3061 = vmatmul.bf16.gmra.mxu0 %v2050
  %v3062 = vpop.f32.mrf.mxu0
  %v3063 = vadd.f32 %v3014, %v3062
  %v3064 = vpop.f32.mrf.mxu0
  %v3065 = vadd.f32 %v3016, %v3064
  %3066 = vdwg.mxu0
  %3067 = vmatpush.bf16.msra.mxu0 %v2593
  %3068 = vmatpush.bf16.msra.mxu0 %v2589
  %3069 = vmatpush.bf16.msra.mxu0 %v2585
  %3070 = vmatpush.bf16.msra.mxu0 %v2581
  %3071 = vmatpush.bf16.msra.mxu0 %v2577
  %3072 = vmatpush.bf16.msra.mxu0 %v2573
  %3073 = vmatpush.bf16.msra.mxu0 %v2569
  %3074 = vmatpush.bf16.msra.mxu0 %v2565
  %3075 = vmatmul.bf16.gmra.mxu0 %v2023
  %v3076 = vpop.f32.mrf.mxu0
  %v3077 = vadd.f32 %v3028, %v3076
  %v3078 = vpop.f32.mrf.mxu0
  %v3079 = vadd.f32 %v3030, %v3078
  %3080 = vmatmul.bf16.gmra.mxu0 %v2027
  %v3081 = vpop.f32.mrf.mxu0
  %v3082 = vadd.f32 %v3033, %v3081
  %v3083 = vpop.f32.mrf.mxu0
  %v3084 = vadd.f32 %v3035, %v3083
  %3085 = vmatmul.bf16.gmra.mxu0 %v2031
  %v3086 = vpop.f32.mrf.mxu0
  %v3087 = vadd.f32 %v3038, %v3086
  %v3088 = vpop.f32.mrf.mxu0
  %v3089 = vadd.f32 %v3040, %v3088
  %3090 = vmatmul.bf16.gmra.mxu0 %v2035
  %v3091 = vpop.f32.mrf.mxu0
  %v3092 = vadd.f32 %v3043, %v3091
  %v3093 = vpop.f32.mrf.mxu0
  %v3094 = vadd.f32 %v3045, %v3093
  %3095 = vmatmul.bf16.gmra.mxu0 %v2039
  %v3096 = vpop.f32.mrf.mxu0
  %v3097 = vadd.f32 %v3048, %v3096
  %v3098 = vpop.f32.mrf.mxu0
  %v3099 = vadd.f32 %v3050, %v3098
  %3100 = vmatmul.bf16.gmra.mxu0 %v2043
  %v3101 = vpop.f32.mrf.mxu0
  %v3102 = vadd.f32 %v3053, %v3101
  %v3103 = vpop.f32.mrf.mxu0
  %v3104 = vadd.f32 %v3055, %v3103
  %3105 = vmatmul.bf16.gmra.mxu0 %v2047
  %v3106 = vpop.f32.mrf.mxu0
  %v3107 = vadd.f32 %v3058, %v3106
  %v3108 = vpop.f32.mrf.mxu0
  %v3109 = vadd.f32 %v3060, %v3108
  %3110 = vmatmul.bf16.gmra.mxu0 %v2051
  %v3111 = vpop.f32.mrf.mxu0
  %v3112 = vadd.f32 %v3063, %v3111
  %v3113 = vpop.f32.mrf.mxu0
  %v3114 = vadd.f32 %v3065, %v3113
  %3115 = vdwg.mxu0
  %3116 = vmatpush.bf16.msra.mxu0 %v2498
  %3117 = vmatpush.bf16.msra.mxu0 %v2494
  %3118 = vmatpush.bf16.msra.mxu0 %v2490
  %3119 = vmatpush.bf16.msra.mxu0 %v2486
  %3120 = vmatpush.bf16.msra.mxu0 %v2482
  %3121 = vmatpush.bf16.msra.mxu0 %v2478
  %3122 = vmatpush.bf16.msra.mxu0 %v2474
  %3123 = vmatpush.bf16.msra.mxu0 %v2470
  %3124 = vmatmul.bf16.gmra.mxu0 %v2020
  %v3125 = vpop.f32.mrf.mxu0
  %v3126 = vadd.f32 0.0, %v3125
  %v3127 = vpop.f32.mrf.mxu0
  %v3128 = vadd.f32 0.0, %v3127
  %3129 = vmatmul.bf16.gmra.mxu0 %v2024
  %v3130 = vpop.f32.mrf.mxu0
  %v3131 = vadd.f32 0.0, %v3130
  %v3132 = vpop.f32.mrf.mxu0
  %v3133 = vadd.f32 0.0, %v3132
  %3134 = vmatmul.bf16.gmra.mxu0 %v2028
  %v3135 = vpop.f32.mrf.mxu0
  %v3136 = vadd.f32 0.0, %v3135
  %v3137 = vpop.f32.mrf.mxu0
  %v3138 = vadd.f32 0.0, %v3137
  %3139 = vmatmul.bf16.gmra.mxu0 %v2032
  %v3140 = vpop.f32.mrf.mxu0
  %v3141 = vadd.f32 0.0, %v3140
  %v3142 = vpop.f32.mrf.mxu0
  %v3143 = vadd.f32 0.0, %v3142
  %3144 = vmatmul.bf16.gmra.mxu0 %v2036
  %v3145 = vpop.f32.mrf.mxu0
  %v3146 = vadd.f32 0.0, %v3145
  %v3147 = vpop.f32.mrf.mxu0
  %v3148 = vadd.f32 0.0, %v3147
  %3149 = vmatmul.bf16.gmra.mxu0 %v2040
  %v3150 = vpop.f32.mrf.mxu0
  %v3151 = vadd.f32 0.0, %v3150
  %v3152 = vpop.f32.mrf.mxu0
  %v3153 = vadd.f32 0.0, %v3152
  %3154 = vmatmul.bf16.gmra.mxu0 %v2044
  %v3155 = vpop.f32.mrf.mxu0
  %v3156 = vadd.f32 0.0, %v3155
  %v3157 = vpop.f32.mrf.mxu0
  %v3158 = vadd.f32 0.0, %v3157
  %3159 = vmatmul.bf16.gmra.mxu0 %v2048
  %v3160 = vpop.f32.mrf.mxu0
  %v3161 = vadd.f32 0.0, %v3160
  %v3162 = vpop.f32.mrf.mxu0
  %v3163 = vadd.f32 0.0, %v3162
  %3164 = vdwg.mxu0
  %3165 = vmatpush.bf16.msra.mxu0 %v2530
  %3166 = vmatpush.bf16.msra.mxu0 %v2526
  %3167 = vmatpush.bf16.msra.mxu0 %v2522
  %3168 = vmatpush.bf16.msra.mxu0 %v2518
  %3169 = vmatpush.bf16.msra.mxu0 %v2514
  %3170 = vmatpush.bf16.msra.mxu0 %v2510
  %3171 = vmatpush.bf16.msra.mxu0 %v2506
  %3172 = vmatpush.bf16.msra.mxu0 %v2502
  %3173 = vmatmul.bf16.gmra.mxu0 %v2021
  %v3174 = vpop.f32.mrf.mxu0
  %v3175 = vadd.f32 %v3126, %v3174
  %v3176 = vpop.f32.mrf.mxu0
  %v3177 = vadd.f32 %v3128, %v3176
  %3178 = vmatmul.bf16.gmra.mxu0 %v2025
  %v3179 = vpop.f32.mrf.mxu0
  %v3180 = vadd.f32 %v3131, %v3179
  %v3181 = vpop.f32.mrf.mxu0
  %v3182 = vadd.f32 %v3133, %v3181
  %3183 = vmatmul.bf16.gmra.mxu0 %v2029
  %v3184 = vpop.f32.mrf.mxu0
  %v3185 = vadd.f32 %v3136, %v3184
  %v3186 = vpop.f32.mrf.mxu0
  %v3187 = vadd.f32 %v3138, %v3186
  %3188 = vmatmul.bf16.gmra.mxu0 %v2033
  %v3189 = vpop.f32.mrf.mxu0
  %v3190 = vadd.f32 %v3141, %v3189
  %v3191 = vpop.f32.mrf.mxu0
  %v3192 = vadd.f32 %v3143, %v3191
  %3193 = vmatmul.bf16.gmra.mxu0 %v2037
  %v3194 = vpop.f32.mrf.mxu0
  %v3195 = vadd.f32 %v3146, %v3194
  %v3196 = vpop.f32.mrf.mxu0
  %v3197 = vadd.f32 %v3148, %v3196
  %3198 = vmatmul.bf16.gmra.mxu0 %v2041
  %v3199 = vpop.f32.mrf.mxu0
  %v3200 = vadd.f32 %v3151, %v3199
  %v3201 = vpop.f32.mrf.mxu0
  %v3202 = vadd.f32 %v3153, %v3201
  %3203 = vmatmul.bf16.gmra.mxu0 %v2045
  %v3204 = vpop.f32.mrf.mxu0
  %v3205 = vadd.f32 %v3156, %v3204
  %v3206 = vpop.f32.mrf.mxu0
  %v3207 = vadd.f32 %v3158, %v3206
  %3208 = vmatmul.bf16.gmra.mxu0 %v2049
  %v3209 = vpop.f32.mrf.mxu0
  %v3210 = vadd.f32 %v3161, %v3209
  %v3211 = vpop.f32.mrf.mxu0
  %v3212 = vadd.f32 %v3163, %v3211
  %3213 = vdwg.mxu0
  %3214 = vmatpush.bf16.msra.mxu0 %v2562
  %3215 = vmatpush.bf16.msra.mxu0 %v2558
  %3216 = vmatpush.bf16.msra.mxu0 %v2554
  %3217 = vmatpush.bf16.msra.mxu0 %v2550
  %3218 = vmatpush.bf16.msra.mxu0 %v2546
  %3219 = vmatpush.bf16.msra.mxu0 %v2542
  %3220 = vmatpush.bf16.msra.mxu0 %v2538
  %3221 = vmatpush.bf16.msra.mxu0 %v2534
  %3222 = vmatmul.bf16.gmra.mxu0 %v2022
  %v3223 = vpop.f32.mrf.mxu0
  %v3224 = vadd.f32 %v3175, %v3223
  %v3225 = vpop.f32.mrf.mxu0
  %v3226 = vadd.f32 %v3177, %v3225
  %3227 = vmatmul.bf16.gmra.mxu0 %v2026
  %v3228 = vpop.f32.mrf.mxu0
  %v3229 = vadd.f32 %v3180, %v3228
  %v3230 = vpop.f32.mrf.mxu0
  %v3231 = vadd.f32 %v3182, %v3230
  %3232 = vmatmul.bf16.gmra.mxu0 %v2030
  %v3233 = vpop.f32.mrf.mxu0
  %v3234 = vadd.f32 %v3185, %v3233
  %v3235 = vpop.f32.mrf.mxu0
  %v3236 = vadd.f32 %v3187, %v3235
  %3237 = vmatmul.bf16.gmra.mxu0 %v2034
  %v3238 = vpop.f32.mrf.mxu0
  %v3239 = vadd.f32 %v3190, %v3238
  %v3240 = vpop.f32.mrf.mxu0
  %v3241 = vadd.f32 %v3192, %v3240
  %3242 = vmatmul.bf16.gmra.mxu0 %v2038
  %v3243 = vpop.f32.mrf.mxu0
  %v3244 = vadd.f32 %v3195, %v3243
  %v3245 = vpop.f32.mrf.mxu0
  %v3246 = vadd.f32 %v3197, %v3245
  %3247 = vmatmul.bf16.gmra.mxu0 %v2042
  %v3248 = vpop.f32.mrf.mxu0
  %v3249 = vadd.f32 %v3200, %v3248
  %v3250 = vpop.f32.mrf.mxu0
  %v3251 = vadd.f32 %v3202, %v3250
  %3252 = vmatmul.bf16.gmra.mxu0 %v2046
  %v3253 = vpop.f32.mrf.mxu0
  %v3254 = vadd.f32 %v3205, %v3253
  %v3255 = vpop.f32.mrf.mxu0
  %v3256 = vadd.f32 %v3207, %v3255
  %3257 = vmatmul.bf16.gmra.mxu0 %v2050
  %v3258 = vpop.f32.mrf.mxu0
  %v3259 = vadd.f32 %v3210, %v3258
  %v3260 = vpop.f32.mrf.mxu0
  %v3261 = vadd.f32 %v3212, %v3260
  %3262 = vdwg.mxu0
  %3263 = vmatpush.bf16.msra.mxu0 %v2594
  %3264 = vmatpush.bf16.msra.mxu0 %v2590
  %3265 = vmatpush.bf16.msra.mxu0 %v2586
  %3266 = vmatpush.bf16.msra.mxu0 %v2582
  %3267 = vmatpush.bf16.msra.mxu0 %v2578
  %3268 = vmatpush.bf16.msra.mxu0 %v2574
  %3269 = vmatpush.bf16.msra.mxu0 %v2570
  %3270 = vmatpush.bf16.msra.mxu0 %v2566
  %3271 = vmatmul.bf16.gmra.mxu0 %v2023
  %v3272 = vpop.f32.mrf.mxu0
  %v3273 = vadd.f32 %v3224, %v3272
  %v3274 = vpop.f32.mrf.mxu0
  %v3275 = vadd.f32 %v3226, %v3274
  %3276 = vmatmul.bf16.gmra.mxu0 %v2027
  %v3277 = vpop.f32.mrf.mxu0
  %v3278 = vadd.f32 %v3229, %v3277
  %v3279 = vpop.f32.mrf.mxu0
  %v3280 = vadd.f32 %v3231, %v3279
  %3281 = vmatmul.bf16.gmra.mxu0 %v2031
  %v3282 = vpop.f32.mrf.mxu0
  %v3283 = vadd.f32 %v3234, %v3282
  %v3284 = vpop.f32.mrf.mxu0
  %v3285 = vadd.f32 %v3236, %v3284
  %3286 = vmatmul.bf16.gmra.mxu0 %v2035
  %v3287 = vpop.f32.mrf.mxu0
  %v3288 = vadd.f32 %v3239, %v3287
  %v3289 = vpop.f32.mrf.mxu0
  %v3290 = vadd.f32 %v3241, %v3289
  %3291 = vmatmul.bf16.gmra.mxu0 %v2039
  %v3292 = vpop.f32.mrf.mxu0
  %v3293 = vadd.f32 %v3244, %v3292
  %v3294 = vpop.f32.mrf.mxu0
  %v3295 = vadd.f32 %v3246, %v3294
  %3296 = vmatmul.bf16.gmra.mxu0 %v2043
  %v3297 = vpop.f32.mrf.mxu0
  %v3298 = vadd.f32 %v3249, %v3297
  %v3299 = vpop.f32.mrf.mxu0
  %v3300 = vadd.f32 %v3251, %v3299
  %3301 = vmatmul.bf16.gmra.mxu0 %v2047
  %v3302 = vpop.f32.mrf.mxu0
  %v3303 = vadd.f32 %v3254, %v3302
  %v3304 = vpop.f32.mrf.mxu0
  %v3305 = vadd.f32 %v3256, %v3304
  %3306 = vmatmul.bf16.gmra.mxu0 %v2051
  %v3307 = vpop.f32.mrf.mxu0
  %v3308 = vadd.f32 %v3259, %v3307
  %v3309 = vpop.f32.mrf.mxu0
  %v3310 = vadd.f32 %v3261, %v3309
  %3311 = vdwg.mxu0
  %3312 = vmatpush.bf16.msra.mxu0 %v2499
  %3313 = vmatpush.bf16.msra.mxu0 %v2495
  %3314 = vmatpush.bf16.msra.mxu0 %v2491
  %3315 = vmatpush.bf16.msra.mxu0 %v2487
  %3316 = vmatpush.bf16.msra.mxu0 %v2483
  %3317 = vmatpush.bf16.msra.mxu0 %v2479
  %3318 = vmatpush.bf16.msra.mxu0 %v2475
  %3319 = vmatpush.bf16.msra.mxu0 %v2471
  %3320 = vmatmul.bf16.gmra.mxu0 %v2020
  %v3321 = vpop.f32.mrf.mxu0
  %v3322 = vadd.f32 0.0, %v3321
  %v3323 = vpop.f32.mrf.mxu0
  %v3324 = vadd.f32 0.0, %v3323
  %3325 = vmatmul.bf16.gmra.mxu0 %v2024
  %v3326 = vpop.f32.mrf.mxu0
  %v3327 = vadd.f32 0.0, %v3326
  %v3328 = vpop.f32.mrf.mxu0
  %v3329 = vadd.f32 0.0, %v3328
  %3330 = vmatmul.bf16.gmra.mxu0 %v2028
  %v3331 = vpop.f32.mrf.mxu0
  %v3332 = vadd.f32 0.0, %v3331
  %v3333 = vpop.f32.mrf.mxu0
  %v3334 = vadd.f32 0.0, %v3333
  %3335 = vmatmul.bf16.gmra.mxu0 %v2032
  %v3336 = vpop.f32.mrf.mxu0
  %v3337 = vadd.f32 0.0, %v3336
  %v3338 = vpop.f32.mrf.mxu0
  %v3339 = vadd.f32 0.0, %v3338
  %3340 = vmatmul.bf16.gmra.mxu0 %v2036
  %v3341 = vpop.f32.mrf.mxu0
  %v3342 = vadd.f32 0.0, %v3341
  %v3343 = vpop.f32.mrf.mxu0
  %v3344 = vadd.f32 0.0, %v3343
  %3345 = vmatmul.bf16.gmra.mxu0 %v2040
  %v3346 = vpop.f32.mrf.mxu0
  %v3347 = vadd.f32 0.0, %v3346
  %v3348 = vpop.f32.mrf.mxu0
  %v3349 = vadd.f32 0.0, %v3348
  %3350 = vmatmul.bf16.gmra.mxu0 %v2044
  %v3351 = vpop.f32.mrf.mxu0
  %v3352 = vadd.f32 0.0, %v3351
  %v3353 = vpop.f32.mrf.mxu0
  %v3354 = vadd.f32 0.0, %v3353
  %3355 = vmatmul.bf16.gmra.mxu0 %v2048
  %v3356 = vpop.f32.mrf.mxu0
  %v3357 = vadd.f32 0.0, %v3356
  %v3358 = vpop.f32.mrf.mxu0
  %v3359 = vadd.f32 0.0, %v3358
  %3360 = vdwg.mxu0
  %3361 = vmatpush.bf16.msra.mxu0 %v2531
  %3362 = vmatpush.bf16.msra.mxu0 %v2527
  %3363 = vmatpush.bf16.msra.mxu0 %v2523
  %3364 = vmatpush.bf16.msra.mxu0 %v2519
  %3365 = vmatpush.bf16.msra.mxu0 %v2515
  %3366 = vmatpush.bf16.msra.mxu0 %v2511
  %3367 = vmatpush.bf16.msra.mxu0 %v2507
  %3368 = vmatpush.bf16.msra.mxu0 %v2503
  %3369 = vmatmul.bf16.gmra.mxu0 %v2021
  %v3370 = vpop.f32.mrf.mxu0
  %v3371 = vadd.f32 %v3322, %v3370
  %v3372 = vpop.f32.mrf.mxu0
  %v3373 = vadd.f32 %v3324, %v3372
  %3374 = vmatmul.bf16.gmra.mxu0 %v2025
  %v3375 = vpop.f32.mrf.mxu0
  %v3376 = vadd.f32 %v3327, %v3375
  %v3377 = vpop.f32.mrf.mxu0
  %v3378 = vadd.f32 %v3329, %v3377
  %3379 = vmatmul.bf16.gmra.mxu0 %v2029
  %v3380 = vpop.f32.mrf.mxu0
  %v3381 = vadd.f32 %v3332, %v3380
  %v3382 = vpop.f32.mrf.mxu0
  %v3383 = vadd.f32 %v3334, %v3382
  %3384 = vmatmul.bf16.gmra.mxu0 %v2033
  %v3385 = vpop.f32.mrf.mxu0
  %v3386 = vadd.f32 %v3337, %v3385
  %v3387 = vpop.f32.mrf.mxu0
  %v3388 = vadd.f32 %v3339, %v3387
  %3389 = vmatmul.bf16.gmra.mxu0 %v2037
  %v3390 = vpop.f32.mrf.mxu0
  %v3391 = vadd.f32 %v3342, %v3390
  %v3392 = vpop.f32.mrf.mxu0
  %v3393 = vadd.f32 %v3344, %v3392
  %3394 = vmatmul.bf16.gmra.mxu0 %v2041
  %v3395 = vpop.f32.mrf.mxu0
  %v3396 = vadd.f32 %v3347, %v3395
  %v3397 = vpop.f32.mrf.mxu0
  %v3398 = vadd.f32 %v3349, %v3397
  %3399 = vmatmul.bf16.gmra.mxu0 %v2045
  %v3400 = vpop.f32.mrf.mxu0
  %v3401 = vadd.f32 %v3352, %v3400
  %v3402 = vpop.f32.mrf.mxu0
  %v3403 = vadd.f32 %v3354, %v3402
  %3404 = vmatmul.bf16.gmra.mxu0 %v2049
  %v3405 = vpop.f32.mrf.mxu0
  %v3406 = vadd.f32 %v3357, %v3405
  %v3407 = vpop.f32.mrf.mxu0
  %v3408 = vadd.f32 %v3359, %v3407
  %3409 = vdwg.mxu0
  %3410 = vmatpush.bf16.msra.mxu0 %v2563
  %3411 = vmatpush.bf16.msra.mxu0 %v2559
  %3412 = vmatpush.bf16.msra.mxu0 %v2555
  %3413 = vmatpush.bf16.msra.mxu0 %v2551
  %3414 = vmatpush.bf16.msra.mxu0 %v2547
  %3415 = vmatpush.bf16.msra.mxu0 %v2543
  %3416 = vmatpush.bf16.msra.mxu0 %v2539
  %3417 = vmatpush.bf16.msra.mxu0 %v2535
  %3418 = vmatmul.bf16.gmra.mxu0 %v2022
  %v3419 = vpop.f32.mrf.mxu0
  %v3420 = vadd.f32 %v3371, %v3419
  %v3421 = vpop.f32.mrf.mxu0
  %v3422 = vadd.f32 %v3373, %v3421
  %3423 = vmatmul.bf16.gmra.mxu0 %v2026
  %v3424 = vpop.f32.mrf.mxu0
  %v3425 = vadd.f32 %v3376, %v3424
  %v3426 = vpop.f32.mrf.mxu0
  %v3427 = vadd.f32 %v3378, %v3426
  %3428 = vmatmul.bf16.gmra.mxu0 %v2030
  %v3429 = vpop.f32.mrf.mxu0
  %v3430 = vadd.f32 %v3381, %v3429
  %v3431 = vpop.f32.mrf.mxu0
  %v3432 = vadd.f32 %v3383, %v3431
  %3433 = vmatmul.bf16.gmra.mxu0 %v2034
  %v3434 = vpop.f32.mrf.mxu0
  %v3435 = vadd.f32 %v3386, %v3434
  %v3436 = vpop.f32.mrf.mxu0
  %v3437 = vadd.f32 %v3388, %v3436
  %3438 = vmatmul.bf16.gmra.mxu0 %v2038
  %v3439 = vpop.f32.mrf.mxu0
  %v3440 = vadd.f32 %v3391, %v3439
  %v3441 = vpop.f32.mrf.mxu0
  %v3442 = vadd.f32 %v3393, %v3441
  %3443 = vmatmul.bf16.gmra.mxu0 %v2042
  %v3444 = vpop.f32.mrf.mxu0
  %v3445 = vadd.f32 %v3396, %v3444
  %v3446 = vpop.f32.mrf.mxu0
  %v3447 = vadd.f32 %v3398, %v3446
  %3448 = vmatmul.bf16.gmra.mxu0 %v2046
  %v3449 = vpop.f32.mrf.mxu0
  %v3450 = vadd.f32 %v3401, %v3449
  %v3451 = vpop.f32.mrf.mxu0
  %v3452 = vadd.f32 %v3403, %v3451
  %3453 = vmatmul.bf16.gmra.mxu0 %v2050
  %v3454 = vpop.f32.mrf.mxu0
  %v3455 = vadd.f32 %v3406, %v3454
  %v3456 = vpop.f32.mrf.mxu0
  %v3457 = vadd.f32 %v3408, %v3456
  %3458 = vdwg.mxu0
  %3459 = vmatpush.bf16.msra.mxu0 %v2595
  %3460 = vmatpush.bf16.msra.mxu0 %v2591
  %3461 = vmatpush.bf16.msra.mxu0 %v2587
  %3462 = vmatpush.bf16.msra.mxu0 %v2583
  %3463 = vmatpush.bf16.msra.mxu0 %v2579
  %3464 = vmatpush.bf16.msra.mxu0 %v2575
  %3465 = vmatpush.bf16.msra.mxu0 %v2571
  %3466 = vmatpush.bf16.msra.mxu0 %v2567
  %3467 = vmatmul.bf16.gmra.mxu0 %v2023
  %v3468 = vpop.f32.mrf.mxu0
  %v3469 = vadd.f32 %v3420, %v3468
  %v3470 = vpop.f32.mrf.mxu0
  %v3471 = vadd.f32 %v3422, %v3470
  %3472 = vmatmul.bf16.gmra.mxu0 %v2027
  %v3473 = vpop.f32.mrf.mxu0
  %v3474 = vadd.f32 %v3425, %v3473
  %v3475 = vpop.f32.mrf.mxu0
  %v3476 = vadd.f32 %v3427, %v3475
  %3477 = vmatmul.bf16.gmra.mxu0 %v2031
  %v3478 = vpop.f32.mrf.mxu0
  %v3479 = vadd.f32 %v3430, %v3478
  %v3480 = vpop.f32.mrf.mxu0
  %v3481 = vadd.f32 %v3432, %v3480
  %3482 = vmatmul.bf16.gmra.mxu0 %v2035
  %v3483 = vpop.f32.mrf.mxu0
  %v3484 = vadd.f32 %v3435, %v3483
  %v3485 = vpop.f32.mrf.mxu0
  %v3486 = vadd.f32 %v3437, %v3485
  %3487 = vmatmul.bf16.gmra.mxu0 %v2039
  %v3488 = vpop.f32.mrf.mxu0
  %v3489 = vadd.f32 %v3440, %v3488
  %v3490 = vpop.f32.mrf.mxu0
  %v3491 = vadd.f32 %v3442, %v3490
  %3492 = vmatmul.bf16.gmra.mxu0 %v2043
  %v3493 = vpop.f32.mrf.mxu0
  %v3494 = vadd.f32 %v3445, %v3493
  %v3495 = vpop.f32.mrf.mxu0
  %v3496 = vadd.f32 %v3447, %v3495
  %3497 = vmatmul.bf16.gmra.mxu0 %v2047
  %v3498 = vpop.f32.mrf.mxu0
  %v3499 = vadd.f32 %v3450, %v3498
  %v3500 = vpop.f32.mrf.mxu0
  %v3501 = vadd.f32 %v3452, %v3500
  %3502 = vmatmul.bf16.gmra.mxu0 %v2051
  %v3503 = vpop.f32.mrf.mxu0
  %v3504 = vadd.f32 %v3455, %v3503
  %v3505 = vpop.f32.mrf.mxu0
  %v3506 = vadd.f32 %v3457, %v3505
  %3507 = vdwg.mxu0
  %v3508 = vld [vmem:[%s4] ss:$2 sm:$0x3]
  %s3509 = scalar_lea.vmem %s4, 1
  %v3510 = vld [vmem:[%s3509] ss:$2 sm:$0x3]
  %v3512 = vperm.slane %v3508, 0
  %v3513 = vperm.slane %v3508, 1
  %v3516 = vmul.f32 %v3512, %v2881
  %v3517 = vmul.f32 %v3513, %v3077
  %v3518 = vmul.f32 %v3512, %v2883
  %v3519 = vmul.f32 %v3513, %v3079
  %v3520 = vmul.f32 %v3512, %v2886
  %v3521 = vmul.f32 %v3513, %v3082
  %v3522 = vmul.f32 %v3512, %v2888
  %v3523 = vmul.f32 %v3513, %v3084
  %v3524 = vmul.f32 %v3512, %v2891
  %v3525 = vmul.f32 %v3513, %v3087
  %v3526 = vmul.f32 %v3512, %v2893
  %v3527 = vmul.f32 %v3513, %v3089
  %v3528 = vmul.f32 %v3512, %v2896
  %v3529 = vmul.f32 %v3513, %v3092
  %v3530 = vmul.f32 %v3512, %v2898
  %v3531 = vmul.f32 %v3513, %v3094
  %v3532 = vmul.f32 %v3512, %v2901
  %v3533 = vmul.f32 %v3513, %v3097
  %v3534 = vmul.f32 %v3512, %v2903
  %v3535 = vmul.f32 %v3513, %v3099
  %v3536 = vmul.f32 %v3512, %v2906
  %v3537 = vmul.f32 %v3513, %v3102
  %v3538 = vmul.f32 %v3512, %v2908
  %v3539 = vmul.f32 %v3513, %v3104
  %v3540 = vmul.f32 %v3512, %v2911
  %v3541 = vmul.f32 %v3513, %v3107
  %v3542 = vmul.f32 %v3512, %v2913
  %v3543 = vmul.f32 %v3513, %v3109
  %v3544 = vmul.f32 %v3512, %v2916
  %v3545 = vmul.f32 %v3513, %v3112
  %v3546 = vmul.f32 %v3512, %v2918
  %v3547 = vmul.f32 %v3513, %v3114
  %v3549 = vperm.slane %v3510, 0
  %v3550 = vperm.slane %v3510, 1
  %v3553 = vmul.f32 %v3549, %v3273
  %v3554 = vmul.f32 %v3550, %v3469
  %v3555 = vmul.f32 %v3549, %v3275
  %v3556 = vmul.f32 %v3550, %v3471
  %v3557 = vmul.f32 %v3549, %v3278
  %v3558 = vmul.f32 %v3550, %v3474
  %v3559 = vmul.f32 %v3549, %v3280
  %v3560 = vmul.f32 %v3550, %v3476
  %v3561 = vmul.f32 %v3549, %v3283
  %v3562 = vmul.f32 %v3550, %v3479
  %v3563 = vmul.f32 %v3549, %v3285
  %v3564 = vmul.f32 %v3550, %v3481
  %v3565 = vmul.f32 %v3549, %v3288
  %v3566 = vmul.f32 %v3550, %v3484
  %v3567 = vmul.f32 %v3549, %v3290
  %v3568 = vmul.f32 %v3550, %v3486
  %v3569 = vmul.f32 %v3549, %v3293
  %v3570 = vmul.f32 %v3550, %v3489
  %v3571 = vmul.f32 %v3549, %v3295
  %v3572 = vmul.f32 %v3550, %v3491
  %v3573 = vmul.f32 %v3549, %v3298
  %v3574 = vmul.f32 %v3550, %v3494
  %v3575 = vmul.f32 %v3549, %v3300
  %v3576 = vmul.f32 %v3550, %v3496
  %v3577 = vmul.f32 %v3549, %v3303
  %v3578 = vmul.f32 %v3550, %v3499
  %v3579 = vmul.f32 %v3549, %v3305
  %v3580 = vmul.f32 %v3550, %v3501
  %v3581 = vmul.f32 %v3549, %v3308
  %v3582 = vmul.f32 %v3550, %v3504
  %v3583 = vmul.f32 %v3549, %v3310
  %v3584 = vmul.f32 %v3550, %v3506
  %v3585 = vadd.f32 %v3516, %v3553
  %v3586 = vadd.f32 %v3517, %v3554
  %v3587 = vadd.f32 %v3518, %v3555
  %v3588 = vadd.f32 %v3519, %v3556
  %v3589 = vadd.f32 %v3520, %v3557
  %v3590 = vadd.f32 %v3521, %v3558
  %v3591 = vadd.f32 %v3522, %v3559
  %v3592 = vadd.f32 %v3523, %v3560
  %v3593 = vadd.f32 %v3524, %v3561
  %v3594 = vadd.f32 %v3525, %v3562
  %v3595 = vadd.f32 %v3526, %v3563
  %v3596 = vadd.f32 %v3527, %v3564
  %v3597 = vadd.f32 %v3528, %v3565
  %v3598 = vadd.f32 %v3529, %v3566
  %v3599 = vadd.f32 %v3530, %v3567
  %v3600 = vadd.f32 %v3531, %v3568
  %v3601 = vadd.f32 %v3532, %v3569
  %v3602 = vadd.f32 %v3533, %v3570
  %v3603 = vadd.f32 %v3534, %v3571
  %v3604 = vadd.f32 %v3535, %v3572
  %v3605 = vadd.f32 %v3536, %v3573
  %v3606 = vadd.f32 %v3537, %v3574
  %v3607 = vadd.f32 %v3538, %v3575
  %v3608 = vadd.f32 %v3539, %v3576
  %v3609 = vadd.f32 %v3540, %v3577
  %v3610 = vadd.f32 %v3541, %v3578
  %v3611 = vadd.f32 %v3542, %v3579
  %v3612 = vadd.f32 %v3543, %v3580
  %v3613 = vadd.f32 %v3544, %v3581
  %v3614 = vadd.f32 %v3545, %v3582
  %v3615 = vadd.f32 %v3546, %v3583
  %v3616 = vadd.f32 %v3547, %v3584
  %v3617 = vmul.f32 %v3512, %v3273
  %v3618 = vmul.f32 %v3513, %v3469
  %v3619 = vmul.f32 %v3512, %v3275
  %v3620 = vmul.f32 %v3513, %v3471
  %v3621 = vmul.f32 %v3512, %v3278
  %v3622 = vmul.f32 %v3513, %v3474
  %v3623 = vmul.f32 %v3512, %v3280
  %v3624 = vmul.f32 %v3513, %v3476
  %v3625 = vmul.f32 %v3512, %v3283
  %v3626 = vmul.f32 %v3513, %v3479
  %v3627 = vmul.f32 %v3512, %v3285
  %v3628 = vmul.f32 %v3513, %v3481
  %v3629 = vmul.f32 %v3512, %v3288
  %v3630 = vmul.f32 %v3513, %v3484
  %v3631 = vmul.f32 %v3512, %v3290
  %v3632 = vmul.f32 %v3513, %v3486
  %v3633 = vmul.f32 %v3512, %v3293
  %v3634 = vmul.f32 %v3513, %v3489
  %v3635 = vmul.f32 %v3512, %v3295
  %v3636 = vmul.f32 %v3513, %v3491
  %v3637 = vmul.f32 %v3512, %v3298
  %v3638 = vmul.f32 %v3513, %v3494
  %v3639 = vmul.f32 %v3512, %v3300
  %v3640 = vmul.f32 %v3513, %v3496
  %v3641 = vmul.f32 %v3512, %v3303
  %v3642 = vmul.f32 %v3513, %v3499
  %v3643 = vmul.f32 %v3512, %v3305
  %v3644 = vmul.f32 %v3513, %v3501
  %v3645 = vmul.f32 %v3512, %v3308
  %v3646 = vmul.f32 %v3513, %v3504
  %v3647 = vmul.f32 %v3512, %v3310
  %v3648 = vmul.f32 %v3513, %v3506
  %v3649 = vmul.f32 %v3549, %v2881
  %v3650 = vmul.f32 %v3550, %v3077
  %v3651 = vmul.f32 %v3549, %v2883
  %v3652 = vmul.f32 %v3550, %v3079
  %v3653 = vmul.f32 %v3549, %v2886
  %v3654 = vmul.f32 %v3550, %v3082
  %v3655 = vmul.f32 %v3549, %v2888
  %v3656 = vmul.f32 %v3550, %v3084
  %v3657 = vmul.f32 %v3549, %v2891
  %v3658 = vmul.f32 %v3550, %v3087
  %v3659 = vmul.f32 %v3549, %v2893
  %v3660 = vmul.f32 %v3550, %v3089
  %v3661 = vmul.f32 %v3549, %v2896
  %v3662 = vmul.f32 %v3550, %v3092
  %v3663 = vmul.f32 %v3549, %v2898
  %v3664 = vmul.f32 %v3550, %v3094
  %v3665 = vmul.f32 %v3549, %v2901
  %v3666 = vmul.f32 %v3550, %v3097
  %v3667 = vmul.f32 %v3549, %v2903
  %v3668 = vmul.f32 %v3550, %v3099
  %v3669 = vmul.f32 %v3549, %v2906
  %v3670 = vmul.f32 %v3550, %v3102
  %v3671 = vmul.f32 %v3549, %v2908
  %v3672 = vmul.f32 %v3550, %v3104
  %v3673 = vmul.f32 %v3549, %v2911
  %v3674 = vmul.f32 %v3550, %v3107
  %v3675 = vmul.f32 %v3549, %v2913
  %v3676 = vmul.f32 %v3550, %v3109
  %v3677 = vmul.f32 %v3549, %v2916
  %v3678 = vmul.f32 %v3550, %v3112
  %v3679 = vmul.f32 %v3549, %v2918
  %v3680 = vmul.f32 %v3550, %v3114
  %v3681 = vsub.f32 %v3617, %v3649
  %v3682 = vsub.f32 %v3618, %v3650
  %v3683 = vsub.f32 %v3619, %v3651
  %v3684 = vsub.f32 %v3620, %v3652
  %v3685 = vsub.f32 %v3621, %v3653
  %v3686 = vsub.f32 %v3622, %v3654
  %v3687 = vsub.f32 %v3623, %v3655
  %v3688 = vsub.f32 %v3624, %v3656
  %v3689 = vsub.f32 %v3625, %v3657
  %v3690 = vsub.f32 %v3626, %v3658
  %v3691 = vsub.f32 %v3627, %v3659
  %v3692 = vsub.f32 %v3628, %v3660
  %v3693 = vsub.f32 %v3629, %v3661
  %v3694 = vsub.f32 %v3630, %v3662
  %v3695 = vsub.f32 %v3631, %v3663
  %v3696 = vsub.f32 %v3632, %v3664
  %v3697 = vsub.f32 %v3633, %v3665
  %v3698 = vsub.f32 %v3634, %v3666
  %v3699 = vsub.f32 %v3635, %v3667
  %v3700 = vsub.f32 %v3636, %v3668
  %v3701 = vsub.f32 %v3637, %v3669
  %v3702 = vsub.f32 %v3638, %v3670
  %v3703 = vsub.f32 %v3639, %v3671
  %v3704 = vsub.f32 %v3640, %v3672
  %v3705 = vsub.f32 %v3641, %v3673
  %v3706 = vsub.f32 %v3642, %v3674
  %v3707 = vsub.f32 %v3643, %v3675
  %v3708 = vsub.f32 %v3644, %v3676
  %v3709 = vsub.f32 %v3645, %v3677
  %v3710 = vsub.f32 %v3646, %v3678
  %v3711 = vsub.f32 %v3647, %v3679
  %v3712 = vsub.f32 %v3648, %v3680
  %v3713 = vlaneseq
  %v3714 = vand.u32 %v3713, 127
  %v3715 = vadd.s32 %v3714, 128
  %vm3716 = vcmp.eq.s32.totalorder %v3714, 0
  %vm3717 = vcmp.eq.s32.totalorder %v3715, 0
  %v3718 = vadd.f32 %v1169, %v3585
  %v3719 = vadd.f32 %v1365, %v3586
  %v3720 = vadd.f32 %v1171, %v3587
  %v3721 = vadd.f32 %v1367, %v3588
  %v3722 = vadd.f32 %v1174, %v3589
  %v3723 = vadd.f32 %v1370, %v3590
  %v3724 = vadd.f32 %v1176, %v3591
  %v3725 = vadd.f32 %v1372, %v3592
  %v3726 = vadd.f32 %v1179, %v3593
  %v3727 = vadd.f32 %v1375, %v3594
  %v3728 = vadd.f32 %v1181, %v3595
  %v3729 = vadd.f32 %v1377, %v3596
  %v3730 = vadd.f32 %v1184, %v3597
  %v3731 = vadd.f32 %v1380, %v3598
  %v3732 = vadd.f32 %v1186, %v3599
  %v3733 = vadd.f32 %v1382, %v3600
  %v3734 = vadd.f32 %v1189, %v3601
  %v3735 = vadd.f32 %v1385, %v3602
  %v3736 = vadd.f32 %v1191, %v3603
  %v3737 = vadd.f32 %v1387, %v3604
  %v3738 = vadd.f32 %v1194, %v3605
  %v3739 = vadd.f32 %v1390, %v3606
  %v3740 = vadd.f32 %v1196, %v3607
  %v3741 = vadd.f32 %v1392, %v3608
  %v3742 = vadd.f32 %v1199, %v3609
  %v3743 = vadd.f32 %v1395, %v3610
  %v3744 = vadd.f32 %v1201, %v3611
  %v3745 = vadd.f32 %v1397, %v3612
  %v3746 = vadd.f32 %v1204, %v3613
  %v3747 = vadd.f32 %v1400, %v3614
  %v3748 = vadd.f32 %v1206, %v3615
  %v3749 = vadd.f32 %v1402, %v3616
  %v3750 = vadd.f32 %v1561, %v3681
  %v3751 = vadd.f32 %v1757, %v3682
  %v3752 = vadd.f32 %v1563, %v3683
  %v3753 = vadd.f32 %v1759, %v3684
  %v3754 = vadd.f32 %v1566, %v3685
  %v3755 = vadd.f32 %v1762, %v3686
  %v3756 = vadd.f32 %v1568, %v3687
  %v3757 = vadd.f32 %v1764, %v3688
  %v3758 = vadd.f32 %v1571, %v3689
  %v3759 = vadd.f32 %v1767, %v3690
  %v3760 = vadd.f32 %v1573, %v3691
  %v3761 = vadd.f32 %v1769, %v3692
  %v3762 = vadd.f32 %v1576, %v3693
  %v3763 = vadd.f32 %v1772, %v3694
  %v3764 = vadd.f32 %v1578, %v3695
  %v3765 = vadd.f32 %v1774, %v3696
  %v3766 = vadd.f32 %v1581, %v3697
  %v3767 = vadd.f32 %v1777, %v3698
  %v3768 = vadd.f32 %v1583, %v3699
  %v3769 = vadd.f32 %v1779, %v3700
  %v3770 = vadd.f32 %v1586, %v3701
  %v3771 = vadd.f32 %v1782, %v3702
  %v3772 = vadd.f32 %v1588, %v3703
  %v3773 = vadd.f32 %v1784, %v3704
  %v3774 = vadd.f32 %v1591, %v3705
  %v3775 = vadd.f32 %v1787, %v3706
  %v3776 = vadd.f32 %v1593, %v3707
  %v3777 = vadd.f32 %v1789, %v3708
  %v3778 = vadd.f32 %v1596, %v3709
  %v3779 = vadd.f32 %v1792, %v3710
  %v3780 = vadd.f32 %v1598, %v3711
  %v3781 = vadd.f32 %v1794, %v3712
  %v3782 = vsel %vm3716, 0.0, %v3750
  %v3783 = vsel %vm3717, 0.0, %v3751
  %v3784 = vsel %vm3716, 0.0, %v3752
  %v3785 = vsel %vm3717, 0.0, %v3753
  %v3786 = vsel %vm3716, 0.0, %v3754
  %v3787 = vsel %vm3717, 0.0, %v3755
  %v3788 = vsel %vm3716, 0.0, %v3756
  %v3789 = vsel %vm3717, 0.0, %v3757
  %v3790 = vsel %vm3716, 0.0, %v3758
  %v3791 = vsel %vm3717, 0.0, %v3759
  %v3792 = vsel %vm3716, 0.0, %v3760
  %v3793 = vsel %vm3717, 0.0, %v3761
  %v3794 = vsel %vm3716, 0.0, %v3762
  %v3795 = vsel %vm3717, 0.0, %v3763
  %v3796 = vsel %vm3716, 0.0, %v3764
  %v3797 = vsel %vm3717, 0.0, %v3765
  %v3798 = vsel %vm3716, 0.0, %v3766
  %v3799 = vsel %vm3717, 0.0, %v3767
  %v3800 = vsel %vm3716, 0.0, %v3768
  %v3801 = vsel %vm3717, 0.0, %v3769
  %v3802 = vsel %vm3716, 0.0, %v3770
  %v3803 = vsel %vm3717, 0.0, %v3771
  %v3804 = vsel %vm3716, 0.0, %v3772
  %v3805 = vsel %vm3717, 0.0, %v3773
  %v3806 = vsel %vm3716, 0.0, %v3774
  %v3807 = vsel %vm3717, 0.0, %v3775
  %v3808 = vsel %vm3716, 0.0, %v3776
  %v3809 = vsel %vm3717, 0.0, %v3777
  %v3810 = vsel %vm3716, 0.0, %v3778
  %v3811 = vsel %vm3717, 0.0, %v3779
  %v3812 = vsel %vm3716, 0.0, %v3780
  %v3813 = vsel %vm3717, 0.0, %v3781
  %v3814 = vsub.f32 %v1169, %v3585
  %v3815 = vsub.f32 %v1365, %v3586
  %v3816 = vsub.f32 %v1171, %v3587
  %v3817 = vsub.f32 %v1367, %v3588
  %v3818 = vsub.f32 %v1174, %v3589
  %v3819 = vsub.f32 %v1370, %v3590
  %v3820 = vsub.f32 %v1176, %v3591
  %v3821 = vsub.f32 %v1372, %v3592
  %v3822 = vsub.f32 %v1179, %v3593
  %v3823 = vsub.f32 %v1375, %v3594
  %v3824 = vsub.f32 %v1181, %v3595
  %v3825 = vsub.f32 %v1377, %v3596
  %v3826 = vsub.f32 %v1184, %v3597
  %v3827 = vsub.f32 %v1380, %v3598
  %v3828 = vsub.f32 %v1186, %v3599
  %v3829 = vsub.f32 %v1382, %v3600
  %v3830 = vsub.f32 %v1189, %v3601
  %v3831 = vsub.f32 %v1385, %v3602
  %v3832 = vsub.f32 %v1191, %v3603
  %v3833 = vsub.f32 %v1387, %v3604
  %v3834 = vsub.f32 %v1194, %v3605
  %v3835 = vsub.f32 %v1390, %v3606
  %v3836 = vsub.f32 %v1196, %v3607
  %v3837 = vsub.f32 %v1392, %v3608
  %v3838 = vsub.f32 %v1199, %v3609
  %v3839 = vsub.f32 %v1395, %v3610
  %v3840 = vsub.f32 %v1201, %v3611
  %v3841 = vsub.f32 %v1397, %v3612
  %v3842 = vsub.f32 %v1204, %v3613
  %v3843 = vsub.f32 %v1400, %v3614
  %v3844 = vsub.f32 %v1206, %v3615
  %v3845 = vsub.f32 %v1402, %v3616
  %v3846 = vsel %vm3716, %v1561, %v3814
  %v3847 = vsel %vm3717, %v1757, %v3815
  %v3848 = vsel %vm3716, %v1563, %v3816
  %v3849 = vsel %vm3717, %v1759, %v3817
  %v3850 = vsel %vm3716, %v1566, %v3818
  %v3851 = vsel %vm3717, %v1762, %v3819
  %v3852 = vsel %vm3716, %v1568, %v3820
  %v3853 = vsel %vm3717, %v1764, %v3821
  %v3854 = vsel %vm3716, %v1571, %v3822
  %v3855 = vsel %vm3717, %v1767, %v3823
  %v3856 = vsel %vm3716, %v1573, %v3824
  %v3857 = vsel %vm3717, %v1769, %v3825
  %v3858 = vsel %vm3716, %v1576, %v3826
  %v3859 = vsel %vm3717, %v1772, %v3827
  %v3860 = vsel %vm3716, %v1578, %v3828
  %v3861 = vsel %vm3717, %v1774, %v3829
  %v3862 = vsel %vm3716, %v1581, %v3830
  %v3863 = vsel %vm3717, %v1777, %v3831
  %v3864 = vsel %vm3716, %v1583, %v3832
  %v3865 = vsel %vm3717, %v1779, %v3833
  %v3866 = vsel %vm3716, %v1586, %v3834
  %v3867 = vsel %vm3717, %v1782, %v3835
  %v3868 = vsel %vm3716, %v1588, %v3836
  %v3869 = vsel %vm3717, %v1784, %v3837
  %v3870 = vsel %vm3716, %v1591, %v3838
  %v3871 = vsel %vm3717, %v1787, %v3839
  %v3872 = vsel %vm3716, %v1593, %v3840
  %v3873 = vsel %vm3717, %v1789, %v3841
  %v3874 = vsel %vm3716, %v1596, %v3842
  %v3875 = vsel %vm3717, %v1792, %v3843
  %v3876 = vsel %vm3716, %v1598, %v3844
  %v3877 = vsel %vm3717, %v1794, %v3845
  %v3878 = vsub.f32 %v1561, %v3681
  %v3879 = vsub.f32 %v1757, %v3682
  %v3880 = vsub.f32 %v1563, %v3683
  %v3881 = vsub.f32 %v1759, %v3684
  %v3882 = vsub.f32 %v1566, %v3685
  %v3883 = vsub.f32 %v1762, %v3686
  %v3884 = vsub.f32 %v1568, %v3687
  %v3885 = vsub.f32 %v1764, %v3688
  %v3886 = vsub.f32 %v1571, %v3689
  %v3887 = vsub.f32 %v1767, %v3690
  %v3888 = vsub.f32 %v1573, %v3691
  %v3889 = vsub.f32 %v1769, %v3692
  %v3890 = vsub.f32 %v1576, %v3693
  %v3891 = vsub.f32 %v1772, %v3694
  %v3892 = vsub.f32 %v1578, %v3695
  %v3893 = vsub.f32 %v1774, %v3696
  %v3894 = vsub.f32 %v1581, %v3697
  %v3895 = vsub.f32 %v1777, %v3698
  %v3896 = vsub.f32 %v1583, %v3699
  %v3897 = vsub.f32 %v1779, %v3700
  %v3898 = vsub.f32 %v1586, %v3701
  %v3899 = vsub.f32 %v1782, %v3702
  %v3900 = vsub.f32 %v1588, %v3703
  %v3901 = vsub.f32 %v1784, %v3704
  %v3902 = vsub.f32 %v1591, %v3705
  %v3903 = vsub.f32 %v1787, %v3706
  %v3904 = vsub.f32 %v1593, %v3707
  %v3905 = vsub.f32 %v1789, %v3708
  %v3906 = vsub.f32 %v1596, %v3709
  %v3907 = vsub.f32 %v1792, %v3710
  %v3908 = vsub.f32 %v1598, %v3711
  %v3909 = vsub.f32 %v1794, %v3712
  %v3910 = vsel %vm3716, %v3273, %v3878
  %v3911 = vsel %vm3717, %v3469, %v3879
  %v3912 = vsel %vm3716, %v3275, %v3880
  %v3913 = vsel %vm3717, %v3471, %v3881
  %v3914 = vsel %vm3716, %v3278, %v3882
  %v3915 = vsel %vm3717, %v3474, %v3883
  %v3916 = vsel %vm3716, %v3280, %v3884
  %v3917 = vsel %vm3717, %v3476, %v3885
  %v3918 = vsel %vm3716, %v3283, %v3886
  %v3919 = vsel %vm3717, %v3479, %v3887
  %v3920 = vsel %vm3716, %v3285, %v3888
  %v3921 = vsel %vm3717, %v3481, %v3889
  %v3922 = vsel %vm3716, %v3288, %v3890
  %v3923 = vsel %vm3717, %v3484, %v3891
  %v3924 = vsel %vm3716, %v3290, %v3892
  %v3925 = vsel %vm3717, %v3486, %v3893
  %v3926 = vsel %vm3716, %v3293, %v3894
  %v3927 = vsel %vm3717, %v3489, %v3895
  %v3928 = vsel %vm3716, %v3295, %v3896
  %v3929 = vsel %vm3717, %v3491, %v3897
  %v3930 = vsel %vm3716, %v3298, %v3898
  %v3931 = vsel %vm3717, %v3494, %v3899
  %v3932 = vsel %vm3716, %v3300, %v3900
  %v3933 = vsel %vm3717, %v3496, %v3901
  %v3934 = vsel %vm3716, %v3303, %v3902
  %v3935 = vsel %vm3717, %v3499, %v3903
  %v3936 = vsel %vm3716, %v3305, %v3904
  %v3937 = vsel %vm3717, %v3501, %v3905
  %v3938 = vsel %vm3716, %v3308, %v3906
  %v3939 = vsel %vm3717, %v3504, %v3907
  %v3940 = vsel %vm3716, %v3310, %v3908
  %v3941 = vsel %vm3717, %v3506, %v3909
  %v3942 = vmul.f32 %v3718, %v3718
  %v3943 = vmul.f32 %v3719, %v3719
  %v3944 = vmul.f32 %v3720, %v3720
  %v3945 = vmul.f32 %v3721, %v3721
  %v3946 = vmul.f32 %v3722, %v3722
  %v3947 = vmul.f32 %v3723, %v3723
  %v3948 = vmul.f32 %v3724, %v3724
  %v3949 = vmul.f32 %v3725, %v3725
  %v3950 = vmul.f32 %v3726, %v3726
  %v3951 = vmul.f32 %v3727, %v3727
  %v3952 = vmul.f32 %v3728, %v3728
  %v3953 = vmul.f32 %v3729, %v3729
  %v3954 = vmul.f32 %v3730, %v3730
  %v3955 = vmul.f32 %v3731, %v3731
  %v3956 = vmul.f32 %v3732, %v3732
  %v3957 = vmul.f32 %v3733, %v3733
  %v3958 = vmul.f32 %v3734, %v3734
  %v3959 = vmul.f32 %v3735, %v3735
  %v3960 = vmul.f32 %v3736, %v3736
  %v3961 = vmul.f32 %v3737, %v3737
  %v3962 = vmul.f32 %v3738, %v3738
  %v3963 = vmul.f32 %v3739, %v3739
  %v3964 = vmul.f32 %v3740, %v3740
  %v3965 = vmul.f32 %v3741, %v3741
  %v3966 = vmul.f32 %v3742, %v3742
  %v3967 = vmul.f32 %v3743, %v3743
  %v3968 = vmul.f32 %v3744, %v3744
  %v3969 = vmul.f32 %v3745, %v3745
  %v3970 = vmul.f32 %v3746, %v3746
  %v3971 = vmul.f32 %v3747, %v3747
  %v3972 = vmul.f32 %v3748, %v3748
  %v3973 = vmul.f32 %v3749, %v3749
  %v3974 = vmul.f32 %v3782, %v3782
  %v3975 = vmul.f32 %v3783, %v3783
  %v3976 = vmul.f32 %v3784, %v3784
  %v3977 = vmul.f32 %v3785, %v3785
  %v3978 = vmul.f32 %v3786, %v3786
  %v3979 = vmul.f32 %v3787, %v3787
  %v3980 = vmul.f32 %v3788, %v3788
  %v3981 = vmul.f32 %v3789, %v3789
  %v3982 = vmul.f32 %v3790, %v3790
  %v3983 = vmul.f32 %v3791, %v3791
  %v3984 = vmul.f32 %v3792, %v3792
  %v3985 = vmul.f32 %v3793, %v3793
  %v3986 = vmul.f32 %v3794, %v3794
  %v3987 = vmul.f32 %v3795, %v3795
  %v3988 = vmul.f32 %v3796, %v3796
  %v3989 = vmul.f32 %v3797, %v3797
  %v3990 = vmul.f32 %v3798, %v3798
  %v3991 = vmul.f32 %v3799, %v3799
  %v3992 = vmul.f32 %v3800, %v3800
  %v3993 = vmul.f32 %v3801, %v3801
  %v3994 = vmul.f32 %v3802, %v3802
  %v3995 = vmul.f32 %v3803, %v3803
  %v3996 = vmul.f32 %v3804, %v3804
  %v3997 = vmul.f32 %v3805, %v3805
  %v3998 = vmul.f32 %v3806, %v3806
  %v3999 = vmul.f32 %v3807, %v3807
  %v4000 = vmul.f32 %v3808, %v3808
  %v4001 = vmul.f32 %v3809, %v3809
  %v4002 = vmul.f32 %v3810, %v3810
  %v4003 = vmul.f32 %v3811, %v3811
  %v4004 = vmul.f32 %v3812, %v3812
  %v4005 = vmul.f32 %v3813, %v3813
  %v4006 = vadd.f32 %v3942, %v3974
  %v4007 = vadd.f32 %v3943, %v3975
  %v4008 = vadd.f32 %v3944, %v3976
  %v4009 = vadd.f32 %v3945, %v3977
  %v4010 = vadd.f32 %v3946, %v3978
  %v4011 = vadd.f32 %v3947, %v3979
  %v4012 = vadd.f32 %v3948, %v3980
  %v4013 = vadd.f32 %v3949, %v3981
  %v4014 = vadd.f32 %v3950, %v3982
  %v4015 = vadd.f32 %v3951, %v3983
  %v4016 = vadd.f32 %v3952, %v3984
  %v4017 = vadd.f32 %v3953, %v3985
  %v4018 = vadd.f32 %v3954, %v3986
  %v4019 = vadd.f32 %v3955, %v3987
  %v4020 = vadd.f32 %v3956, %v3988
  %v4021 = vadd.f32 %v3957, %v3989
  %v4022 = vadd.f32 %v3958, %v3990
  %v4023 = vadd.f32 %v3959, %v3991
  %v4024 = vadd.f32 %v3960, %v3992
  %v4025 = vadd.f32 %v3961, %v3993
  %v4026 = vadd.f32 %v3962, %v3994
  %v4027 = vadd.f32 %v3963, %v3995
  %v4028 = vadd.f32 %v3964, %v3996
  %v4029 = vadd.f32 %v3965, %v3997
  %v4030 = vadd.f32 %v3966, %v3998
  %v4031 = vadd.f32 %v3967, %v3999
  %v4032 = vadd.f32 %v3968, %v4000
  %v4033 = vadd.f32 %v3969, %v4001
  %v4034 = vadd.f32 %v3970, %v4002
  %v4035 = vadd.f32 %v3971, %v4003
  %v4036 = vadd.f32 %v3972, %v4004
  %v4037 = vadd.f32 %v3973, %v4005
  %v4038 = vrsqrt.pop %v4006
  %v4039 = vmul.f32 %v4038, %v4006
  %v4040 = vmul.f32 %v4039, %v4038
  %v4041 = vmul.f32 0.5, %v4040
  %v4042 = vsub.f32 1.5, %v4041
  %v4043 = vmul.f32 %v4038, %v4042
  %v4044 = vmul.f32 %v4006, %v4043
  %vm4045 = vcmp.eq.f32.partialorder %v4006, inf
  %v4046 = vsel %vm4045, %v4006, %v4044
  %vm4047 = vcmp.eq.f32.partialorder %v4006, 0.0
  %v4048 = vand.u32 %v4006, 2147483648
  %v4049 = vsel %vm4047, %v4048, %v4046
  %v4050 = vrsqrt.pop %v4007
  %v4051 = vmul.f32 %v4050, %v4007
  %v4052 = vmul.f32 %v4051, %v4050
  %v4053 = vmul.f32 0.5, %v4052
  %v4054 = vsub.f32 1.5, %v4053
  %v4055 = vmul.f32 %v4050, %v4054
  %v4056 = vmul.f32 %v4007, %v4055
  %vm4057 = vcmp.eq.f32.partialorder %v4007, inf
  %v4058 = vsel %vm4057, %v4007, %v4056
  %vm4059 = vcmp.eq.f32.partialorder %v4007, 0.0
  %v4060 = vand.u32 %v4007, 2147483648
  %v4061 = vsel %vm4059, %v4060, %v4058
  %v4062 = vrsqrt.pop %v4008
  %v4063 = vmul.f32 %v4062, %v4008
  %v4064 = vmul.f32 %v4063, %v4062
  %v4065 = vmul.f32 0.5, %v4064
  %v4066 = vsub.f32 1.5, %v4065
  %v4067 = vmul.f32 %v4062, %v4066
  %v4068 = vmul.f32 %v4008, %v4067
  %vm4069 = vcmp.eq.f32.partialorder %v4008, inf
  %v4070 = vsel %vm4069, %v4008, %v4068
  %vm4071 = vcmp.eq.f32.partialorder %v4008, 0.0
  %v4072 = vand.u32 %v4008, 2147483648
  %v4073 = vsel %vm4071, %v4072, %v4070
  %v4074 = vrsqrt.pop %v4009
  %v4075 = vmul.f32 %v4074, %v4009
  %v4076 = vmul.f32 %v4075, %v4074
  %v4077 = vmul.f32 0.5, %v4076
  %v4078 = vsub.f32 1.5, %v4077
  %v4079 = vmul.f32 %v4074, %v4078
  %v4080 = vmul.f32 %v4009, %v4079
  %vm4081 = vcmp.eq.f32.partialorder %v4009, inf
  %v4082 = vsel %vm4081, %v4009, %v4080
  %vm4083 = vcmp.eq.f32.partialorder %v4009, 0.0
  %v4084 = vand.u32 %v4009, 2147483648
  %v4085 = vsel %vm4083, %v4084, %v4082
  %v4086 = vrsqrt.pop %v4010
  %v4087 = vmul.f32 %v4086, %v4010
  %v4088 = vmul.f32 %v4087, %v4086
  %v4089 = vmul.f32 0.5, %v4088
  %v4090 = vsub.f32 1.5, %v4089
  %v4091 = vmul.f32 %v4086, %v4090
  %v4092 = vmul.f32 %v4010, %v4091
  %vm4093 = vcmp.eq.f32.partialorder %v4010, inf
  %v4094 = vsel %vm4093, %v4010, %v4092
  %vm4095 = vcmp.eq.f32.partialorder %v4010, 0.0
  %v4096 = vand.u32 %v4010, 2147483648
  %v4097 = vsel %vm4095, %v4096, %v4094
  %v4098 = vrsqrt.pop %v4011
  %v4099 = vmul.f32 %v4098, %v4011
  %v4100 = vmul.f32 %v4099, %v4098
  %v4101 = vmul.f32 0.5, %v4100
  %v4102 = vsub.f32 1.5, %v4101
  %v4103 = vmul.f32 %v4098, %v4102
  %v4104 = vmul.f32 %v4011, %v4103
  %vm4105 = vcmp.eq.f32.partialorder %v4011, inf
  %v4106 = vsel %vm4105, %v4011, %v4104
  %vm4107 = vcmp.eq.f32.partialorder %v4011, 0.0
  %v4108 = vand.u32 %v4011, 2147483648
  %v4109 = vsel %vm4107, %v4108, %v4106
  %v4110 = vrsqrt.pop %v4012
  %v4111 = vmul.f32 %v4110, %v4012
  %v4112 = vmul.f32 %v4111, %v4110
  %v4113 = vmul.f32 0.5, %v4112
  %v4114 = vsub.f32 1.5, %v4113
  %v4115 = vmul.f32 %v4110, %v4114
  %v4116 = vmul.f32 %v4012, %v4115
  %vm4117 = vcmp.eq.f32.partialorder %v4012, inf
  %v4118 = vsel %vm4117, %v4012, %v4116
  %vm4119 = vcmp.eq.f32.partialorder %v4012, 0.0
  %v4120 = vand.u32 %v4012, 2147483648
  %v4121 = vsel %vm4119, %v4120, %v4118
  %v4122 = vrsqrt.pop %v4013
  %v4123 = vmul.f32 %v4122, %v4013
  %v4124 = vmul.f32 %v4123, %v4122
  %v4125 = vmul.f32 0.5, %v4124
  %v4126 = vsub.f32 1.5, %v4125
  %v4127 = vmul.f32 %v4122, %v4126
  %v4128 = vmul.f32 %v4013, %v4127
  %vm4129 = vcmp.eq.f32.partialorder %v4013, inf
  %v4130 = vsel %vm4129, %v4013, %v4128
  %vm4131 = vcmp.eq.f32.partialorder %v4013, 0.0
  %v4132 = vand.u32 %v4013, 2147483648
  %v4133 = vsel %vm4131, %v4132, %v4130
  %v4134 = vrsqrt.pop %v4014
  %v4135 = vmul.f32 %v4134, %v4014
  %v4136 = vmul.f32 %v4135, %v4134
  %v4137 = vmul.f32 0.5, %v4136
  %v4138 = vsub.f32 1.5, %v4137
  %v4139 = vmul.f32 %v4134, %v4138
  %v4140 = vmul.f32 %v4014, %v4139
  %vm4141 = vcmp.eq.f32.partialorder %v4014, inf
  %v4142 = vsel %vm4141, %v4014, %v4140
  %vm4143 = vcmp.eq.f32.partialorder %v4014, 0.0
  %v4144 = vand.u32 %v4014, 2147483648
  %v4145 = vsel %vm4143, %v4144, %v4142
  %v4146 = vrsqrt.pop %v4015
  %v4147 = vmul.f32 %v4146, %v4015
  %v4148 = vmul.f32 %v4147, %v4146
  %v4149 = vmul.f32 0.5, %v4148
  %v4150 = vsub.f32 1.5, %v4149
  %v4151 = vmul.f32 %v4146, %v4150
  %v4152 = vmul.f32 %v4015, %v4151
  %vm4153 = vcmp.eq.f32.partialorder %v4015, inf
  %v4154 = vsel %vm4153, %v4015, %v4152
  %vm4155 = vcmp.eq.f32.partialorder %v4015, 0.0
  %v4156 = vand.u32 %v4015, 2147483648
  %v4157 = vsel %vm4155, %v4156, %v4154
  %v4158 = vrsqrt.pop %v4016
  %v4159 = vmul.f32 %v4158, %v4016
  %v4160 = vmul.f32 %v4159, %v4158
  %v4161 = vmul.f32 0.5, %v4160
  %v4162 = vsub.f32 1.5, %v4161
  %v4163 = vmul.f32 %v4158, %v4162
  %v4164 = vmul.f32 %v4016, %v4163
  %vm4165 = vcmp.eq.f32.partialorder %v4016, inf
  %v4166 = vsel %vm4165, %v4016, %v4164
  %vm4167 = vcmp.eq.f32.partialorder %v4016, 0.0
  %v4168 = vand.u32 %v4016, 2147483648
  %v4169 = vsel %vm4167, %v4168, %v4166
  %v4170 = vrsqrt.pop %v4017
  %v4171 = vmul.f32 %v4170, %v4017
  %v4172 = vmul.f32 %v4171, %v4170
  %v4173 = vmul.f32 0.5, %v4172
  %v4174 = vsub.f32 1.5, %v4173
  %v4175 = vmul.f32 %v4170, %v4174
  %v4176 = vmul.f32 %v4017, %v4175
  %vm4177 = vcmp.eq.f32.partialorder %v4017, inf
  %v4178 = vsel %vm4177, %v4017, %v4176
  %vm4179 = vcmp.eq.f32.partialorder %v4017, 0.0
  %v4180 = vand.u32 %v4017, 2147483648
  %v4181 = vsel %vm4179, %v4180, %v4178
  %v4182 = vrsqrt.pop %v4018
  %v4183 = vmul.f32 %v4182, %v4018
  %v4184 = vmul.f32 %v4183, %v4182
  %v4185 = vmul.f32 0.5, %v4184
  %v4186 = vsub.f32 1.5, %v4185
  %v4187 = vmul.f32 %v4182, %v4186
  %v4188 = vmul.f32 %v4018, %v4187
  %vm4189 = vcmp.eq.f32.partialorder %v4018, inf
  %v4190 = vsel %vm4189, %v4018, %v4188
  %vm4191 = vcmp.eq.f32.partialorder %v4018, 0.0
  %v4192 = vand.u32 %v4018, 2147483648
  %v4193 = vsel %vm4191, %v4192, %v4190
  %v4194 = vrsqrt.pop %v4019
  %v4195 = vmul.f32 %v4194, %v4019
  %v4196 = vmul.f32 %v4195, %v4194
  %v4197 = vmul.f32 0.5, %v4196
  %v4198 = vsub.f32 1.5, %v4197
  %v4199 = vmul.f32 %v4194, %v4198
  %v4200 = vmul.f32 %v4019, %v4199
  %vm4201 = vcmp.eq.f32.partialorder %v4019, inf
  %v4202 = vsel %vm4201, %v4019, %v4200
  %vm4203 = vcmp.eq.f32.partialorder %v4019, 0.0
  %v4204 = vand.u32 %v4019, 2147483648
  %v4205 = vsel %vm4203, %v4204, %v4202
  %v4206 = vrsqrt.pop %v4020
  %v4207 = vmul.f32 %v4206, %v4020
  %v4208 = vmul.f32 %v4207, %v4206
  %v4209 = vmul.f32 0.5, %v4208
  %v4210 = vsub.f32 1.5, %v4209
  %v4211 = vmul.f32 %v4206, %v4210
  %v4212 = vmul.f32 %v4020, %v4211
  %vm4213 = vcmp.eq.f32.partialorder %v4020, inf
  %v4214 = vsel %vm4213, %v4020, %v4212
  %vm4215 = vcmp.eq.f32.partialorder %v4020, 0.0
  %v4216 = vand.u32 %v4020, 2147483648
  %v4217 = vsel %vm4215, %v4216, %v4214
  %v4218 = vrsqrt.pop %v4021
  %v4219 = vmul.f32 %v4218, %v4021
  %v4220 = vmul.f32 %v4219, %v4218
  %v4221 = vmul.f32 0.5, %v4220
  %v4222 = vsub.f32 1.5, %v4221
  %v4223 = vmul.f32 %v4218, %v4222
  %v4224 = vmul.f32 %v4021, %v4223
  %vm4225 = vcmp.eq.f32.partialorder %v4021, inf
  %v4226 = vsel %vm4225, %v4021, %v4224
  %vm4227 = vcmp.eq.f32.partialorder %v4021, 0.0
  %v4228 = vand.u32 %v4021, 2147483648
  %v4229 = vsel %vm4227, %v4228, %v4226
  %v4230 = vrsqrt.pop %v4022
  %v4231 = vmul.f32 %v4230, %v4022
  %v4232 = vmul.f32 %v4231, %v4230
  %v4233 = vmul.f32 0.5, %v4232
  %v4234 = vsub.f32 1.5, %v4233
  %v4235 = vmul.f32 %v4230, %v4234
  %v4236 = vmul.f32 %v4022, %v4235
  %vm4237 = vcmp.eq.f32.partialorder %v4022, inf
  %v4238 = vsel %vm4237, %v4022, %v4236
  %vm4239 = vcmp.eq.f32.partialorder %v4022, 0.0
  %v4240 = vand.u32 %v4022, 2147483648
  %v4241 = vsel %vm4239, %v4240, %v4238
  %v4242 = vrsqrt.pop %v4023
  %v4243 = vmul.f32 %v4242, %v4023
  %v4244 = vmul.f32 %v4243, %v4242
  %v4245 = vmul.f32 0.5, %v4244
  %v4246 = vsub.f32 1.5, %v4245
  %v4247 = vmul.f32 %v4242, %v4246
  %v4248 = vmul.f32 %v4023, %v4247
  %vm4249 = vcmp.eq.f32.partialorder %v4023, inf
  %v4250 = vsel %vm4249, %v4023, %v4248
  %vm4251 = vcmp.eq.f32.partialorder %v4023, 0.0
  %v4252 = vand.u32 %v4023, 2147483648
  %v4253 = vsel %vm4251, %v4252, %v4250
  %v4254 = vrsqrt.pop %v4024
  %v4255 = vmul.f32 %v4254, %v4024
  %v4256 = vmul.f32 %v4255, %v4254
  %v4257 = vmul.f32 0.5, %v4256
  %v4258 = vsub.f32 1.5, %v4257
  %v4259 = vmul.f32 %v4254, %v4258
  %v4260 = vmul.f32 %v4024, %v4259
  %vm4261 = vcmp.eq.f32.partialorder %v4024, inf
  %v4262 = vsel %vm4261, %v4024, %v4260
  %vm4263 = vcmp.eq.f32.partialorder %v4024, 0.0
  %v4264 = vand.u32 %v4024, 2147483648
  %v4265 = vsel %vm4263, %v4264, %v4262
  %v4266 = vrsqrt.pop %v4025
  %v4267 = vmul.f32 %v4266, %v4025
  %v4268 = vmul.f32 %v4267, %v4266
  %v4269 = vmul.f32 0.5, %v4268
  %v4270 = vsub.f32 1.5, %v4269
  %v4271 = vmul.f32 %v4266, %v4270
  %v4272 = vmul.f32 %v4025, %v4271
  %vm4273 = vcmp.eq.f32.partialorder %v4025, inf
  %v4274 = vsel %vm4273, %v4025, %v4272
  %vm4275 = vcmp.eq.f32.partialorder %v4025, 0.0
  %v4276 = vand.u32 %v4025, 2147483648
  %v4277 = vsel %vm4275, %v4276, %v4274
  %v4278 = vrsqrt.pop %v4026
  %v4279 = vmul.f32 %v4278, %v4026
  %v4280 = vmul.f32 %v4279, %v4278
  %v4281 = vmul.f32 0.5, %v4280
  %v4282 = vsub.f32 1.5, %v4281
  %v4283 = vmul.f32 %v4278, %v4282
  %v4284 = vmul.f32 %v4026, %v4283
  %vm4285 = vcmp.eq.f32.partialorder %v4026, inf
  %v4286 = vsel %vm4285, %v4026, %v4284
  %vm4287 = vcmp.eq.f32.partialorder %v4026, 0.0
  %v4288 = vand.u32 %v4026, 2147483648
  %v4289 = vsel %vm4287, %v4288, %v4286
  %v4290 = vrsqrt.pop %v4027
  %v4291 = vmul.f32 %v4290, %v4027
  %v4292 = vmul.f32 %v4291, %v4290
  %v4293 = vmul.f32 0.5, %v4292
  %v4294 = vsub.f32 1.5, %v4293
  %v4295 = vmul.f32 %v4290, %v4294
  %v4296 = vmul.f32 %v4027, %v4295
  %vm4297 = vcmp.eq.f32.partialorder %v4027, inf
  %v4298 = vsel %vm4297, %v4027, %v4296
  %vm4299 = vcmp.eq.f32.partialorder %v4027, 0.0
  %v4300 = vand.u32 %v4027, 2147483648
  %v4301 = vsel %vm4299, %v4300, %v4298
  %v4302 = vrsqrt.pop %v4028
  %v4303 = vmul.f32 %v4302, %v4028
  %v4304 = vmul.f32 %v4303, %v4302
  %v4305 = vmul.f32 0.5, %v4304
  %v4306 = vsub.f32 1.5, %v4305
  %v4307 = vmul.f32 %v4302, %v4306
  %v4308 = vmul.f32 %v4028, %v4307
  %vm4309 = vcmp.eq.f32.partialorder %v4028, inf
  %v4310 = vsel %vm4309, %v4028, %v4308
  %vm4311 = vcmp.eq.f32.partialorder %v4028, 0.0
  %v4312 = vand.u32 %v4028, 2147483648
  %v4313 = vsel %vm4311, %v4312, %v4310
  %v4314 = vrsqrt.pop %v4029
  %v4315 = vmul.f32 %v4314, %v4029
  %v4316 = vmul.f32 %v4315, %v4314
  %v4317 = vmul.f32 0.5, %v4316
  %v4318 = vsub.f32 1.5, %v4317
  %v4319 = vmul.f32 %v4314, %v4318
  %v4320 = vmul.f32 %v4029, %v4319
  %vm4321 = vcmp.eq.f32.partialorder %v4029, inf
  %v4322 = vsel %vm4321, %v4029, %v4320
  %vm4323 = vcmp.eq.f32.partialorder %v4029, 0.0
  %v4324 = vand.u32 %v4029, 2147483648
  %v4325 = vsel %vm4323, %v4324, %v4322
  %v4326 = vrsqrt.pop %v4030
  %v4327 = vmul.f32 %v4326, %v4030
  %v4328 = vmul.f32 %v4327, %v4326
  %v4329 = vmul.f32 0.5, %v4328
  %v4330 = vsub.f32 1.5, %v4329
  %v4331 = vmul.f32 %v4326, %v4330
  %v4332 = vmul.f32 %v4030, %v4331
  %vm4333 = vcmp.eq.f32.partialorder %v4030, inf
  %v4334 = vsel %vm4333, %v4030, %v4332
  %vm4335 = vcmp.eq.f32.partialorder %v4030, 0.0
  %v4336 = vand.u32 %v4030, 2147483648
  %v4337 = vsel %vm4335, %v4336, %v4334
  %v4338 = vrsqrt.pop %v4031
  %v4339 = vmul.f32 %v4338, %v4031
  %v4340 = vmul.f32 %v4339, %v4338
  %v4341 = vmul.f32 0.5, %v4340
  %v4342 = vsub.f32 1.5, %v4341
  %v4343 = vmul.f32 %v4338, %v4342
  %v4344 = vmul.f32 %v4031, %v4343
  %vm4345 = vcmp.eq.f32.partialorder %v4031, inf
  %v4346 = vsel %vm4345, %v4031, %v4344
  %vm4347 = vcmp.eq.f32.partialorder %v4031, 0.0
  %v4348 = vand.u32 %v4031, 2147483648
  %v4349 = vsel %vm4347, %v4348, %v4346
  %v4350 = vrsqrt.pop %v4032
  %v4351 = vmul.f32 %v4350, %v4032
  %v4352 = vmul.f32 %v4351, %v4350
  %v4353 = vmul.f32 0.5, %v4352
  %v4354 = vsub.f32 1.5, %v4353
  %v4355 = vmul.f32 %v4350, %v4354
  %v4356 = vmul.f32 %v4032, %v4355
  %vm4357 = vcmp.eq.f32.partialorder %v4032, inf
  %v4358 = vsel %vm4357, %v4032, %v4356
  %vm4359 = vcmp.eq.f32.partialorder %v4032, 0.0
  %v4360 = vand.u32 %v4032, 2147483648
  %v4361 = vsel %vm4359, %v4360, %v4358
  %v4362 = vrsqrt.pop %v4033
  %v4363 = vmul.f32 %v4362, %v4033
  %v4364 = vmul.f32 %v4363, %v4362
  %v4365 = vmul.f32 0.5, %v4364
  %v4366 = vsub.f32 1.5, %v4365
  %v4367 = vmul.f32 %v4362, %v4366
  %v4368 = vmul.f32 %v4033, %v4367
  %vm4369 = vcmp.eq.f32.partialorder %v4033, inf
  %v4370 = vsel %vm4369, %v4033, %v4368
  %vm4371 = vcmp.eq.f32.partialorder %v4033, 0.0
  %v4372 = vand.u32 %v4033, 2147483648
  %v4373 = vsel %vm4371, %v4372, %v4370
  %v4374 = vrsqrt.pop %v4034
  %v4375 = vmul.f32 %v4374, %v4034
  %v4376 = vmul.f32 %v4375, %v4374
  %v4377 = vmul.f32 0.5, %v4376
  %v4378 = vsub.f32 1.5, %v4377
  %v4379 = vmul.f32 %v4374, %v4378
  %v4380 = vmul.f32 %v4034, %v4379
  %vm4381 = vcmp.eq.f32.partialorder %v4034, inf
  %v4382 = vsel %vm4381, %v4034, %v4380
  %vm4383 = vcmp.eq.f32.partialorder %v4034, 0.0
  %v4384 = vand.u32 %v4034, 2147483648
  %v4385 = vsel %vm4383, %v4384, %v4382
  %v4386 = vrsqrt.pop %v4035
  %v4387 = vmul.f32 %v4386, %v4035
  %v4388 = vmul.f32 %v4387, %v4386
  %v4389 = vmul.f32 0.5, %v4388
  %v4390 = vsub.f32 1.5, %v4389
  %v4391 = vmul.f32 %v4386, %v4390
  %v4392 = vmul.f32 %v4035, %v4391
  %vm4393 = vcmp.eq.f32.partialorder %v4035, inf
  %v4394 = vsel %vm4393, %v4035, %v4392
  %vm4395 = vcmp.eq.f32.partialorder %v4035, 0.0
  %v4396 = vand.u32 %v4035, 2147483648
  %v4397 = vsel %vm4395, %v4396, %v4394
  %v4398 = vrsqrt.pop %v4036
  %v4399 = vmul.f32 %v4398, %v4036
  %v4400 = vmul.f32 %v4399, %v4398
  %v4401 = vmul.f32 0.5, %v4400
  %v4402 = vsub.f32 1.5, %v4401
  %v4403 = vmul.f32 %v4398, %v4402
  %v4404 = vmul.f32 %v4036, %v4403
  %vm4405 = vcmp.eq.f32.partialorder %v4036, inf
  %v4406 = vsel %vm4405, %v4036, %v4404
  %vm4407 = vcmp.eq.f32.partialorder %v4036, 0.0
  %v4408 = vand.u32 %v4036, 2147483648
  %v4409 = vsel %vm4407, %v4408, %v4406
  %v4410 = vrsqrt.pop %v4037
  %v4411 = vmul.f32 %v4410, %v4037
  %v4412 = vmul.f32 %v4411, %v4410
  %v4413 = vmul.f32 0.5, %v4412
  %v4414 = vsub.f32 1.5, %v4413
  %v4415 = vmul.f32 %v4410, %v4414
  %v4416 = vmul.f32 %v4037, %v4415
  %vm4417 = vcmp.eq.f32.partialorder %v4037, inf
  %v4418 = vsel %vm4417, %v4037, %v4416
  %vm4419 = vcmp.eq.f32.partialorder %v4037, 0.0
  %v4420 = vand.u32 %v4037, 2147483648
  %v4421 = vsel %vm4419, %v4420, %v4418
  %v4422 = vmul.f32 %v3846, %v3846
  %v4423 = vmul.f32 %v3847, %v3847
  %v4424 = vmul.f32 %v3848, %v3848
  %v4425 = vmul.f32 %v3849, %v3849
  %v4426 = vmul.f32 %v3850, %v3850
  %v4427 = vmul.f32 %v3851, %v3851
  %v4428 = vmul.f32 %v3852, %v3852
  %v4429 = vmul.f32 %v3853, %v3853
  %v4430 = vmul.f32 %v3854, %v3854
  %v4431 = vmul.f32 %v3855, %v3855
  %v4432 = vmul.f32 %v3856, %v3856
  %v4433 = vmul.f32 %v3857, %v3857
  %v4434 = vmul.f32 %v3858, %v3858
  %v4435 = vmul.f32 %v3859, %v3859
  %v4436 = vmul.f32 %v3860, %v3860
  %v4437 = vmul.f32 %v3861, %v3861
  %v4438 = vmul.f32 %v3862, %v3862
  %v4439 = vmul.f32 %v3863, %v3863
  %v4440 = vmul.f32 %v3864, %v3864
  %v4441 = vmul.f32 %v3865, %v3865
  %v4442 = vmul.f32 %v3866, %v3866
  %v4443 = vmul.f32 %v3867, %v3867
  %v4444 = vmul.f32 %v3868, %v3868
  %v4445 = vmul.f32 %v3869, %v3869
  %v4446 = vmul.f32 %v3870, %v3870
  %v4447 = vmul.f32 %v3871, %v3871
  %v4448 = vmul.f32 %v3872, %v3872
  %v4449 = vmul.f32 %v3873, %v3873
  %v4450 = vmul.f32 %v3874, %v3874
  %v4451 = vmul.f32 %v3875, %v3875
  %v4452 = vmul.f32 %v3876, %v3876
  %v4453 = vmul.f32 %v3877, %v3877
  %v4454 = vmul.f32 %v3910, %v3910
  %v4455 = vmul.f32 %v3911, %v3911
  %v4456 = vmul.f32 %v3912, %v3912
  %v4457 = vmul.f32 %v3913, %v3913
  %v4458 = vmul.f32 %v3914, %v3914
  %v4459 = vmul.f32 %v3915, %v3915
  %v4460 = vmul.f32 %v3916, %v3916
  %v4461 = vmul.f32 %v3917, %v3917
  %v4462 = vmul.f32 %v3918, %v3918
  %v4463 = vmul.f32 %v3919, %v3919
  %v4464 = vmul.f32 %v3920, %v3920
  %v4465 = vmul.f32 %v3921, %v3921
  %v4466 = vmul.f32 %v3922, %v3922
  %v4467 = vmul.f32 %v3923, %v3923
  %v4468 = vmul.f32 %v3924, %v3924
  %v4469 = vmul.f32 %v3925, %v3925
  %v4470 = vmul.f32 %v3926, %v3926
  %v4471 = vmul.f32 %v3927, %v3927
  %v4472 = vmul.f32 %v3928, %v3928
  %v4473 = vmul.f32 %v3929, %v3929
  %v4474 = vmul.f32 %v3930, %v3930
  %v4475 = vmul.f32 %v3931, %v3931
  %v4476 = vmul.f32 %v3932, %v3932
  %v4477 = vmul.f32 %v3933, %v3933
  %v4478 = vmul.f32 %v3934, %v3934
  %v4479 = vmul.f32 %v3935, %v3935
  %v4480 = vmul.f32 %v3936, %v3936
  %v4481 = vmul.f32 %v3937, %v3937
  %v4482 = vmul.f32 %v3938, %v3938
  %v4483 = vmul.f32 %v3939, %v3939
  %v4484 = vmul.f32 %v3940, %v3940
  %v4485 = vmul.f32 %v3941, %v3941
  %v4486 = vadd.f32 %v4422, %v4454
  %v4487 = vadd.f32 %v4423, %v4455
  %v4488 = vadd.f32 %v4424, %v4456
  %v4489 = vadd.f32 %v4425, %v4457
  %v4490 = vadd.f32 %v4426, %v4458
  %v4491 = vadd.f32 %v4427, %v4459
  %v4492 = vadd.f32 %v4428, %v4460
  %v4493 = vadd.f32 %v4429, %v4461
  %v4494 = vadd.f32 %v4430, %v4462
  %v4495 = vadd.f32 %v4431, %v4463
  %v4496 = vadd.f32 %v4432, %v4464
  %v4497 = vadd.f32 %v4433, %v4465
  %v4498 = vadd.f32 %v4434, %v4466
  %v4499 = vadd.f32 %v4435, %v4467
  %v4500 = vadd.f32 %v4436, %v4468
  %v4501 = vadd.f32 %v4437, %v4469
  %v4502 = vadd.f32 %v4438, %v4470
  %v4503 = vadd.f32 %v4439, %v4471
  %v4504 = vadd.f32 %v4440, %v4472
  %v4505 = vadd.f32 %v4441, %v4473
  %v4506 = vadd.f32 %v4442, %v4474
  %v4507 = vadd.f32 %v4443, %v4475
  %v4508 = vadd.f32 %v4444, %v4476
  %v4509 = vadd.f32 %v4445, %v4477
  %v4510 = vadd.f32 %v4446, %v4478
  %v4511 = vadd.f32 %v4447, %v4479
  %v4512 = vadd.f32 %v4448, %v4480
  %v4513 = vadd.f32 %v4449, %v4481
  %v4514 = vadd.f32 %v4450, %v4482
  %v4515 = vadd.f32 %v4451, %v4483
  %v4516 = vadd.f32 %v4452, %v4484
  %v4517 = vadd.f32 %v4453, %v4485
  %v4518 = vrsqrt.pop %v4486
  %v4519 = vmul.f32 %v4518, %v4486
  %v4520 = vmul.f32 %v4519, %v4518
  %v4521 = vmul.f32 0.5, %v4520
  %v4522 = vsub.f32 1.5, %v4521
  %v4523 = vmul.f32 %v4518, %v4522
  %v4524 = vmul.f32 %v4486, %v4523
  %vm4525 = vcmp.eq.f32.partialorder %v4486, inf
  %v4526 = vsel %vm4525, %v4486, %v4524
  %vm4527 = vcmp.eq.f32.partialorder %v4486, 0.0
  %v4528 = vand.u32 %v4486, 2147483648
  %v4529 = vsel %vm4527, %v4528, %v4526
  %v4530 = vrsqrt.pop %v4487
  %v4531 = vmul.f32 %v4530, %v4487
  %v4532 = vmul.f32 %v4531, %v4530
  %v4533 = vmul.f32 0.5, %v4532
  %v4534 = vsub.f32 1.5, %v4533
  %v4535 = vmul.f32 %v4530, %v4534
  %v4536 = vmul.f32 %v4487, %v4535
  %vm4537 = vcmp.eq.f32.partialorder %v4487, inf
  %v4538 = vsel %vm4537, %v4487, %v4536
  %vm4539 = vcmp.eq.f32.partialorder %v4487, 0.0
  %v4540 = vand.u32 %v4487, 2147483648
  %v4541 = vsel %vm4539, %v4540, %v4538
  %v4542 = vrsqrt.pop %v4488
  %v4543 = vmul.f32 %v4542, %v4488
  %v4544 = vmul.f32 %v4543, %v4542
  %v4545 = vmul.f32 0.5, %v4544
  %v4546 = vsub.f32 1.5, %v4545
  %v4547 = vmul.f32 %v4542, %v4546
  %v4548 = vmul.f32 %v4488, %v4547
  %vm4549 = vcmp.eq.f32.partialorder %v4488, inf
  %v4550 = vsel %vm4549, %v4488, %v4548
  %vm4551 = vcmp.eq.f32.partialorder %v4488, 0.0
  %v4552 = vand.u32 %v4488, 2147483648
  %v4553 = vsel %vm4551, %v4552, %v4550
  %v4554 = vrsqrt.pop %v4489
  %v4555 = vmul.f32 %v4554, %v4489
  %v4556 = vmul.f32 %v4555, %v4554
  %v4557 = vmul.f32 0.5, %v4556
  %v4558 = vsub.f32 1.5, %v4557
  %v4559 = vmul.f32 %v4554, %v4558
  %v4560 = vmul.f32 %v4489, %v4559
  %vm4561 = vcmp.eq.f32.partialorder %v4489, inf
  %v4562 = vsel %vm4561, %v4489, %v4560
  %vm4563 = vcmp.eq.f32.partialorder %v4489, 0.0
  %v4564 = vand.u32 %v4489, 2147483648
  %v4565 = vsel %vm4563, %v4564, %v4562
  %v4566 = vrsqrt.pop %v4490
  %v4567 = vmul.f32 %v4566, %v4490
  %v4568 = vmul.f32 %v4567, %v4566
  %v4569 = vmul.f32 0.5, %v4568
  %v4570 = vsub.f32 1.5, %v4569
  %v4571 = vmul.f32 %v4566, %v4570
  %v4572 = vmul.f32 %v4490, %v4571
  %vm4573 = vcmp.eq.f32.partialorder %v4490, inf
  %v4574 = vsel %vm4573, %v4490, %v4572
  %vm4575 = vcmp.eq.f32.partialorder %v4490, 0.0
  %v4576 = vand.u32 %v4490, 2147483648
  %v4577 = vsel %vm4575, %v4576, %v4574
  %v4578 = vrsqrt.pop %v4491
  %v4579 = vmul.f32 %v4578, %v4491
  %v4580 = vmul.f32 %v4579, %v4578
  %v4581 = vmul.f32 0.5, %v4580
  %v4582 = vsub.f32 1.5, %v4581
  %v4583 = vmul.f32 %v4578, %v4582
  %v4584 = vmul.f32 %v4491, %v4583
  %vm4585 = vcmp.eq.f32.partialorder %v4491, inf
  %v4586 = vsel %vm4585, %v4491, %v4584
  %vm4587 = vcmp.eq.f32.partialorder %v4491, 0.0
  %v4588 = vand.u32 %v4491, 2147483648
  %v4589 = vsel %vm4587, %v4588, %v4586
  %v4590 = vrsqrt.pop %v4492
  %v4591 = vmul.f32 %v4590, %v4492
  %v4592 = vmul.f32 %v4591, %v4590
  %v4593 = vmul.f32 0.5, %v4592
  %v4594 = vsub.f32 1.5, %v4593
  %v4595 = vmul.f32 %v4590, %v4594
  %v4596 = vmul.f32 %v4492, %v4595
  %vm4597 = vcmp.eq.f32.partialorder %v4492, inf
  %v4598 = vsel %vm4597, %v4492, %v4596
  %vm4599 = vcmp.eq.f32.partialorder %v4492, 0.0
  %v4600 = vand.u32 %v4492, 2147483648
  %v4601 = vsel %vm4599, %v4600, %v4598
  %v4602 = vrsqrt.pop %v4493
  %v4603 = vmul.f32 %v4602, %v4493
  %v4604 = vmul.f32 %v4603, %v4602
  %v4605 = vmul.f32 0.5, %v4604
  %v4606 = vsub.f32 1.5, %v4605
  %v4607 = vmul.f32 %v4602, %v4606
  %v4608 = vmul.f32 %v4493, %v4607
  %vm4609 = vcmp.eq.f32.partialorder %v4493, inf
  %v4610 = vsel %vm4609, %v4493, %v4608
  %vm4611 = vcmp.eq.f32.partialorder %v4493, 0.0
  %v4612 = vand.u32 %v4493, 2147483648
  %v4613 = vsel %vm4611, %v4612, %v4610
  %v4614 = vrsqrt.pop %v4494
  %v4615 = vmul.f32 %v4614, %v4494
  %v4616 = vmul.f32 %v4615, %v4614
  %v4617 = vmul.f32 0.5, %v4616
  %v4618 = vsub.f32 1.5, %v4617
  %v4619 = vmul.f32 %v4614, %v4618
  %v4620 = vmul.f32 %v4494, %v4619
  %vm4621 = vcmp.eq.f32.partialorder %v4494, inf
  %v4622 = vsel %vm4621, %v4494, %v4620
  %vm4623 = vcmp.eq.f32.partialorder %v4494, 0.0
  %v4624 = vand.u32 %v4494, 2147483648
  %v4625 = vsel %vm4623, %v4624, %v4622
  %v4626 = vrsqrt.pop %v4495
  %v4627 = vmul.f32 %v4626, %v4495
  %v4628 = vmul.f32 %v4627, %v4626
  %v4629 = vmul.f32 0.5, %v4628
  %v4630 = vsub.f32 1.5, %v4629
  %v4631 = vmul.f32 %v4626, %v4630
  %v4632 = vmul.f32 %v4495, %v4631
  %vm4633 = vcmp.eq.f32.partialorder %v4495, inf
  %v4634 = vsel %vm4633, %v4495, %v4632
  %vm4635 = vcmp.eq.f32.partialorder %v4495, 0.0
  %v4636 = vand.u32 %v4495, 2147483648
  %v4637 = vsel %vm4635, %v4636, %v4634
  %v4638 = vrsqrt.pop %v4496
  %v4639 = vmul.f32 %v4638, %v4496
  %v4640 = vmul.f32 %v4639, %v4638
  %v4641 = vmul.f32 0.5, %v4640
  %v4642 = vsub.f32 1.5, %v4641
  %v4643 = vmul.f32 %v4638, %v4642
  %v4644 = vmul.f32 %v4496, %v4643
  %vm4645 = vcmp.eq.f32.partialorder %v4496, inf
  %v4646 = vsel %vm4645, %v4496, %v4644
  %vm4647 = vcmp.eq.f32.partialorder %v4496, 0.0
  %v4648 = vand.u32 %v4496, 2147483648
  %v4649 = vsel %vm4647, %v4648, %v4646
  %v4650 = vrsqrt.pop %v4497
  %v4651 = vmul.f32 %v4650, %v4497
  %v4652 = vmul.f32 %v4651, %v4650
  %v4653 = vmul.f32 0.5, %v4652
  %v4654 = vsub.f32 1.5, %v4653
  %v4655 = vmul.f32 %v4650, %v4654
  %v4656 = vmul.f32 %v4497, %v4655
  %vm4657 = vcmp.eq.f32.partialorder %v4497, inf
  %v4658 = vsel %vm4657, %v4497, %v4656
  %vm4659 = vcmp.eq.f32.partialorder %v4497, 0.0
  %v4660 = vand.u32 %v4497, 2147483648
  %v4661 = vsel %vm4659, %v4660, %v4658
  %v4662 = vrsqrt.pop %v4498
  %v4663 = vmul.f32 %v4662, %v4498
  %v4664 = vmul.f32 %v4663, %v4662
  %v4665 = vmul.f32 0.5, %v4664
  %v4666 = vsub.f32 1.5, %v4665
  %v4667 = vmul.f32 %v4662, %v4666
  %v4668 = vmul.f32 %v4498, %v4667
  %vm4669 = vcmp.eq.f32.partialorder %v4498, inf
  %v4670 = vsel %vm4669, %v4498, %v4668
  %vm4671 = vcmp.eq.f32.partialorder %v4498, 0.0
  %v4672 = vand.u32 %v4498, 2147483648
  %v4673 = vsel %vm4671, %v4672, %v4670
  %v4674 = vrsqrt.pop %v4499
  %v4675 = vmul.f32 %v4674, %v4499
  %v4676 = vmul.f32 %v4675, %v4674
  %v4677 = vmul.f32 0.5, %v4676
  %v4678 = vsub.f32 1.5, %v4677
  %v4679 = vmul.f32 %v4674, %v4678
  %v4680 = vmul.f32 %v4499, %v4679
  %vm4681 = vcmp.eq.f32.partialorder %v4499, inf
  %v4682 = vsel %vm4681, %v4499, %v4680
  %vm4683 = vcmp.eq.f32.partialorder %v4499, 0.0
  %v4684 = vand.u32 %v4499, 2147483648
  %v4685 = vsel %vm4683, %v4684, %v4682
  %v4686 = vrsqrt.pop %v4500
  %v4687 = vmul.f32 %v4686, %v4500
  %v4688 = vmul.f32 %v4687, %v4686
  %v4689 = vmul.f32 0.5, %v4688
  %v4690 = vsub.f32 1.5, %v4689
  %v4691 = vmul.f32 %v4686, %v4690
  %v4692 = vmul.f32 %v4500, %v4691
  %vm4693 = vcmp.eq.f32.partialorder %v4500, inf
  %v4694 = vsel %vm4693, %v4500, %v4692
  %vm4695 = vcmp.eq.f32.partialorder %v4500, 0.0
  %v4696 = vand.u32 %v4500, 2147483648
  %v4697 = vsel %vm4695, %v4696, %v4694
  %v4698 = vrsqrt.pop %v4501
  %v4699 = vmul.f32 %v4698, %v4501
  %v4700 = vmul.f32 %v4699, %v4698
  %v4701 = vmul.f32 0.5, %v4700
  %v4702 = vsub.f32 1.5, %v4701
  %v4703 = vmul.f32 %v4698, %v4702
  %v4704 = vmul.f32 %v4501, %v4703
  %vm4705 = vcmp.eq.f32.partialorder %v4501, inf
  %v4706 = vsel %vm4705, %v4501, %v4704
  %vm4707 = vcmp.eq.f32.partialorder %v4501, 0.0
  %v4708 = vand.u32 %v4501, 2147483648
  %v4709 = vsel %vm4707, %v4708, %v4706
  %v4710 = vrsqrt.pop %v4502
  %v4711 = vmul.f32 %v4710, %v4502
  %v4712 = vmul.f32 %v4711, %v4710
  %v4713 = vmul.f32 0.5, %v4712
  %v4714 = vsub.f32 1.5, %v4713
  %v4715 = vmul.f32 %v4710, %v4714
  %v4716 = vmul.f32 %v4502, %v4715
  %vm4717 = vcmp.eq.f32.partialorder %v4502, inf
  %v4718 = vsel %vm4717, %v4502, %v4716
  %vm4719 = vcmp.eq.f32.partialorder %v4502, 0.0
  %v4720 = vand.u32 %v4502, 2147483648
  %v4721 = vsel %vm4719, %v4720, %v4718
  %v4722 = vrsqrt.pop %v4503
  %v4723 = vmul.f32 %v4722, %v4503
  %v4724 = vmul.f32 %v4723, %v4722
  %v4725 = vmul.f32 0.5, %v4724
  %v4726 = vsub.f32 1.5, %v4725
  %v4727 = vmul.f32 %v4722, %v4726
  %v4728 = vmul.f32 %v4503, %v4727
  %vm4729 = vcmp.eq.f32.partialorder %v4503, inf
  %v4730 = vsel %vm4729, %v4503, %v4728
  %vm4731 = vcmp.eq.f32.partialorder %v4503, 0.0
  %v4732 = vand.u32 %v4503, 2147483648
  %v4733 = vsel %vm4731, %v4732, %v4730
  %v4734 = vrsqrt.pop %v4504
  %v4735 = vmul.f32 %v4734, %v4504
  %v4736 = vmul.f32 %v4735, %v4734
  %v4737 = vmul.f32 0.5, %v4736
  %v4738 = vsub.f32 1.5, %v4737
  %v4739 = vmul.f32 %v4734, %v4738
  %v4740 = vmul.f32 %v4504, %v4739
  %vm4741 = vcmp.eq.f32.partialorder %v4504, inf
  %v4742 = vsel %vm4741, %v4504, %v4740
  %vm4743 = vcmp.eq.f32.partialorder %v4504, 0.0
  %v4744 = vand.u32 %v4504, 2147483648
  %v4745 = vsel %vm4743, %v4744, %v4742
  %v4746 = vrsqrt.pop %v4505
  %v4747 = vmul.f32 %v4746, %v4505
  %v4748 = vmul.f32 %v4747, %v4746
  %v4749 = vmul.f32 0.5, %v4748
  %v4750 = vsub.f32 1.5, %v4749
  %v4751 = vmul.f32 %v4746, %v4750
  %v4752 = vmul.f32 %v4505, %v4751
  %vm4753 = vcmp.eq.f32.partialorder %v4505, inf
  %v4754 = vsel %vm4753, %v4505, %v4752
  %vm4755 = vcmp.eq.f32.partialorder %v4505, 0.0
  %v4756 = vand.u32 %v4505, 2147483648
  %v4757 = vsel %vm4755, %v4756, %v4754
  %v4758 = vrsqrt.pop %v4506
  %v4759 = vmul.f32 %v4758, %v4506
  %v4760 = vmul.f32 %v4759, %v4758
  %v4761 = vmul.f32 0.5, %v4760
  %v4762 = vsub.f32 1.5, %v4761
  %v4763 = vmul.f32 %v4758, %v4762
  %v4764 = vmul.f32 %v4506, %v4763
  %vm4765 = vcmp.eq.f32.partialorder %v4506, inf
  %v4766 = vsel %vm4765, %v4506, %v4764
  %vm4767 = vcmp.eq.f32.partialorder %v4506, 0.0
  %v4768 = vand.u32 %v4506, 2147483648
  %v4769 = vsel %vm4767, %v4768, %v4766
  %v4770 = vrsqrt.pop %v4507
  %v4771 = vmul.f32 %v4770, %v4507
  %v4772 = vmul.f32 %v4771, %v4770
  %v4773 = vmul.f32 0.5, %v4772
  %v4774 = vsub.f32 1.5, %v4773
  %v4775 = vmul.f32 %v4770, %v4774
  %v4776 = vmul.f32 %v4507, %v4775
  %vm4777 = vcmp.eq.f32.partialorder %v4507, inf
  %v4778 = vsel %vm4777, %v4507, %v4776
  %vm4779 = vcmp.eq.f32.partialorder %v4507, 0.0
  %v4780 = vand.u32 %v4507, 2147483648
  %v4781 = vsel %vm4779, %v4780, %v4778
  %v4782 = vrsqrt.pop %v4508
  %v4783 = vmul.f32 %v4782, %v4508
  %v4784 = vmul.f32 %v4783, %v4782
  %v4785 = vmul.f32 0.5, %v4784
  %v4786 = vsub.f32 1.5, %v4785
  %v4787 = vmul.f32 %v4782, %v4786
  %v4788 = vmul.f32 %v4508, %v4787
  %vm4789 = vcmp.eq.f32.partialorder %v4508, inf
  %v4790 = vsel %vm4789, %v4508, %v4788
  %vm4791 = vcmp.eq.f32.partialorder %v4508, 0.0
  %v4792 = vand.u32 %v4508, 2147483648
  %v4793 = vsel %vm4791, %v4792, %v4790
  %v4794 = vrsqrt.pop %v4509
  %v4795 = vmul.f32 %v4794, %v4509
  %v4796 = vmul.f32 %v4795, %v4794
  %v4797 = vmul.f32 0.5, %v4796
  %v4798 = vsub.f32 1.5, %v4797
  %v4799 = vmul.f32 %v4794, %v4798
  %v4800 = vmul.f32 %v4509, %v4799
  %vm4801 = vcmp.eq.f32.partialorder %v4509, inf
  %v4802 = vsel %vm4801, %v4509, %v4800
  %vm4803 = vcmp.eq.f32.partialorder %v4509, 0.0
  %v4804 = vand.u32 %v4509, 2147483648
  %v4805 = vsel %vm4803, %v4804, %v4802
  %v4806 = vrsqrt.pop %v4510
  %v4807 = vmul.f32 %v4806, %v4510
  %v4808 = vmul.f32 %v4807, %v4806
  %v4809 = vmul.f32 0.5, %v4808
  %v4810 = vsub.f32 1.5, %v4809
  %v4811 = vmul.f32 %v4806, %v4810
  %v4812 = vmul.f32 %v4510, %v4811
  %vm4813 = vcmp.eq.f32.partialorder %v4510, inf
  %v4814 = vsel %vm4813, %v4510, %v4812
  %vm4815 = vcmp.eq.f32.partialorder %v4510, 0.0
  %v4816 = vand.u32 %v4510, 2147483648
  %v4817 = vsel %vm4815, %v4816, %v4814
  %v4818 = vrsqrt.pop %v4511
  %v4819 = vmul.f32 %v4818, %v4511
  %v4820 = vmul.f32 %v4819, %v4818
  %v4821 = vmul.f32 0.5, %v4820
  %v4822 = vsub.f32 1.5, %v4821
  %v4823 = vmul.f32 %v4818, %v4822
  %v4824 = vmul.f32 %v4511, %v4823
  %vm4825 = vcmp.eq.f32.partialorder %v4511, inf
  %v4826 = vsel %vm4825, %v4511, %v4824
  %vm4827 = vcmp.eq.f32.partialorder %v4511, 0.0
  %v4828 = vand.u32 %v4511, 2147483648
  %v4829 = vsel %vm4827, %v4828, %v4826
  %v4830 = vrsqrt.pop %v4512
  %v4831 = vmul.f32 %v4830, %v4512
  %v4832 = vmul.f32 %v4831, %v4830
  %v4833 = vmul.f32 0.5, %v4832
  %v4834 = vsub.f32 1.5, %v4833
  %v4835 = vmul.f32 %v4830, %v4834
  %v4836 = vmul.f32 %v4512, %v4835
  %vm4837 = vcmp.eq.f32.partialorder %v4512, inf
  %v4838 = vsel %vm4837, %v4512, %v4836
  %vm4839 = vcmp.eq.f32.partialorder %v4512, 0.0
  %v4840 = vand.u32 %v4512, 2147483648
  %v4841 = vsel %vm4839, %v4840, %v4838
  %v4842 = vrsqrt.pop %v4513
  %v4843 = vmul.f32 %v4842, %v4513
  %v4844 = vmul.f32 %v4843, %v4842
  %v4845 = vmul.f32 0.5, %v4844
  %v4846 = vsub.f32 1.5, %v4845
  %v4847 = vmul.f32 %v4842, %v4846
  %v4848 = vmul.f32 %v4513, %v4847
  %vm4849 = vcmp.eq.f32.partialorder %v4513, inf
  %v4850 = vsel %vm4849, %v4513, %v4848
  %vm4851 = vcmp.eq.f32.partialorder %v4513, 0.0
  %v4852 = vand.u32 %v4513, 2147483648
  %v4853 = vsel %vm4851, %v4852, %v4850
  %v4854 = vrsqrt.pop %v4514
  %v4855 = vmul.f32 %v4854, %v4514
  %v4856 = vmul.f32 %v4855, %v4854
  %v4857 = vmul.f32 0.5, %v4856
  %v4858 = vsub.f32 1.5, %v4857
  %v4859 = vmul.f32 %v4854, %v4858
  %v4860 = vmul.f32 %v4514, %v4859
  %vm4861 = vcmp.eq.f32.partialorder %v4514, inf
  %v4862 = vsel %vm4861, %v4514, %v4860
  %vm4863 = vcmp.eq.f32.partialorder %v4514, 0.0
  %v4864 = vand.u32 %v4514, 2147483648
  %v4865 = vsel %vm4863, %v4864, %v4862
  %v4866 = vrsqrt.pop %v4515
  %v4867 = vmul.f32 %v4866, %v4515
  %v4868 = vmul.f32 %v4867, %v4866
  %v4869 = vmul.f32 0.5, %v4868
  %v4870 = vsub.f32 1.5, %v4869
  %v4871 = vmul.f32 %v4866, %v4870
  %v4872 = vmul.f32 %v4515, %v4871
  %vm4873 = vcmp.eq.f32.partialorder %v4515, inf
  %v4874 = vsel %vm4873, %v4515, %v4872
  %vm4875 = vcmp.eq.f32.partialorder %v4515, 0.0
  %v4876 = vand.u32 %v4515, 2147483648
  %v4877 = vsel %vm4875, %v4876, %v4874
  %v4878 = vrsqrt.pop %v4516
  %v4879 = vmul.f32 %v4878, %v4516
  %v4880 = vmul.f32 %v4879, %v4878
  %v4881 = vmul.f32 0.5, %v4880
  %v4882 = vsub.f32 1.5, %v4881
  %v4883 = vmul.f32 %v4878, %v4882
  %v4884 = vmul.f32 %v4516, %v4883
  %vm4885 = vcmp.eq.f32.partialorder %v4516, inf
  %v4886 = vsel %vm4885, %v4516, %v4884
  %vm4887 = vcmp.eq.f32.partialorder %v4516, 0.0
  %v4888 = vand.u32 %v4516, 2147483648
  %v4889 = vsel %vm4887, %v4888, %v4886
  %v4890 = vrsqrt.pop %v4517
  %v4891 = vmul.f32 %v4890, %v4517
  %v4892 = vmul.f32 %v4891, %v4890
  %v4893 = vmul.f32 0.5, %v4892
  %v4894 = vsub.f32 1.5, %v4893
  %v4895 = vmul.f32 %v4890, %v4894
  %v4896 = vmul.f32 %v4517, %v4895
  %vm4897 = vcmp.eq.f32.partialorder %v4517, inf
  %v4898 = vsel %vm4897, %v4517, %v4896
  %vm4899 = vcmp.eq.f32.partialorder %v4517, 0.0
  %v4900 = vand.u32 %v4517, 2147483648
  %v4901 = vsel %vm4899, %v4900, %v4898
  %v4902 = vpack.c.bf16 %v4073, %v4049
  %v4903 = vpack.c.bf16 %v4085, %v4061
  %v4904 = vpack.c.bf16 %v4121, %v4097
  %v4905 = vpack.c.bf16 %v4133, %v4109
  %v4906 = vpack.c.bf16 %v4169, %v4145
  %v4907 = vpack.c.bf16 %v4181, %v4157
  %v4908 = vpack.c.bf16 %v4217, %v4193
  %v4909 = vpack.c.bf16 %v4229, %v4205
  %v4910 = vpack.c.bf16 %v4265, %v4241
  %v4911 = vpack.c.bf16 %v4277, %v4253
  %v4912 = vpack.c.bf16 %v4313, %v4289
  %v4913 = vpack.c.bf16 %v4325, %v4301
  %v4914 = vpack.c.bf16 %v4361, %v4337
  %v4915 = vpack.c.bf16 %v4373, %v4349
  %v4916 = vpack.c.bf16 %v4409, %v4385
  %v4917 = vpack.c.bf16 %v4421, %v4397
  %v4918 = vld [vmem:[%s3] sm:$0xf]
  %v4919 = vld [vmem:[%s3 + $0x4] sm:$0xf]
  %v4920 = vld [vmem:[%s3 + $0x8] sm:$0xf]
  %v4921 = vld [vmem:[%s3 + $0xc] sm:$0xf]
  %v4922 = vld [vmem:[%s3 + $0x10] sm:$0xf]
  %v4923 = vld [vmem:[%s3 + $0x14] sm:$0xf]
  %v4924 = vld [vmem:[%s3 + $0x18] sm:$0xf]
  %v4925 = vld [vmem:[%s3 + $0x1c] sm:$0xf]
  %v4926 = vld [vmem:[%s3 + $0x20] sm:$0xf]
  %v4927 = vld [vmem:[%s3 + $0x24] sm:$0xf]
  %v4928 = vld [vmem:[%s3 + $0x28] sm:$0xf]
  %v4929 = vld [vmem:[%s3 + $0x2c] sm:$0xf]
  %v4930 = vld [vmem:[%s3 + $0x30] sm:$0xf]
  %v4931 = vld [vmem:[%s3 + $0x34] sm:$0xf]
  %v4932 = vld [vmem:[%s3 + $0x38] sm:$0xf]
  %v4933 = vld [vmem:[%s3 + $0x3c] sm:$0xf]
  %v4934 = vld [vmem:[%s3 + $0x40] sm:$0xf]
  %v4935 = vld [vmem:[%s3 + $0x44] sm:$0xf]
  %v4936 = vld [vmem:[%s3 + $0x48] sm:$0xf]
  %v4937 = vld [vmem:[%s3 + $0x4c] sm:$0xf]
  %v4938 = vld [vmem:[%s3 + $0x50] sm:$0xf]
  %v4939 = vld [vmem:[%s3 + $0x54] sm:$0xf]
  %v4940 = vld [vmem:[%s3 + $0x58] sm:$0xf]
  %v4941 = vld [vmem:[%s3 + $0x5c] sm:$0xf]
  %v4942 = vld [vmem:[%s3 + $0x60] sm:$0xf]
  %v4943 = vld [vmem:[%s3 + $0x64] sm:$0xf]
  %v4944 = vld [vmem:[%s3 + $0x68] sm:$0xf]
  %v4945 = vld [vmem:[%s3 + $0x6c] sm:$0xf]
  %v4946 = vld [vmem:[%s3 + $0x70] sm:$0xf]
  %v4947 = vld [vmem:[%s3 + $0x74] sm:$0xf]
  %v4948 = vld [vmem:[%s3 + $0x78] sm:$0xf]
  %v4949 = vld [vmem:[%s3 + $0x7c] sm:$0xf]
  %v4950 = vpack.c.bf16 %v4553, %v4529
  %v4951 = vpack.c.bf16 %v4565, %v4541
  %v4952 = vpack.c.bf16 %v4601, %v4577
  %v4953 = vpack.c.bf16 %v4613, %v4589
  %v4954 = vpack.c.bf16 %v4649, %v4625
  %v4955 = vpack.c.bf16 %v4661, %v4637
  %v4956 = vpack.c.bf16 %v4697, %v4673
  %v4957 = vpack.c.bf16 %v4709, %v4685
  %v4958 = vpack.c.bf16 %v4745, %v4721
  %v4959 = vpack.c.bf16 %v4757, %v4733
  %v4960 = vpack.c.bf16 %v4793, %v4769
  %v4961 = vpack.c.bf16 %v4805, %v4781
  %v4962 = vpack.c.bf16 %v4841, %v4817
  %v4963 = vpack.c.bf16 %v4853, %v4829
  %v4964 = vpack.c.bf16 %v4889, %v4865
  %v4965 = vpack.c.bf16 %v4901, %v4877
  %v4966 = vld [vmem:[%s3 + $0x80] sm:$0xf]
  %v4967 = vld [vmem:[%s3 + $0x84] sm:$0xf]
  %v4968 = vld [vmem:[%s3 + $0x88] sm:$0xf]
  %v4969 = vld [vmem:[%s3 + $0x8c] sm:$0xf]
  %v4970 = vld [vmem:[%s3 + $0x90] sm:$0xf]
  %v4971 = vld [vmem:[%s3 + $0x94] sm:$0xf]
  %v4972 = vld [vmem:[%s3 + $0x98] sm:$0xf]
  %v4973 = vld [vmem:[%s3 + $0x9c] sm:$0xf]
  %v4974 = vld [vmem:[%s3 + $0xa0] sm:$0xf]
  %v4975 = vld [vmem:[%s3 + $0xa4] sm:$0xf]
  %v4976 = vld [vmem:[%s3 + $0xa8] sm:$0xf]
  %v4977 = vld [vmem:[%s3 + $0xac] sm:$0xf]
  %v4978 = vld [vmem:[%s3 + $0xb0] sm:$0xf]
  %v4979 = vld [vmem:[%s3 + $0xb4] sm:$0xf]
  %v4980 = vld [vmem:[%s3 + $0xb8] sm:$0xf]
  %v4981 = vld [vmem:[%s3 + $0xbc] sm:$0xf]
  %v4982 = vld [vmem:[%s3 + $0xc0] sm:$0xf]
  %v4983 = vld [vmem:[%s3 + $0xc4] sm:$0xf]
  %v4984 = vld [vmem:[%s3 + $0xc8] sm:$0xf]
  %v4985 = vld [vmem:[%s3 + $0xcc] sm:$0xf]
  %v4986 = vld [vmem:[%s3 + $0xd0] sm:$0xf]
  %v4987 = vld [vmem:[%s3 + $0xd4] sm:$0xf]
  %v4988 = vld [vmem:[%s3 + $0xd8] sm:$0xf]
  %v4989 = vld [vmem:[%s3 + $0xdc] sm:$0xf]
  %v4990 = vld [vmem:[%s3 + $0xe0] sm:$0xf]
  %v4991 = vld [vmem:[%s3 + $0xe4] sm:$0xf]
  %v4992 = vld [vmem:[%s3 + $0xe8] sm:$0xf]
  %v4993 = vld [vmem:[%s3 + $0xec] sm:$0xf]
  %v4994 = vld [vmem:[%s3 + $0xf0] sm:$0xf]
  %v4995 = vld [vmem:[%s3 + $0xf4] sm:$0xf]
  %v4996 = vld [vmem:[%s3 + $0xf8] sm:$0xf]
  %v4997 = vld [vmem:[%s3 + $0xfc] sm:$0xf]
  %v5030 = vunpack.c.l.b16 %v4966
  %v5031 = vunpack.c.l.b16 %v4967
  %v5032 = vunpack.c.l.b16 %v4968
  %v5033 = vunpack.c.l.b16 %v4969
  %v5034 = vunpack.c.l.b16 %v4970
  %v5035 = vunpack.c.l.b16 %v4971
  %v5036 = vunpack.c.l.b16 %v4972
  %v5037 = vunpack.c.l.b16 %v4973
  %v5038 = vunpack.c.l.b16 %v4974
  %v5039 = vunpack.c.l.b16 %v4975
  %v5040 = vunpack.c.l.b16 %v4976
  %v5041 = vunpack.c.l.b16 %v4977
  %v5042 = vunpack.c.l.b16 %v4978
  %v5043 = vunpack.c.l.b16 %v4979
  %v5044 = vunpack.c.l.b16 %v4980
  %v5045 = vunpack.c.l.b16 %v4981
  %v5046 = vunpack.c.l.b16 %v4982
  %v5047 = vunpack.c.l.b16 %v4983
  %v5048 = vunpack.c.l.b16 %v4984
  %v5049 = vunpack.c.l.b16 %v4985
  %v5050 = vunpack.c.l.b16 %v4986
  %v5051 = vunpack.c.l.b16 %v4987
  %v5052 = vunpack.c.l.b16 %v4988
  %v5053 = vunpack.c.l.b16 %v4989
  %v5054 = vunpack.c.l.b16 %v4990
  %v5055 = vunpack.c.l.b16 %v4991
  %v5056 = vunpack.c.l.b16 %v4992
  %v5057 = vunpack.c.l.b16 %v4993
  %v5058 = vunpack.c.l.b16 %v4994
  %v5059 = vunpack.c.l.b16 %v4995
  %v5060 = vunpack.c.l.b16 %v4996
  %v5061 = vunpack.c.l.b16 %v4997
  %v5062 = vpack.c.b16 %v5031, %v5030
  %v5063 = vpack.c.b16 %v5033, %v5032
  %v5064 = vpack.c.b16 %v5035, %v5034
  %v5065 = vpack.c.b16 %v5037, %v5036
  %v5066 = vpack.c.b16 %v5039, %v5038
  %v5067 = vpack.c.b16 %v5041, %v5040
  %v5068 = vpack.c.b16 %v5043, %v5042
  %v5069 = vpack.c.b16 %v5045, %v5044
  %v5070 = vpack.c.b16 %v5047, %v5046
  %v5071 = vpack.c.b16 %v5049, %v5048
  %v5072 = vpack.c.b16 %v5051, %v5050
  %v5073 = vpack.c.b16 %v5053, %v5052
  %v5074 = vpack.c.b16 %v5055, %v5054
  %v5075 = vpack.c.b16 %v5057, %v5056
  %v5076 = vpack.c.b16 %v5059, %v5058
  %v5077 = vpack.c.b16 %v5061, %v5060
  %5094 = vmatpush.bf16.msra.mxu0 %v5069
  %5095 = vmatpush.bf16.msra.mxu0 %v5068
  %5096 = vmatpush.bf16.msra.mxu0 %v5067
  %5097 = vmatpush.bf16.msra.mxu0 %v5066
  %5098 = vmatpush.bf16.msra.mxu0 %v5065
  %5099 = vmatpush.bf16.msra.mxu0 %v5064
  %5100 = vmatpush.bf16.msra.mxu0 %v5063
  %5101 = vmatpush.bf16.msra.mxu0 %v5062
  %5102 = vmatmul.bf16.gmra.mxu0 %v4950
  %v5103 = vpop.f32.mrf.mxu0
  %v5104 = vadd.f32 0.0, %v5103
  %v5105 = vpop.f32.mrf.mxu0
  %v5106 = vadd.f32 0.0, %v5105
  %5107 = vmatmul.bf16.gmra.mxu0 %v4952
  %v5108 = vpop.f32.mrf.mxu0
  %v5109 = vadd.f32 0.0, %v5108
  %v5110 = vpop.f32.mrf.mxu0
  %v5111 = vadd.f32 0.0, %v5110
  %5112 = vmatmul.bf16.gmra.mxu0 %v4954
  %v5113 = vpop.f32.mrf.mxu0
  %v5114 = vadd.f32 0.0, %v5113
  %v5115 = vpop.f32.mrf.mxu0
  %v5116 = vadd.f32 0.0, %v5115
  %5117 = vmatmul.bf16.gmra.mxu0 %v4956
  %v5118 = vpop.f32.mrf.mxu0
  %v5119 = vadd.f32 0.0, %v5118
  %v5120 = vpop.f32.mrf.mxu0
  %v5121 = vadd.f32 0.0, %v5120
  %5122 = vmatmul.bf16.gmra.mxu0 %v4958
  %v5123 = vpop.f32.mrf.mxu0
  %v5124 = vadd.f32 0.0, %v5123
  %v5125 = vpop.f32.mrf.mxu0
  %v5126 = vadd.f32 0.0, %v5125
  %5127 = vmatmul.bf16.gmra.mxu0 %v4960
  %v5128 = vpop.f32.mrf.mxu0
  %v5129 = vadd.f32 0.0, %v5128
  %v5130 = vpop.f32.mrf.mxu0
  %v5131 = vadd.f32 0.0, %v5130
  %5132 = vmatmul.bf16.gmra.mxu0 %v4962
  %v5133 = vpop.f32.mrf.mxu0
  %v5134 = vadd.f32 0.0, %v5133
  %v5135 = vpop.f32.mrf.mxu0
  %v5136 = vadd.f32 0.0, %v5135
  %5137 = vmatmul.bf16.gmra.mxu0 %v4964
  %v5138 = vpop.f32.mrf.mxu0
  %v5139 = vadd.f32 0.0, %v5138
  %v5140 = vpop.f32.mrf.mxu0
  %v5141 = vadd.f32 0.0, %v5140
  %5142 = vdwg.mxu0
  %5143 = vmatpush.bf16.msra.mxu0 %v5077
  %5144 = vmatpush.bf16.msra.mxu0 %v5076
  %5145 = vmatpush.bf16.msra.mxu0 %v5075
  %5146 = vmatpush.bf16.msra.mxu0 %v5074
  %5147 = vmatpush.bf16.msra.mxu0 %v5073
  %5148 = vmatpush.bf16.msra.mxu0 %v5072
  %5149 = vmatpush.bf16.msra.mxu0 %v5071
  %5150 = vmatpush.bf16.msra.mxu0 %v5070
  %5151 = vmatmul.bf16.gmra.mxu0 %v4951
  %v5152 = vpop.f32.mrf.mxu0
  %v5153 = vadd.f32 %v5104, %v5152
  %v5154 = vpop.f32.mrf.mxu0
  %v5155 = vadd.f32 %v5106, %v5154
  %5156 = vmatmul.bf16.gmra.mxu0 %v4953
  %v5157 = vpop.f32.mrf.mxu0
  %v5158 = vadd.f32 %v5109, %v5157
  %v5159 = vpop.f32.mrf.mxu0
  %v5160 = vadd.f32 %v5111, %v5159
  %5161 = vmatmul.bf16.gmra.mxu0 %v4955
  %v5162 = vpop.f32.mrf.mxu0
  %v5163 = vadd.f32 %v5114, %v5162
  %v5164 = vpop.f32.mrf.mxu0
  %v5165 = vadd.f32 %v5116, %v5164
  %5166 = vmatmul.bf16.gmra.mxu0 %v4957
  %v5167 = vpop.f32.mrf.mxu0
  %v5168 = vadd.f32 %v5119, %v5167
  %v5169 = vpop.f32.mrf.mxu0
  %v5170 = vadd.f32 %v5121, %v5169
  %5171 = vmatmul.bf16.gmra.mxu0 %v4959
  %v5172 = vpop.f32.mrf.mxu0
  %v5173 = vadd.f32 %v5124, %v5172
  %v5174 = vpop.f32.mrf.mxu0
  %v5175 = vadd.f32 %v5126, %v5174
  %5176 = vmatmul.bf16.gmra.mxu0 %v4961
  %v5177 = vpop.f32.mrf.mxu0
  %v5178 = vadd.f32 %v5129, %v5177
  %v5179 = vpop.f32.mrf.mxu0
  %v5180 = vadd.f32 %v5131, %v5179
  %5181 = vmatmul.bf16.gmra.mxu0 %v4963
  %v5182 = vpop.f32.mrf.mxu0
  %v5183 = vadd.f32 %v5134, %v5182
  %v5184 = vpop.f32.mrf.mxu0
  %v5185 = vadd.f32 %v5136, %v5184
  %5186 = vmatmul.bf16.gmra.mxu0 %v4965
  %v5187 = vpop.f32.mrf.mxu0
  %v5188 = vadd.f32 %v5139, %v5187
  %v5189 = vpop.f32.mrf.mxu0
  %v5190 = vadd.f32 %v5141, %v5189
  %5191 = vdwg.mxu0
  %v5224 = vunpack.c.l.b16 %v4918
  %v5225 = vunpack.c.l.b16 %v4919
  %v5226 = vunpack.c.l.b16 %v4920
  %v5227 = vunpack.c.l.b16 %v4921
  %v5228 = vunpack.c.l.b16 %v4922
  %v5229 = vunpack.c.l.b16 %v4923
  %v5230 = vunpack.c.l.b16 %v4924
  %v5231 = vunpack.c.l.b16 %v4925
  %v5232 = vunpack.c.l.b16 %v4926
  %v5233 = vunpack.c.l.b16 %v4927
  %v5234 = vunpack.c.l.b16 %v4928
  %v5235 = vunpack.c.l.b16 %v4929
  %v5236 = vunpack.c.l.b16 %v4930
  %v5237 = vunpack.c.l.b16 %v4931
  %v5238 = vunpack.c.l.b16 %v4932
  %v5239 = vunpack.c.l.b16 %v4933
  %v5240 = vunpack.c.l.b16 %v4934
  %v5241 = vunpack.c.l.b16 %v4935
  %v5242 = vunpack.c.l.b16 %v4936
  %v5243 = vunpack.c.l.b16 %v4937
  %v5244 = vunpack.c.l.b16 %v4938
  %v5245 = vunpack.c.l.b16 %v4939
  %v5246 = vunpack.c.l.b16 %v4940
  %v5247 = vunpack.c.l.b16 %v4941
  %v5248 = vunpack.c.l.b16 %v4942
  %v5249 = vunpack.c.l.b16 %v4943
  %v5250 = vunpack.c.l.b16 %v4944
  %v5251 = vunpack.c.l.b16 %v4945
  %v5252 = vunpack.c.l.b16 %v4946
  %v5253 = vunpack.c.l.b16 %v4947
  %v5254 = vunpack.c.l.b16 %v4948
  %v5255 = vunpack.c.l.b16 %v4949
  %v5256 = vpack.c.b16 %v5225, %v5224
  %v5257 = vpack.c.b16 %v5227, %v5226
  %v5258 = vpack.c.b16 %v5229, %v5228
  %v5259 = vpack.c.b16 %v5231, %v5230
  %v5260 = vpack.c.b16 %v5233, %v5232
  %v5261 = vpack.c.b16 %v5235, %v5234
  %v5262 = vpack.c.b16 %v5237, %v5236
  %v5263 = vpack.c.b16 %v5239, %v5238
  %v5264 = vpack.c.b16 %v5241, %v5240
  %v5265 = vpack.c.b16 %v5243, %v5242
  %v5266 = vpack.c.b16 %v5245, %v5244
  %v5267 = vpack.c.b16 %v5247, %v5246
  %v5268 = vpack.c.b16 %v5249, %v5248
  %v5269 = vpack.c.b16 %v5251, %v5250
  %v5270 = vpack.c.b16 %v5253, %v5252
  %v5271 = vpack.c.b16 %v5255, %v5254
  %5288 = vmatpush.bf16.msra.mxu0 %v5263
  %5289 = vmatpush.bf16.msra.mxu0 %v5262
  %5290 = vmatpush.bf16.msra.mxu0 %v5261
  %5291 = vmatpush.bf16.msra.mxu0 %v5260
  %5292 = vmatpush.bf16.msra.mxu0 %v5259
  %5293 = vmatpush.bf16.msra.mxu0 %v5258
  %5294 = vmatpush.bf16.msra.mxu0 %v5257
  %5295 = vmatpush.bf16.msra.mxu0 %v5256
  %5296 = vmatmul.bf16.gmra.mxu0 %v4902
  %v5297 = vpop.f32.mrf.mxu0
  %v5298 = vadd.f32 %v5153, %v5297
  %v5299 = vpop.f32.mrf.mxu0
  %v5300 = vadd.f32 %v5155, %v5299
  %5301 = vmatmul.bf16.gmra.mxu0 %v4904
  %v5302 = vpop.f32.mrf.mxu0
  %v5303 = vadd.f32 %v5158, %v5302
  %v5304 = vpop.f32.mrf.mxu0
  %v5305 = vadd.f32 %v5160, %v5304
  %5306 = vmatmul.bf16.gmra.mxu0 %v4906
  %v5307 = vpop.f32.mrf.mxu0
  %v5308 = vadd.f32 %v5163, %v5307
  %v5309 = vpop.f32.mrf.mxu0
  %v5310 = vadd.f32 %v5165, %v5309
  %5311 = vmatmul.bf16.gmra.mxu0 %v4908
  %v5312 = vpop.f32.mrf.mxu0
  %v5313 = vadd.f32 %v5168, %v5312
  %v5314 = vpop.f32.mrf.mxu0
  %v5315 = vadd.f32 %v5170, %v5314
  %5316 = vmatmul.bf16.gmra.mxu0 %v4910
  %v5317 = vpop.f32.mrf.mxu0
  %v5318 = vadd.f32 %v5173, %v5317
  %v5319 = vpop.f32.mrf.mxu0
  %v5320 = vadd.f32 %v5175, %v5319
  %5321 = vmatmul.bf16.gmra.mxu0 %v4912
  %v5322 = vpop.f32.mrf.mxu0
  %v5323 = vadd.f32 %v5178, %v5322
  %v5324 = vpop.f32.mrf.mxu0
  %v5325 = vadd.f32 %v5180, %v5324
  %5326 = vmatmul.bf16.gmra.mxu0 %v4914
  %v5327 = vpop.f32.mrf.mxu0
  %v5328 = vadd.f32 %v5183, %v5327
  %v5329 = vpop.f32.mrf.mxu0
  %v5330 = vadd.f32 %v5185, %v5329
  %5331 = vmatmul.bf16.gmra.mxu0 %v4916
  %v5332 = vpop.f32.mrf.mxu0
  %v5333 = vadd.f32 %v5188, %v5332
  %v5334 = vpop.f32.mrf.mxu0
  %v5335 = vadd.f32 %v5190, %v5334
  %5336 = vdwg.mxu0
  %5337 = vmatpush.bf16.msra.mxu0 %v5271
  %5338 = vmatpush.bf16.msra.mxu0 %v5270
  %5339 = vmatpush.bf16.msra.mxu0 %v5269
  %5340 = vmatpush.bf16.msra.mxu0 %v5268
  %5341 = vmatpush.bf16.msra.mxu0 %v5267
  %5342 = vmatpush.bf16.msra.mxu0 %v5266
  %5343 = vmatpush.bf16.msra.mxu0 %v5265
  %5344 = vmatpush.bf16.msra.mxu0 %v5264
  %5345 = vmatmul.bf16.gmra.mxu0 %v4903
  %v5346 = vpop.f32.mrf.mxu0
  %v5347 = vadd.f32 %v5298, %v5346
  %v5348 = vpop.f32.mrf.mxu0
  %v5349 = vadd.f32 %v5300, %v5348
  %5350 = vmatmul.bf16.gmra.mxu0 %v4905
  %v5351 = vpop.f32.mrf.mxu0
  %v5352 = vadd.f32 %v5303, %v5351
  %v5353 = vpop.f32.mrf.mxu0
  %v5354 = vadd.f32 %v5305, %v5353
  %5355 = vmatmul.bf16.gmra.mxu0 %v4907
  %v5356 = vpop.f32.mrf.mxu0
  %v5357 = vadd.f32 %v5308, %v5356
  %v5358 = vpop.f32.mrf.mxu0
  %v5359 = vadd.f32 %v5310, %v5358
  %5360 = vmatmul.bf16.gmra.mxu0 %v4909
  %v5361 = vpop.f32.mrf.mxu0
  %v5362 = vadd.f32 %v5313, %v5361
  %v5363 = vpop.f32.mrf.mxu0
  %v5364 = vadd.f32 %v5315, %v5363
  %5365 = vmatmul.bf16.gmra.mxu0 %v4911
  %v5366 = vpop.f32.mrf.mxu0
  %v5367 = vadd.f32 %v5318, %v5366
  %v5368 = vpop.f32.mrf.mxu0
  %v5369 = vadd.f32 %v5320, %v5368
  %5370 = vmatmul.bf16.gmra.mxu0 %v4913
  %v5371 = vpop.f32.mrf.mxu0
  %v5372 = vadd.f32 %v5323, %v5371
  %v5373 = vpop.f32.mrf.mxu0
  %v5374 = vadd.f32 %v5325, %v5373
  %5375 = vmatmul.bf16.gmra.mxu0 %v4915
  %v5376 = vpop.f32.mrf.mxu0
  %v5377 = vadd.f32 %v5328, %v5376
  %v5378 = vpop.f32.mrf.mxu0
  %v5379 = vadd.f32 %v5330, %v5378
  %5380 = vmatmul.bf16.gmra.mxu0 %v4917
  %v5381 = vpop.f32.mrf.mxu0
  %v5382 = vadd.f32 %v5333, %v5381
  %v5383 = vpop.f32.mrf.mxu0
  %v5384 = vadd.f32 %v5335, %v5383
  %5385 = vdwg.mxu0
  %v5386 = vmax.f32 %v5347, 1e-05
  %v5387 = vmax.f32 %v5349, 1e-05
  %v5388 = vmax.f32 %v5352, 1e-05
  %v5389 = vmax.f32 %v5354, 1e-05
  %v5390 = vmax.f32 %v5357, 1e-05
  %v5391 = vmax.f32 %v5359, 1e-05
  %v5392 = vmax.f32 %v5362, 1e-05
  %v5393 = vmax.f32 %v5364, 1e-05
  %v5394 = vmax.f32 %v5367, 1e-05
  %v5395 = vmax.f32 %v5369, 1e-05
  %v5396 = vmax.f32 %v5372, 1e-05
  %v5397 = vmax.f32 %v5374, 1e-05
  %v5398 = vmax.f32 %v5377, 1e-05
  %v5399 = vmax.f32 %v5379, 1e-05
  %v5400 = vmax.f32 %v5382, 1e-05
  %v5401 = vmax.f32 %v5384, 1e-05
  %v5402 = vlog2.pop %v5386
  %v5403 = vmul.f32 %v5402, 0.6931472
  %v5404 = vlog2.pop %v5387
  %v5405 = vmul.f32 %v5404, 0.6931472
  %v5406 = vlog2.pop %v5388
  %v5407 = vmul.f32 %v5406, 0.6931472
  %v5408 = vlog2.pop %v5389
  %v5409 = vmul.f32 %v5408, 0.6931472
  %v5410 = vlog2.pop %v5390
  %v5411 = vmul.f32 %v5410, 0.6931472
  %v5412 = vlog2.pop %v5391
  %v5413 = vmul.f32 %v5412, 0.6931472
  %v5414 = vlog2.pop %v5392
  %v5415 = vmul.f32 %v5414, 0.6931472
  %v5416 = vlog2.pop %v5393
  %v5417 = vmul.f32 %v5416, 0.6931472
  %v5418 = vlog2.pop %v5394
  %v5419 = vmul.f32 %v5418, 0.6931472
  %v5420 = vlog2.pop %v5395
  %v5421 = vmul.f32 %v5420, 0.6931472
  %v5422 = vlog2.pop %v5396
  %v5423 = vmul.f32 %v5422, 0.6931472
  %v5424 = vlog2.pop %v5397
  %v5425 = vmul.f32 %v5424, 0.6931472
  %v5426 = vlog2.pop %v5398
  %v5427 = vmul.f32 %v5426, 0.6931472
  %v5428 = vlog2.pop %v5399
  %v5429 = vmul.f32 %v5428, 0.6931472
  %v5430 = vlog2.pop %v5400
  %v5431 = vmul.f32 %v5430, 0.6931472
  %v5432 = vlog2.pop %v5401
  %v5433 = vmul.f32 %v5432, 0.6931472
  %5434 = vst [vmem:[%s5] sm:$0xff] %v5403
  %5435 = vst [vmem:[%s5 + $0x8] sm:$0xff] %v5405
  %5436 = vst [vmem:[%s5 + $0x10] sm:$0xff] %v5407
  %5437 = vst [vmem:[%s5 + $0x18] sm:$0xff] %v5409
  %5438 = vst [vmem:[%s5 + $0x20] sm:$0xff] %v5411
  %5439 = vst [vmem:[%s5 + $0x28] sm:$0xff] %v5413
  %5440 = vst [vmem:[%s5 + $0x30] sm:$0xff] %v5415
  %5441 = vst [vmem:[%s5 + $0x38] sm:$0xff] %v5417
  %5442 = vst [vmem:[%s5 + $0x40] sm:$0xff] %v5419
  %5443 = vst [vmem:[%s5 + $0x48] sm:$0xff] %v5421
  %5444 = vst [vmem:[%s5 + $0x50] sm:$0xff] %v5423
  %5445 = vst [vmem:[%s5 + $0x58] sm:$0xff] %v5425
  %5446 = vst [vmem:[%s5 + $0x60] sm:$0xff] %v5427
  %5447 = vst [vmem:[%s5 + $0x68] sm:$0xff] %v5429
  %5448 = vst [vmem:[%s5 + $0x70] sm:$0xff] %v5431
  %5449 = vst [vmem:[%s5 + $0x78] sm:$0xff] %v5433
  // Predicated region
  $region22: #{_log_mel_impl.1} parent=0 // pred_check
    _
  $region23: #{_log_mel_impl.1} parent=0 // pred_check_branch
    %5451 = sbr.rel (0) target = $region25
  $region24: #{_log_mel_impl.1} parent=0 // pred_region
    _
  $region25: #{_log_mel_impl.1} parent=0 // pred_fallthru
    _
  // Predicated region
  $region26: #{_log_mel_impl.1} parent=0 // pred_check
    _
  $region27: #{_log_mel_impl.1} parent=0 // pred_check_branch
    %5453 = sbr.rel (0) target = $region29
  $region28: #{_log_mel_impl.1} parent=0 // pred_region
    _
  $region29: #{_log_mel_impl.1} parent=0 // pred_fallthru
    _

</llo_original>
